<compile_context>
chip_gen: v5e
topology: v5e:2x2
jax: 0.10.0
libtpu: 0.0.40
codegen_flags: <defaults>
</compile_context>

<pallas_src>
import numpy as np
import jax
import jax.numpy as jnp
from jax.experimental import pallas as pl
from jax.experimental.pallas import tpu as pltpu

_NEG_SLOPE = 0.2
_BN_EPS = 1e-5
_VMEM_SPEC = pl.BlockSpec(memory_space=pltpu.MemorySpace.VMEM)


# ---------------------------------------------------------------------------
# Static layer geometry
# ---------------------------------------------------------------------------
def _layer_dims(nc, ndf, img):
    chans = [nc, ndf, ndf * 2, ndf * 4, ndf * 8]
    dims, h = [], img
    for l in range(4):
        oh = h // 2
        dims.append(dict(H=h, OH=oh, HB=oh + 1, CIN=chans[l], COUT=chans[l + 1],
                         WC=h * chans[l], OW=oh))
        h = oh
    return dims


# ---------------------------------------------------------------------------
# The single fused Pallas kernel (built as a closure over static config)
# ---------------------------------------------------------------------------
def _make_kernel(meta):
    n = meta["n"]
    dims = meta["dims"]
    sel_off = meta["sel_offsets"]
    f32, bf16 = jnp.float32, jnp.bfloat16

    def kernel(x_ref, sel_ref, g1_ref, gstack_ref, bnp_ref, bngb_ref,
               wfc_ref, bfc_ref, o_ref):
        sel_all = sel_ref[...]                               # packed 0/1 selectors, f32
        y = x_ref[...]                                       # (H1*N, W1*C1) f32

        for li in range(4):
            d = dims[li]
            hh, oh, hb = d["H"], d["OH"], d["HB"]
            off = sel_off[li]

            # -- batched even/odd padded-row phase split: ONE 0/1 selection matmul --
            s_mat = sel_all[off:off + 2 * hb * n, 0:hh * n]
            p = jnp.dot(s_mat, y, preferred_element_type=f32).astype(bf16)
            ae = p[0:hb * n, :]                              # even phase: input row 2b-1
            ao = p[hb * n:2 * hb * n, :]                     # odd  phase: input row 2b

            # -- merged 4-tap conv: lane-concat LHS + ONE MXU matmul (K = 4*W*Cin) ---
            lhs = jnp.concatenate(
                [ae[0:oh * n, :], ao[0:oh * n, :], ae[n:hb * n, :], ao[n:hb * n, :]],
                axis=1)                                      # (OH*N, 4*W*Cin) bf16
            g = g1_ref[...] if li == 0 else gstack_ref[li - 1]
            z = jnp.dot(lhs, g, preferred_element_type=f32)  # (OH*N, OW*Cout) f32

            # -- BatchNorm2d (training mode, batch statistics, biased var): layers 2..4
            if li >= 1:
                pmat = bnp_ref[li - 1]                       # (L, L) channel projector /cnt
                gb = bngb_ref[li - 1]                        # (2, L): gamma_l, beta_l
                stats = jnp.concatenate(
                    [jnp.sum(z, axis=0, keepdims=True),
                     jnp.sum(z * z, axis=0, keepdims=True)], axis=0)      # (2, L)
                mom = jnp.dot(stats, pmat, preferred_element_type=f32)    # [mean; E[x^2]]
                mean_l = mom[0:1, :]
                var_l = jnp.maximum(mom[1:2, :] - mean_l * mean_l, 0.0)
                scale_l = gb[0:1, :] * jax.lax.rsqrt(var_l + _BN_EPS)
                shift_l = gb[1:2, :] - mean_l * scale_l
                z = z * scale_l + shift_l

            # -- LeakyReLU(0.2) ------------------------------------------------------
            y = jnp.where(z >= 0.0, z, _NEG_SLOPE * z)       # rows h*N + n, lanes (w, c)

        # -- FC head: one batched matmul (NCHW flatten folded into wfc row order) -----
        oh4 = dims[3]["OH"]
        yb = y.astype(bf16)
        lhs_fc = jnp.concatenate([yb[r * n:(r + 1) * n, :] for r in range(oh4)], axis=1)
        o_ref[...] = (jnp.dot(lhs_fc, wfc_ref[...], preferred_element_type=f32)
                      + bfc_ref[...])

    return kernel


def make_forward_fn(meta):
    kernel = _make_kernel(meta)
    n, nz = meta["n"], meta["nz"]

    @jax.jit
    def forward(x_nchw, kp):
        b, c, h, w = x_nchw.shape
        assert b == n, "batch size is baked into the packed selection matrices"
        # NCHW -> (N*H, W*C), lane order (w, c).  For nc=1 this is a free reshape.
        x_in = jnp.transpose(x_nchw, (0, 2, 3, 1)).reshape(b * h, w * c).astype(jnp.float32)
        return pl.pallas_call(
            kernel,
            out_shape=jax.ShapeDtypeStruct((n, nz), jnp.float32),
            in_specs=[_VMEM_SPEC] * 8,
            out_specs=_VMEM_SPEC,
        )(x_in, kp["sel"], kp["g1"], kp["gstack"],
          kp["bn_p"], kp["bn_gb"], kp["wfc"], kp["bfc"])

    return forward


# ---------------------------------------------------------------------------
# Host-side weight restructuring / packing (pure preprocessing, done once)
# ---------------------------------------------------------------------------
def _round_up(v, m):
    return -(-v // m) * m


def _build_sel(h, n_batch, sample_major):
    """0/1 matrix mapping a layer input (rows = n*H+h if sample_major else h*N+n) to
    stacked even/odd padded-row phase buffers (rows = phase*HB*N + b*N + n)."""
    hb = h // 2 + 1
    s = np.zeros((2 * hb * n_batch, h * n_batch), np.float32)
    for ph in range(2):                      # 0: even buffer (row 2b-1), 1: odd (row 2b)
        for b in range(hb):
            row_in = 2 * b - 1 + ph
            if 0 <= row_in < h:
                for sn in range(n_batch):
                    r = ph * hb * n_batch + b * n_batch + sn
                    c = sn * h + row_in if sample_major else row_in * n_batch + sn
                    s[r, c] = 1.0
    return s


def _conv_to_g_merged(weight, w_in, ow):
    """torch (Cout, Cin, 4, 4) -> (4*W*Cin, OW*Cout) with width padding (pad=1) folded
    in; K-block i corresponds to kernel row i (matches the kernel's LHS lane order)."""
    cout, cin, kh, kw_sz = weight.shape
    g = np.zeros((kh, w_in * cin, ow * cout), np.float32)
    for i in range(kh):
        for o in range(ow):
            for kw in range(kw_sz):
                w = 2 * o + kw - 1
                if 0 <= w < w_in:
                    g[i, w * cin:(w + 1) * cin, o * cout:(o + 1) * cout] = weight[:, :, i, kw].T
    return g.reshape(kh * w_in * cin, ow * cout)


def build_kernel_params(tp, n_batch, nc=1, ndf=8, img=64):
    dims = _layer_dims(nc, ndf, img)
    L = dims[0]["OW"] * dims[0]["COUT"]       # conv-output lane width (same every layer)
    kp = {}

    # -- packed 0/1 phase-split selectors (one block per conv layer, 8-aligned rows) --
    blocks, offsets, off = [], [], 0
    for l, d in enumerate(dims):
        s = _build_sel(d["H"], n_batch, sample_major=(l == 0))
        blocks.append(s)
        offsets.append(off)
        off += _round_up(s.shape[0], 8)
    cols = _round_up(dims[0]["H"] * n_batch, 128)
    sel = np.zeros((_round_up(off, 8), cols), np.float32)
    for o, s in zip(offsets, blocks):
        sel[o:o + s.shape[0], :s.shape[1]] = s
    kp["sel"] = jnp.asarray(sel, jnp.float32)

    # -- merged conv tap matrices ------------------------------------------------------
    kp["g1"] = jnp.asarray(
        _conv_to_g_merged(np.asarray(tp["conv1_w"], np.float32),
                          dims[0]["H"], dims[0]["OW"]), jnp.bfloat16)
    gs = [_conv_to_g_merged(np.asarray(tp[f"conv{l + 1}_w"], np.float32),
                            dims[l]["H"], dims[l]["OW"]) for l in range(1, 4)]
    assert all(g.shape == (4 * L, L) for g in gs)
    kp["gstack"] = jnp.asarray(np.stack(gs, axis=0), jnp.bfloat16)

    # -- BatchNorm: per-channel averaging projector (reduce + broadcast + 1/cnt fused) -
    bn_p, bn_gb = [], []
    for l in range(1, 4):
        d = dims[l]
        c, ow = d["COUT"], d["OW"]
        assert ow * c == L
        cnt = float(n_batch * d["OH"] * ow)
        ch = np.arange(L) % c
        bn_p.append((ch[:, None] == ch[None, :]).astype(np.float32) / cnt)
        gamma = np.asarray(tp[f"bn{l + 1}_gamma"], np.float32)
        beta = np.asarray(tp[f"bn{l + 1}_beta"], np.float32)
        bn_gb.append(np.stack([np.tile(gamma, ow), np.tile(beta, ow)], axis=0))
    kp["bn_p"] = jnp.asarray(np.stack(bn_p, axis=0), jnp.float32)
    kp["bn_gb"] = jnp.asarray(np.stack(bn_gb, axis=0), jnp.float32)

    # -- FC head: NCHW flatten order folded into the weight rows ------------------------
    oh4, ow4, c4 = dims[3]["OH"], dims[3]["OW"], dims[3]["COUT"]
    fc_w = np.asarray(tp["fc_w"], np.float32)
    nz = fc_w.shape[0]
    wfc = np.zeros((oh4 * ow4 * c4, nz), np.float32)
    for oh in range(oh4):
        for ow_i in range(ow4):
            for co in range(c4):
                wfc[oh * ow4 * c4 + ow_i * c4 + co, :] = \
                    fc_w[:, co * oh4 * ow4 + oh * ow4 + ow_i]
    kp["wfc"] = jnp.asarray(wfc, jnp.bfloat16)
    kp["bfc"] = jnp.asarray(np.asarray(tp["fc_b"], np.float32).reshape(1, nz), jnp.float32)

    meta = dict(n=n_batch, nz=nz, dims=dims, sel_offsets=offsets, L=L)
    return kp, meta


# ---------------------------------------------------------------------------
# Random torch-layout parameters + pure-JAX (XLA, f32) reference for validation
# ---------------------------------------------------------------------------
def init_params(key, nz=32, nc=1, ndf=8):
    chans = [nc, ndf, ndf * 2, ndf * 4, ndf * 8]
    keys = jax.random.split(key, 16)
    tp, ki = {}, 0
    for li in range(4):
        cout = chans[li + 1]
        tp[f"conv{li + 1}_w"] = 0.05 * jax.random.normal(
            keys[ki], (cout, chans[li], 4, 4), jnp.float32); ki += 1
        if li > 0:
            tp[f"bn{li + 1}_gamma"] = 1.0 + 0.01 * jax.random.normal(
                keys[ki], (cout,), jnp.float32); ki += 1
            tp[f"bn{li + 1}_beta"] = 0.01 * jax.random.normal(
                keys[ki], (cout,), jnp.float32); ki += 1
    feat = ndf * 8 * 4 * 4
    tp["fc_w"] = 0.05 * jax.random.normal(keys[ki], (nz, feat), jnp.float32); ki += 1
    tp["fc_b"] = 0.01 * jax.random.normal(keys[ki], (nz,), jnp.float32); ki += 1
    return tp


def _reference_forward(x_nchw, tp):
    # Matches nn.BatchNorm2d in training mode (batch statistics, biased variance).
    x = x_nchw.astype(jnp.float32)
    for li in range(4):
        w = tp[f"conv{li + 1}_w"]
        x = jax.lax.conv_general_dilated(
            x, w, window_strides=(2, 2), padding=((1, 1), (1, 1)),
            dimension_numbers=("NCHW", "OIHW", "NCHW"))
        if li > 0:
            g = tp[f"bn{li + 1}_gamma"].reshape(1, -1, 1, 1)
            b = tp[f"bn{li + 1}_beta"].reshape(1, -1, 1, 1)
            mean = jnp.mean(x, axis=(0, 2, 3), keepdims=True)
            var = jnp.mean(jnp.square(x - mean), axis=(0, 2, 3), keepdims=True)
            x = (x - mean) * jax.lax.rsqrt(var + _BN_EPS) * g + b
        x = jnp.where(x >= 0, x, _NEG_SLOPE * x)
    z = x.reshape(x.shape[0], -1)                    # NCHW-order flatten
    return z @ tp["fc_w"].T + tp["fc_b"]


# ---------------------------------------------------------------------------
if __name__ == "__main__":
    NZ, NC, NDF, IMG, BATCH = 32, 1, 8, 64, 2        # spatial must be 64 -> 4x4 before FC
    key = jax.random.PRNGKey(0)
    pkey, xkey = jax.random.split(key)

    tparams = init_params(pkey, nz=NZ, nc=NC, ndf=NDF)
    kparams, meta = build_kernel_params(tparams, BATCH, nc=NC, ndf=NDF, img=IMG)
    forward = make_forward_fn(meta)

    x = jax.random.normal(xkey, (BATCH, NC, IMG, IMG), jnp.float32)   # NCHW like torch
    out = jax.block_until_ready(forward(x, kparams))
    assert out.shape == (BATCH, NZ), out.shape
    assert bool(jnp.isfinite(out).all())

    ref = _reference_forward(x, tparams)
    err = float(jnp.max(jnp.abs(out - ref)))
    assert err < 0.2, f"max abs err vs f32 reference: {err}"   # bf16 MXU conv operands
    print("KERNEL_OK")
</pallas_src>

<mosaic_0001>
module attributes {stable_mosaic.version = 11 : i64} {
  func.func @kernel(%arg0: memref<128x64xf32, #tpu.memory_space<vmem>>, %arg1: memref<272x128xf32, #tpu.memory_space<vmem>>, %arg2: memref<256x256xbf16, #tpu.memory_space<vmem>>, %arg3: memref<3x1024x256xbf16, #tpu.memory_space<vmem>>, %arg4: memref<3x256x256xf32, #tpu.memory_space<vmem>>, %arg5: memref<3x2x256xf32, #tpu.memory_space<vmem>>, %arg6: memref<1024x32xbf16, #tpu.memory_space<vmem>>, %arg7: memref<1x32xf32, #tpu.memory_space<vmem>>, %arg8: memref<2x32xf32, #tpu.memory_space<vmem>>) attributes {dimension_semantics = [], scalar_prefetch = 0 : i64, scratch_operands = 0 : i64, tpu.core_type = #tpu.core_type<tc>} {
    %c0 = arith.constant 0 : index
    %c0_0 = arith.constant 0 : index
    %0 = vector.load %arg1[%c0, %c0_0] : memref<272x128xf32, #tpu.memory_space<vmem>>, vector<272x128xf32>
    %c0_1 = arith.constant 0 : index
    %c0_2 = arith.constant 0 : index
    %1 = vector.load %arg0[%c0_1, %c0_2] : memref<128x64xf32, #tpu.memory_space<vmem>>, vector<128x64xf32>
    %2 = vector.extract_strided_slice %0 {offsets = [0, 0], sizes = [132, 128], strides = [1, 1]} : vector<272x128xf32> to vector<132x128xf32>
    %cst = arith.constant dense<0.000000e+00> : vector<132x64xf32>
    %3 = tpu.matmul %2, %1, %cst {dimension_numbers = #tpu.dot_dimension_numbers<[1], [0], [0], [1], [0, 0, 1, 1], [], []>} : vector<132x128xf32>, vector<128x64xf32>, vector<132x64xf32> -> vector<132x64xf32>
    %4 = arith.truncf %3 : vector<132x64xf32> to vector<132x64xbf16>
    %5 = vector.extract_strided_slice %4 {offsets = [0, 0], sizes = [66, 64], strides = [1, 1]} : vector<132x64xbf16> to vector<66x64xbf16>
    %6 = vector.extract_strided_slice %4 {offsets = [66, 0], sizes = [66, 64], strides = [1, 1]} : vector<132x64xbf16> to vector<66x64xbf16>
    %7 = vector.extract_strided_slice %5 {offsets = [0, 0], sizes = [64, 64], strides = [1, 1]} : vector<66x64xbf16> to vector<64x64xbf16>
    %8 = vector.extract_strided_slice %6 {offsets = [0, 0], sizes = [64, 64], strides = [1, 1]} : vector<66x64xbf16> to vector<64x64xbf16>
    %9 = vector.extract_strided_slice %5 {offsets = [2, 0], sizes = [64, 64], strides = [1, 1]} : vector<66x64xbf16> to vector<64x64xbf16>
    %10 = vector.extract_strided_slice %6 {offsets = [2, 0], sizes = [64, 64], strides = [1, 1]} : vector<66x64xbf16> to vector<64x64xbf16>
    %11 = tpu.concatenate %7, %8, %9, %10 in 1 : vector<64x64xbf16>, vector<64x64xbf16>, vector<64x64xbf16>, vector<64x64xbf16> -> vector<64x256xbf16>
    %c0_3 = arith.constant 0 : index
    %c0_4 = arith.constant 0 : index
    %12 = vector.load %arg2[%c0_3, %c0_4] : memref<256x256xbf16, #tpu.memory_space<vmem>>, vector<256x256xbf16>
    %cst_5 = arith.constant dense<0.000000e+00> : vector<64x256xf32>
    %13 = tpu.matmul %11, %12, %cst_5 {dimension_numbers = #tpu.dot_dimension_numbers<[1], [0], [0], [1], [0, 0, 1, 1], [], []>} : vector<64x256xbf16>, vector<256x256xbf16>, vector<64x256xf32> -> vector<64x256xf32>
    %cst_6 = arith.constant 0.000000e+00 : f32
    %14 = vector.broadcast %cst_6 : f32 to vector<64x256xf32>
    %15 = arith.cmpf oge, %13, %14 : vector<64x256xf32>
    %cst_7 = arith.constant 2.000000e-01 : f32
    %16 = vector.broadcast %cst_7 : f32 to vector<64x256xf32>
    %17 = arith.mulf %16, %13 : vector<64x256xf32>
    %18 = arith.select %15, %13, %17 : vector<64x256xi1>, vector<64x256xf32>
    %19 = vector.extract_strided_slice %0 {offsets = [136, 0], sizes = [68, 64], strides = [1, 1]} : vector<272x128xf32> to vector<68x64xf32>
    %cst_8 = arith.constant dense<0.000000e+00> : vector<68x256xf32>
    %20 = tpu.matmul %19, %18, %cst_8 {dimension_numbers = #tpu.dot_dimension_numbers<[1], [0], [0], [1], [0, 0, 1, 1], [], []>} : vector<68x64xf32>, vector<64x256xf32>, vector<68x256xf32> -> vector<68x256xf32>
    %21 = arith.truncf %20 : vector<68x256xf32> to vector<68x256xbf16>
    %22 = vector.extract_strided_slice %21 {offsets = [0, 0], sizes = [34, 256], strides = [1, 1]} : vector<68x256xbf16> to vector<34x256xbf16>
    %23 = vector.extract_strided_slice %21 {offsets = [34, 0], sizes = [34, 256], strides = [1, 1]} : vector<68x256xbf16> to vector<34x256xbf16>
    %24 = vector.extract_strided_slice %22 {offsets = [0, 0], sizes = [32, 256], strides = [1, 1]} : vector<34x256xbf16> to vector<32x256xbf16>
    %25 = vector.extract_strided_slice %23 {offsets = [0, 0], sizes = [32, 256], strides = [1, 1]} : vector<34x256xbf16> to vector<32x256xbf16>
    %26 = vector.extract_strided_slice %22 {offsets = [2, 0], sizes = [32, 256], strides = [1, 1]} : vector<34x256xbf16> to vector<32x256xbf16>
    %27 = vector.extract_strided_slice %23 {offsets = [2, 0], sizes = [32, 256], strides = [1, 1]} : vector<34x256xbf16> to vector<32x256xbf16>
    %28 = tpu.concatenate %24, %25, %26, %27 in 1 : vector<32x256xbf16>, vector<32x256xbf16>, vector<32x256xbf16>, vector<32x256xbf16> -> vector<32x1024xbf16>
    %c0_9 = arith.constant 0 : index
    %c0_10 = arith.constant 0 : index
    %c0_11 = arith.constant 0 : index
    %29 = vector.load %arg3[%c0_9, %c0_10, %c0_11] : memref<3x1024x256xbf16, #tpu.memory_space<vmem>>, vector<1x1024x256xbf16>
    %30 = vector.shape_cast %29 : vector<1x1024x256xbf16> to vector<1024x256xbf16>
    %cst_12 = arith.constant dense<0.000000e+00> : vector<32x256xf32>
    %31 = tpu.matmul %28, %30, %cst_12 {dimension_numbers = #tpu.dot_dimension_numbers<[1], [0], [0], [1], [0, 0, 1, 1], [], []>} : vector<32x1024xbf16>, vector<1024x256xbf16>, vector<32x256xf32> -> vector<32x256xf32>
    %c0_13 = arith.constant 0 : index
    %c0_14 = arith.constant 0 : index
    %c0_15 = arith.constant 0 : index
    %32 = vector.load %arg4[%c0_13, %c0_14, %c0_15] : memref<3x256x256xf32, #tpu.memory_space<vmem>>, vector<1x256x256xf32>
    %33 = vector.shape_cast %32 : vector<1x256x256xf32> to vector<256x256xf32>
    %c0_16 = arith.constant 0 : index
    %c0_17 = arith.constant 0 : index
    %c0_18 = arith.constant 0 : index
    %34 = vector.load %arg5[%c0_16, %c0_17, %c0_18] : memref<3x2x256xf32, #tpu.memory_space<vmem>>, vector<1x2x256xf32>
    %35 = vector.shape_cast %34 : vector<1x2x256xf32> to vector<2x256xf32>
    %cst_19 = arith.constant dense<0.000000e+00> : vector<256xf32>
    %36 = vector.multi_reduction <add>, %31, %cst_19 [0] : vector<32x256xf32> to vector<256xf32>
    %37 = vector.shape_cast %36 : vector<256xf32> to vector<1x256xf32>
    %38 = arith.mulf %31, %31 : vector<32x256xf32>
    %cst_20 = arith.constant dense<0.000000e+00> : vector<256xf32>
    %39 = vector.multi_reduction <add>, %38, %cst_20 [0] : vector<32x256xf32> to vector<256xf32>
    %40 = vector.shape_cast %39 : vector<256xf32> to vector<1x256xf32>
    %41 = tpu.concatenate %37, %40 in 0 : vector<1x256xf32>, vector<1x256xf32> -> vector<2x256xf32>
    %cst_21 = arith.constant dense<0.000000e+00> : vector<2x256xf32>
    %42 = tpu.matmul %41, %33, %cst_21 {dimension_numbers = #tpu.dot_dimension_numbers<[1], [0], [0], [1], [0, 0, 1, 1], [], []>} : vector<2x256xf32>, vector<256x256xf32>, vector<2x256xf32> -> vector<2x256xf32>
    %43 = vector.extract_strided_slice %42 {offsets = [0, 0], sizes = [1, 256], strides = [1, 1]} : vector<2x256xf32> to vector<1x256xf32>
    %44 = vector.extract_strided_slice %42 {offsets = [1, 0], sizes = [1, 256], strides = [1, 1]} : vector<2x256xf32> to vector<1x256xf32>
    %45 = arith.mulf %43, %43 : vector<1x256xf32>
    %46 = arith.subf %44, %45 : vector<1x256xf32>
    %cst_22 = arith.constant 0.000000e+00 : f32
    %47 = vector.broadcast %cst_22 : f32 to vector<1x256xf32>
    %48 = arith.maximumf %46, %47 : vector<1x256xf32>
    %49 = vector.extract_strided_slice %35 {offsets = [0, 0], sizes = [1, 256], strides = [1, 1]} : vector<2x256xf32> to vector<1x256xf32>
    %cst_23 = arith.constant 9.99999974E-6 : f32
    %50 = vector.broadcast %cst_23 : f32 to vector<1x256xf32>
    %51 = arith.addf %48, %50 : vector<1x256xf32>
    %52 = math.rsqrt %51 : vector<1x256xf32>
    %53 = arith.mulf %49, %52 : vector<1x256xf32>
    %54 = vector.extract_strided_slice %35 {offsets = [1, 0], sizes = [1, 256], strides = [1, 1]} : vector<2x256xf32> to vector<1x256xf32>
    %55 = arith.mulf %43, %53 : vector<1x256xf32>
    %56 = arith.subf %54, %55 : vector<1x256xf32>
    %57 = vector.broadcast %53 : vector<1x256xf32> to vector<32x256xf32>
    %58 = arith.mulf %31, %57 : vector<32x256xf32>
    %59 = vector.broadcast %56 : vector<1x256xf32> to vector<32x256xf32>
    %60 = arith.addf %58, %59 : vector<32x256xf32>
    %cst_24 = arith.constant 0.000000e+00 : f32
    %61 = vector.broadcast %cst_24 : f32 to vector<32x256xf32>
    %62 = arith.cmpf oge, %60, %61 : vector<32x256xf32>
    %cst_25 = arith.constant 2.000000e-01 : f32
    %63 = vector.broadcast %cst_25 : f32 to vector<32x256xf32>
    %64 = arith.mulf %63, %60 : vector<32x256xf32>
    %65 = arith.select %62, %60, %64 : vector<32x256xi1>, vector<32x256xf32>
    %66 = vector.extract_strided_slice %0 {offsets = [208, 0], sizes = [36, 32], strides = [1, 1]} : vector<272x128xf32> to vector<36x32xf32>
    %cst_26 = arith.constant dense<0.000000e+00> : vector<36x256xf32>
    %67 = tpu.matmul %66, %65, %cst_26 {dimension_numbers = #tpu.dot_dimension_numbers<[1], [0], [0], [1], [0, 0, 1, 1], [], []>} : vector<36x32xf32>, vector<32x256xf32>, vector<36x256xf32> -> vector<36x256xf32>
    %68 = arith.truncf %67 : vector<36x256xf32> to vector<36x256xbf16>
    %69 = vector.extract_strided_slice %68 {offsets = [0, 0], sizes = [18, 256], strides = [1, 1]} : vector<36x256xbf16> to vector<18x256xbf16>
    %70 = vector.extract_strided_slice %68 {offsets = [18, 0], sizes = [18, 256], strides = [1, 1]} : vector<36x256xbf16> to vector<18x256xbf16>
    %71 = vector.extract_strided_slice %69 {offsets = [0, 0], sizes = [16, 256], strides = [1, 1]} : vector<18x256xbf16> to vector<16x256xbf16>
    %72 = vector.extract_strided_slice %70 {offsets = [0, 0], sizes = [16, 256], strides = [1, 1]} : vector<18x256xbf16> to vector<16x256xbf16>
    %73 = vector.extract_strided_slice %69 {offsets = [2, 0], sizes = [16, 256], strides = [1, 1]} : vector<18x256xbf16> to vector<16x256xbf16>
    %74 = vector.extract_strided_slice %70 {offsets = [2, 0], sizes = [16, 256], strides = [1, 1]} : vector<18x256xbf16> to vector<16x256xbf16>
    %75 = tpu.concatenate %71, %72, %73, %74 in 1 : vector<16x256xbf16>, vector<16x256xbf16>, vector<16x256xbf16>, vector<16x256xbf16> -> vector<16x1024xbf16>
    %c1 = arith.constant 1 : index
    %c0_27 = arith.constant 0 : index
    %c0_28 = arith.constant 0 : index
    %76 = vector.load %arg3[%c1, %c0_27, %c0_28] : memref<3x1024x256xbf16, #tpu.memory_space<vmem>>, vector<1x1024x256xbf16>
    %77 = vector.shape_cast %76 : vector<1x1024x256xbf16> to vector<1024x256xbf16>
    %cst_29 = arith.constant dense<0.000000e+00> : vector<16x256xf32>
    %78 = tpu.matmul %75, %77, %cst_29 {dimension_numbers = #tpu.dot_dimension_numbers<[1], [0], [0], [1], [0, 0, 1, 1], [], []>} : vector<16x1024xbf16>, vector<1024x256xbf16>, vector<16x256xf32> -> vector<16x256xf32>
    %c1_30 = arith.constant 1 : index
    %c0_31 = arith.constant 0 : index
    %c0_32 = arith.constant 0 : index
    %79 = vector.load %arg4[%c1_30, %c0_31, %c0_32] : memref<3x256x256xf32, #tpu.memory_space<vmem>>, vector<1x256x256xf32>
    %80 = vector.shape_cast %79 : vector<1x256x256xf32> to vector<256x256xf32>
    %c1_33 = arith.constant 1 : index
    %c0_34 = arith.constant 0 : index
    %c0_35 = arith.constant 0 : index
    %81 = vector.load %arg5[%c1_33, %c0_34, %c0_35] : memref<3x2x256xf32, #tpu.memory_space<vmem>>, vector<1x2x256xf32>
    %82 = vector.shape_cast %81 : vector<1x2x256xf32> to vector<2x256xf32>
    %cst_36 = arith.constant dense<0.000000e+00> : vector<256xf32>
    %83 = vector.multi_reduction <add>, %78, %cst_36 [0] : vector<16x256xf32> to vector<256xf32>
    %84 = vector.shape_cast %83 : vector<256xf32> to vector<1x256xf32>
    %85 = arith.mulf %78, %78 : vector<16x256xf32>
    %cst_37 = arith.constant dense<0.000000e+00> : vector<256xf32>
    %86 = vector.multi_reduction <add>, %85, %cst_37 [0] : vector<16x256xf32> to vector<256xf32>
    %87 = vector.shape_cast %86 : vector<256xf32> to vector<1x256xf32>
    %88 = tpu.concatenate %84, %87 in 0 : vector<1x256xf32>, vector<1x256xf32> -> vector<2x256xf32>
    %cst_38 = arith.constant dense<0.000000e+00> : vector<2x256xf32>
    %89 = tpu.matmul %88, %80, %cst_38 {dimension_numbers = #tpu.dot_dimension_numbers<[1], [0], [0], [1], [0, 0, 1, 1], [], []>} : vector<2x256xf32>, vector<256x256xf32>, vector<2x256xf32> -> vector<2x256xf32>
    %90 = vector.extract_strided_slice %89 {offsets = [0, 0], sizes = [1, 256], strides = [1, 1]} : vector<2x256xf32> to vector<1x256xf32>
    %91 = vector.extract_strided_slice %89 {offsets = [1, 0], sizes = [1, 256], strides = [1, 1]} : vector<2x256xf32> to vector<1x256xf32>
    %92 = arith.mulf %90, %90 : vector<1x256xf32>
    %93 = arith.subf %91, %92 : vector<1x256xf32>
    %cst_39 = arith.constant 0.000000e+00 : f32
    %94 = vector.broadcast %cst_39 : f32 to vector<1x256xf32>
    %95 = arith.maximumf %93, %94 : vector<1x256xf32>
    %96 = vector.extract_strided_slice %82 {offsets = [0, 0], sizes = [1, 256], strides = [1, 1]} : vector<2x256xf32> to vector<1x256xf32>
    %cst_40 = arith.constant 9.99999974E-6 : f32
    %97 = vector.broadcast %cst_40 : f32 to vector<1x256xf32>
    %98 = arith.addf %95, %97 : vector<1x256xf32>
    %99 = math.rsqrt %98 : vector<1x256xf32>
    %100 = arith.mulf %96, %99 : vector<1x256xf32>
    %101 = vector.extract_strided_slice %82 {offsets = [1, 0], sizes = [1, 256], strides = [1, 1]} : vector<2x256xf32> to vector<1x256xf32>
    %102 = arith.mulf %90, %100 : vector<1x256xf32>
    %103 = arith.subf %101, %102 : vector<1x256xf32>
    %104 = vector.broadcast %100 : vector<1x256xf32> to vector<16x256xf32>
    %105 = arith.mulf %78, %104 : vector<16x256xf32>
    %106 = vector.broadcast %103 : vector<1x256xf32> to vector<16x256xf32>
    %107 = arith.addf %105, %106 : vector<16x256xf32>
    %cst_41 = arith.constant 0.000000e+00 : f32
    %108 = vector.broadcast %cst_41 : f32 to vector<16x256xf32>
    %109 = arith.cmpf oge, %107, %108 : vector<16x256xf32>
    %cst_42 = arith.constant 2.000000e-01 : f32
    %110 = vector.broadcast %cst_42 : f32 to vector<16x256xf32>
    %111 = arith.mulf %110, %107 : vector<16x256xf32>
    %112 = arith.select %109, %107, %111 : vector<16x256xi1>, vector<16x256xf32>
    %113 = vector.extract_strided_slice %0 {offsets = [248, 0], sizes = [20, 16], strides = [1, 1]} : vector<272x128xf32> to vector<20x16xf32>
    %cst_43 = arith.constant dense<0.000000e+00> : vector<20x256xf32>
    %114 = tpu.matmul %113, %112, %cst_43 {dimension_numbers = #tpu.dot_dimension_numbers<[1], [0], [0], [1], [0, 0, 1, 1], [], []>} : vector<20x16xf32>, vector<16x256xf32>, vector<20x256xf32> -> vector<20x256xf32>
    %115 = arith.truncf %114 : vector<20x256xf32> to vector<20x256xbf16>
    %116 = vector.extract_strided_slice %115 {offsets = [0, 0], sizes = [10, 256], strides = [1, 1]} : vector<20x256xbf16> to vector<10x256xbf16>
    %117 = vector.extract_strided_slice %115 {offsets = [10, 0], sizes = [10, 256], strides = [1, 1]} : vector<20x256xbf16> to vector<10x256xbf16>
    %118 = vector.extract_strided_slice %116 {offsets = [0, 0], sizes = [8, 256], strides = [1, 1]} : vector<10x256xbf16> to vector<8x256xbf16>
    %119 = vector.extract_strided_slice %117 {offsets = [0, 0], sizes = [8, 256], strides = [1, 1]} : vector<10x256xbf16> to vector<8x256xbf16>
    %120 = vector.extract_strided_slice %116 {offsets = [2, 0], sizes = [8, 256], strides = [1, 1]} : vector<10x256xbf16> to vector<8x256xbf16>
    %121 = vector.extract_strided_slice %117 {offsets = [2, 0], sizes = [8, 256], strides = [1, 1]} : vector<10x256xbf16> to vector<8x256xbf16>
    %122 = tpu.concatenate %118, %119, %120, %121 in 1 : vector<8x256xbf16>, vector<8x256xbf16>, vector<8x256xbf16>, vector<8x256xbf16> -> vector<8x1024xbf16>
    %c2 = arith.constant 2 : index
    %c0_44 = arith.constant 0 : index
    %c0_45 = arith.constant 0 : index
    %123 = vector.load %arg3[%c2, %c0_44, %c0_45] : memref<3x1024x256xbf16, #tpu.memory_space<vmem>>, vector<1x1024x256xbf16>
    %124 = vector.shape_cast %123 : vector<1x1024x256xbf16> to vector<1024x256xbf16>
    %cst_46 = arith.constant dense<0.000000e+00> : vector<8x256xf32>
    %125 = tpu.matmul %122, %124, %cst_46 {dimension_numbers = #tpu.dot_dimension_numbers<[1], [0], [0], [1], [0, 0, 1, 1], [], []>} : vector<8x1024xbf16>, vector<1024x256xbf16>, vector<8x256xf32> -> vector<8x256xf32>
    %c2_47 = arith.constant 2 : index
    %c0_48 = arith.constant 0 : index
    %c0_49 = arith.constant 0 : index
    %126 = vector.load %arg4[%c2_47, %c0_48, %c0_49] : memref<3x256x256xf32, #tpu.memory_space<vmem>>, vector<1x256x256xf32>
    %127 = vector.shape_cast %126 : vector<1x256x256xf32> to vector<256x256xf32>
    %c2_50 = arith.constant 2 : index
    %c0_51 = arith.constant 0 : index
    %c0_52 = arith.constant 0 : index
    %128 = vector.load %arg5[%c2_50, %c0_51, %c0_52] : memref<3x2x256xf32, #tpu.memory_space<vmem>>, vector<1x2x256xf32>
    %129 = vector.shape_cast %128 : vector<1x2x256xf32> to vector<2x256xf32>
    %cst_53 = arith.constant dense<0.000000e+00> : vector<256xf32>
    %130 = vector.multi_reduction <add>, %125, %cst_53 [0] : vector<8x256xf32> to vector<256xf32>
    %131 = vector.shape_cast %130 : vector<256xf32> to vector<1x256xf32>
    %132 = arith.mulf %125, %125 : vector<8x256xf32>
    %cst_54 = arith.constant dense<0.000000e+00> : vector<256xf32>
    %133 = vector.multi_reduction <add>, %132, %cst_54 [0] : vector<8x256xf32> to vector<256xf32>
    %134 = vector.shape_cast %133 : vector<256xf32> to vector<1x256xf32>
    %135 = tpu.concatenate %131, %134 in 0 : vector<1x256xf32>, vector<1x256xf32> -> vector<2x256xf32>
    %cst_55 = arith.constant dense<0.000000e+00> : vector<2x256xf32>
    %136 = tpu.matmul %135, %127, %cst_55 {dimension_numbers = #tpu.dot_dimension_numbers<[1], [0], [0], [1], [0, 0, 1, 1], [], []>} : vector<2x256xf32>, vector<256x256xf32>, vector<2x256xf32> -> vector<2x256xf32>
    %137 = vector.extract_strided_slice %136 {offsets = [0, 0], sizes = [1, 256], strides = [1, 1]} : vector<2x256xf32> to vector<1x256xf32>
    %138 = vector.extract_strided_slice %136 {offsets = [1, 0], sizes = [1, 256], strides = [1, 1]} : vector<2x256xf32> to vector<1x256xf32>
    %139 = arith.mulf %137, %137 : vector<1x256xf32>
    %140 = arith.subf %138, %139 : vector<1x256xf32>
    %cst_56 = arith.constant 0.000000e+00 : f32
    %141 = vector.broadcast %cst_56 : f32 to vector<1x256xf32>
    %142 = arith.maximumf %140, %141 : vector<1x256xf32>
    %143 = vector.extract_strided_slice %129 {offsets = [0, 0], sizes = [1, 256], strides = [1, 1]} : vector<2x256xf32> to vector<1x256xf32>
    %cst_57 = arith.constant 9.99999974E-6 : f32
    %144 = vector.broadcast %cst_57 : f32 to vector<1x256xf32>
    %145 = arith.addf %142, %144 : vector<1x256xf32>
    %146 = math.rsqrt %145 : vector<1x256xf32>
    %147 = arith.mulf %143, %146 : vector<1x256xf32>
    %148 = vector.extract_strided_slice %129 {offsets = [1, 0], sizes = [1, 256], strides = [1, 1]} : vector<2x256xf32> to vector<1x256xf32>
    %149 = arith.mulf %137, %147 : vector<1x256xf32>
    %150 = arith.subf %148, %149 : vector<1x256xf32>
    %151 = vector.broadcast %147 : vector<1x256xf32> to vector<8x256xf32>
    %152 = arith.mulf %125, %151 : vector<8x256xf32>
    %153 = vector.broadcast %150 : vector<1x256xf32> to vector<8x256xf32>
    %154 = arith.addf %152, %153 : vector<8x256xf32>
    %cst_58 = arith.constant 0.000000e+00 : f32
    %155 = vector.broadcast %cst_58 : f32 to vector<8x256xf32>
    %156 = arith.cmpf oge, %154, %155 : vector<8x256xf32>
    %cst_59 = arith.constant 2.000000e-01 : f32
    %157 = vector.broadcast %cst_59 : f32 to vector<8x256xf32>
    %158 = arith.mulf %157, %154 : vector<8x256xf32>
    %159 = arith.select %156, %154, %158 : vector<8x256xi1>, vector<8x256xf32>
    %160 = arith.truncf %159 : vector<8x256xf32> to vector<8x256xbf16>
    %161 = vector.extract_strided_slice %160 {offsets = [0, 0], sizes = [2, 256], strides = [1, 1]} : vector<8x256xbf16> to vector<2x256xbf16>
    %162 = vector.extract_strided_slice %160 {offsets = [2, 0], sizes = [2, 256], strides = [1, 1]} : vector<8x256xbf16> to vector<2x256xbf16>
    %163 = vector.extract_strided_slice %160 {offsets = [4, 0], sizes = [2, 256], strides = [1, 1]} : vector<8x256xbf16> to vector<2x256xbf16>
    %164 = vector.extract_strided_slice %160 {offsets = [6, 0], sizes = [2, 256], strides = [1, 1]} : vector<8x256xbf16> to vector<2x256xbf16>
    %165 = tpu.concatenate %161, %162, %163, %164 in 1 : vector<2x256xbf16>, vector<2x256xbf16>, vector<2x256xbf16>, vector<2x256xbf16> -> vector<2x1024xbf16>
    %c0_60 = arith.constant 0 : index
    %c0_61 = arith.constant 0 : index
    %166 = vector.load %arg6[%c0_60, %c0_61] : memref<1024x32xbf16, #tpu.memory_space<vmem>>, vector<1024x32xbf16>
    %cst_62 = arith.constant dense<0.000000e+00> : vector<2x32xf32>
    %167 = tpu.matmul %165, %166, %cst_62 {dimension_numbers = #tpu.dot_dimension_numbers<[1], [0], [0], [1], [0, 0, 1, 1], [], []>} : vector<2x1024xbf16>, vector<1024x32xbf16>, vector<2x32xf32> -> vector<2x32xf32>
    %c0_63 = arith.constant 0 : index
    %c0_64 = arith.constant 0 : index
    %168 = vector.load %arg7[%c0_63, %c0_64] : memref<1x32xf32, #tpu.memory_space<vmem>>, vector<1x32xf32>
    %169 = vector.broadcast %168 : vector<1x32xf32> to vector<2x32xf32>
    %170 = arith.addf %167, %169 : vector<2x32xf32>
    %c0_65 = arith.constant 0 : index
    %c0_66 = arith.constant 0 : index
    %171 = vector.load %arg8[%c0_65, %c0_66] : memref<2x32xf32, #tpu.memory_space<vmem>>, vector<2x32xf32>
    tpu.vector_store %arg8[%c0_65, %c0_66], %170 {strides = array<i32>} : memref<2x32xf32, #tpu.memory_space<vmem>>, vector<2x32xf32>,
    return
  }
}

</mosaic_0001>

<llo_original>
// kernel: forward.1
$region0: #{forward.1}
  #allocation0 [shape = 'u32[]', space=smem, size = 0x4, offset = 0x4, fixed_abs, tag = 'smem constant byte address 0x4 - core index']
  #allocation1 [shape = 'u32[72,128]{1,0:T(1,128)}', space=vmem, size = 0x9000, scoped, tag = 'internal scratch']
  %s0 = inlined_call_operand.hbm [shape: f32[128,64], index: 0, kind: input, shape index: {}]
  %s1 = inlined_call_operand.hbm [shape: f32[272,128], index: 1, kind: input, shape index: {}]
  %s2 = inlined_call_operand.hbm [shape: bf16[256,256], index: 2, kind: input, shape index: {}]
  %s3 = inlined_call_operand.hbm [shape: bf16[3,1024,256], index: 3, kind: input, shape index: {}]
  %s4 = inlined_call_operand.hbm [shape: f32[3,256,256], index: 4, kind: input, shape index: {}]
  %s5 = inlined_call_operand.hbm [shape: f32[3,2,256], index: 5, kind: input, shape index: {}]
  %s6 = inlined_call_operand.vmem [shape: bf16[1024,32], index: 6, kind: input, shape index: {}]
  %s7 = inlined_call_operand.hbm [shape: f32[1,32], index: 7, kind: input, shape index: {}]
  %s8 = inlined_call_operand.hbm [shape: f32[2,32], index: 8, kind: output, shape index: {}]
  %s9 = sld [smem:[#allocation0]]
  $region70: #{forward.1} parent=0
    _
  %s11 = ssub.s32 1, %s9
  %s12 = scalar_select 0, %s11, %s9
  $region1: #{forward.1} parent=0
    #allocation2 [shape = 'u8[65536]{0}', space=vmem, size = 0x10000, scoped, tag = 'input window, operand 0, single buffered']
    #allocation3 [shape = 's32[1]{0}', space=sflag, size = 0x4, scoped, tag = 'scoped memory for forward.1']
    #allocation4 [shape = 's32[1]{0}', space=sflag, size = 0x4, scoped, tag = 'scoped memory for forward.1']
    #allocation5 [shape = 'u8[139264]{0}', space=vmem, size = 0x22000, scoped, tag = 'input window, operand 1, single buffered']
    #allocation6 [shape = 's32[1]{0}', space=sflag, size = 0x4, scoped, tag = 'scoped memory for forward.1']
    #allocation7 [shape = 'u8[131072]{0}', space=vmem, size = 0x20000, scoped, tag = 'input window, operand 2, single buffered']
    #allocation8 [shape = 'u8[1572864]{0}', space=vmem, size = 0x180000, scoped, tag = 'input window, operand 3, single buffered']
    #allocation9 [shape = 's32[1]{0}', space=sflag, size = 0x4, scoped, tag = 'scoped memory for forward.1']
    #allocation10 [shape = 'u8[786432]{0}', space=vmem, size = 0xc0000, scoped, tag = 'input window, operand 4, single buffered']
    #allocation11 [shape = 'u8[6144]{0}', space=vmem, size = 0x1800, scoped, tag = 'input window, operand 5, single buffered']
    #allocation12 [shape = 's32[1]{0}', space=sflag, size = 0x4, scoped, tag = 'scoped memory for forward.1']
    #allocation13 [shape = 'u8[512]{0}', space=vmem, size = 0x400, scoped, tag = 'input window, operand 7, single buffered']
    #allocation14 [shape = 'u8[1024]{0}', space=vmem, size = 0x400, scoped, tag = 'output window, operand 0, single buffered']
    %13 = vsyncpa [#allocation3], 0
    %14 = vsyncpa [#allocation6], 0
    %15 = vsyncpa [#allocation9], 0
    %16 = vsyncpa [#allocation12], 0
    %17 = vsyncpa [#allocation4], 0
    // Predicated region
    $region2: #{forward.1} parent=1 // pred_check
      _
    $region3: #{forward.1} parent=1 // pred_check_branch
      %19 = sbr.rel (0) target = $region5
    $region4: #{forward.1} parent=1 // pred_region
      %21 = vsyncadd [#allocation3], 0
      %s22 = sshll.u32 %s0, 4
      %s23 = int_to_ptr.hbm [resolvable:$true] %s22
      %s24 = sshll.u32 [#allocation2], 4
      %s25 = int_to_ptr.vmem [resolvable:$true] %s24
      %30 = dma.hbm_to_vmem [thread:$0]  %s23, 2048, %s25, [#allocation3], 128, 128, 8
    $region5: #{forward.1} parent=1 // pred_fallthru
      _
    // Predicated region
    $region6: #{forward.1} parent=1 // pred_check
      _
    $region7: #{forward.1} parent=1 // pred_check_branch
      %32 = sbr.rel (0) target = $region9
    $region8: #{forward.1} parent=1 // pred_region
      %34 = vsyncadd [#allocation6], 0
      %s35 = sshll.u32 %s1, 4
      %s36 = int_to_ptr.hbm [resolvable:$true] %s35
      %s37 = sshll.u32 [#allocation5], 4
      %s38 = int_to_ptr.vmem [resolvable:$true] %s37
      %43 = dma.hbm_to_vmem [thread:$0]  %s36, 4352, %s38, [#allocation6], 128, 128, 8
    $region9: #{forward.1} parent=1 // pred_fallthru
      _
    // Predicated region
    $region10: #{forward.1} parent=1 // pred_check
      _
    $region11: #{forward.1} parent=1 // pred_check_branch
      %45 = sbr.rel (0) target = $region13
    $region12: #{forward.1} parent=1 // pred_region
      %47 = vsyncadd [#allocation6], 0
      %s48 = sshll.u32 %s2, 4
      %s49 = int_to_ptr.hbm [resolvable:$true] %s48
      %s50 = sshll.u32 [#allocation7], 4
      %s51 = int_to_ptr.vmem [resolvable:$true] %s50
      %56 = dma.hbm_to_vmem [thread:$0]  %s49, 4096, %s51, [#allocation6], 128, 128, 8
    $region13: #{forward.1} parent=1 // pred_fallthru
      _
    // Predicated region
    $region14: #{forward.1} parent=1 // pred_check
      _
    $region15: #{forward.1} parent=1 // pred_check_branch
      %58 = sbr.rel (0) target = $region17
    $region16: #{forward.1} parent=1 // pred_region
      %60 = vsyncadd [#allocation9], 0
      %s61 = sshll.u32 %s3, 4
      %s62 = int_to_ptr.hbm [resolvable:$true] %s61
      %s63 = sshll.u32 [#allocation8], 4
      %s64 = int_to_ptr.vmem [resolvable:$true] %s63
      %69 = dma.hbm_to_vmem [thread:$0]  %s62, 49152, %s64, [#allocation9], 128, 128, 8
    $region17: #{forward.1} parent=1 // pred_fallthru
      _
    // Predicated region
    $region18: #{forward.1} parent=1 // pred_check
      _
    $region19: #{forward.1} parent=1 // pred_check_branch
      %71 = sbr.rel (0) target = $region21
    $region20: #{forward.1} parent=1 // pred_region
      %73 = vsyncadd [#allocation9], 0
      %s74 = sshll.u32 %s4, 4
      %s75 = int_to_ptr.hbm [resolvable:$true] %s74
      %s76 = sshll.u32 [#allocation10], 4
      %s77 = int_to_ptr.vmem [resolvable:$true] %s76
      %82 = dma.hbm_to_vmem [thread:$0]  %s75, 24576, %s77, [#allocation9], 256, 256, 16
    $region21: #{forward.1} parent=1 // pred_fallthru
      _
    // Predicated region
    $region22: #{forward.1} parent=1 // pred_check
      _
    $region23: #{forward.1} parent=1 // pred_check_branch
      %84 = sbr.rel (0) target = $region25
    $region24: #{forward.1} parent=1 // pred_region
      %86 = vsyncadd [#allocation12], 0
      %s87 = sshll.u32 %s5, 4
      %s88 = int_to_ptr.hbm [resolvable:$true] %s87
      %s89 = sshll.u32 [#allocation11], 4
      %s90 = int_to_ptr.vmem [resolvable:$true] %s89
      %95 = dma.hbm_to_vmem [thread:$0]  %s88, 192, %s90, [#allocation12], 64, 64, 4
    $region25: #{forward.1} parent=1 // pred_fallthru
      _
    // Predicated region
    $region26: #{forward.1} parent=1 // pred_check
      _
    $region27: #{forward.1} parent=1 // pred_check_branch
      %97 = sbr.rel (0) target = $region29
    $region28: #{forward.1} parent=1 // pred_region
      _
    $region29: #{forward.1} parent=1 // pred_fallthru
      _
    // Predicated region
    $region30: #{forward.1} parent=1 // pred_check
      _
    $region31: #{forward.1} parent=1 // pred_check_branch
      %99 = sbr.rel (0) target = $region33
    $region32: #{forward.1} parent=1 // pred_region
      %101 = vsyncadd [#allocation12], 0
      %s103 = sshll.u32 %s7, 4
      %s104 = int_to_ptr.hbm [resolvable:$true] %s103
      %s105 = sshll.u32 [#allocation13], 4
      %s106 = int_to_ptr.vmem [resolvable:$true] %s105
      %108 = dma.hbm_to_vmem [thread:$0]  %s104, 16, %s106, [#allocation12]
    $region33: #{forward.1} parent=1 // pred_fallthru
      _
    // Predicated region
    $region34: #{forward.1} parent=1 // pred_check
      _
    $region35: #{forward.1} parent=1 // pred_check_branch
      %110 = sbr.rel (0) target = $region37
    $region36: #{forward.1} parent=1 // pred_region
      %112 = dma.done [#allocation3], 2048
    $region37: #{forward.1} parent=1 // pred_fallthru
      _
    // Predicated region
    $region38: #{forward.1} parent=1 // pred_check
      _
    $region39: #{forward.1} parent=1 // pred_check_branch
      %114 = sbr.rel (0) target = $region41
    $region40: #{forward.1} parent=1 // pred_region
      %116 = dma.done [#allocation6], 4352
    $region41: #{forward.1} parent=1 // pred_fallthru
      _
    // Predicated region
    $region42: #{forward.1} parent=1 // pred_check
      _
    $region43: #{forward.1} parent=1 // pred_check_branch
      %118 = sbr.rel (0) target = $region45
    $region44: #{forward.1} parent=1 // pred_region
      %120 = dma.done [#allocation6], 4096
    $region45: #{forward.1} parent=1 // pred_fallthru
      _
    // Predicated region
    $region46: #{forward.1} parent=1 // pred_check
      _
    $region47: #{forward.1} parent=1 // pred_check_branch
      %122 = sbr.rel (0) target = $region49
    $region48: #{forward.1} parent=1 // pred_region
      %124 = dma.done [#allocation9], 49152
    $region49: #{forward.1} parent=1 // pred_fallthru
      _
    // Predicated region
    $region50: #{forward.1} parent=1 // pred_check
      _
    $region51: #{forward.1} parent=1 // pred_check_branch
      %126 = sbr.rel (0) target = $region53
    $region52: #{forward.1} parent=1 // pred_region
      %128 = dma.done [#allocation9], 24576
    $region53: #{forward.1} parent=1 // pred_fallthru
      _
    // Predicated region
    $region54: #{forward.1} parent=1 // pred_check
      _
    $region55: #{forward.1} parent=1 // pred_check_branch
      %130 = sbr.rel (0) target = $region57
    $region56: #{forward.1} parent=1 // pred_region
      %132 = dma.done [#allocation12], 192
    $region57: #{forward.1} parent=1 // pred_fallthru
      _
    // Predicated region
    $region58: #{forward.1} parent=1 // pred_check
      _
    $region59: #{forward.1} parent=1 // pred_check_branch
      %134 = sbr.rel (0) target = $region61
    $region60: #{forward.1} parent=1 // pred_region
      %136 = dma.done [#allocation12], 16
    $region61: #{forward.1} parent=1 // pred_fallthru
      _
    %v137 = vld [vmem:[#allocation5] sm:$0xff]
    %v138 = vld [vmem:[#allocation5 + $0x8] sm:$0xff]
    %v139 = vld [vmem:[#allocation5 + $0x10] sm:$0xff]
    %v140 = vld [vmem:[#allocation5 + $0x18] sm:$0xff]
    %v141 = vld [vmem:[#allocation5 + $0x20] sm:$0xff]
    %v142 = vld [vmem:[#allocation5 + $0x28] sm:$0xff]
    %v143 = vld [vmem:[#allocation5 + $0x30] sm:$0xff]
    %v144 = vld [vmem:[#allocation5 + $0x38] sm:$0xff]
    %v145 = vld [vmem:[#allocation5 + $0x40] sm:$0xff]
    %v146 = vld [vmem:[#allocation5 + $0x48] sm:$0xff]
    %v147 = vld [vmem:[#allocation5 + $0x50] sm:$0xff]
    %v148 = vld [vmem:[#allocation5 + $0x58] sm:$0xff]
    %v149 = vld [vmem:[#allocation5 + $0x60] sm:$0xff]
    %v150 = vld [vmem:[#allocation5 + $0x68] sm:$0xff]
    %v151 = vld [vmem:[#allocation5 + $0x70] sm:$0xff]
    %v152 = vld [vmem:[#allocation5 + $0x78] sm:$0xff]
    %v153 = vld [vmem:[#allocation5 + $0x80] sm:$0xff]
    %v154 = vld [vmem:[#allocation5 + $0x88] sm:$0xff]
    %v155 = vld [vmem:[#allocation5 + $0x90] sm:$0xff]
    %v156 = vld [vmem:[#allocation5 + $0x98] sm:$0xff]
    %v157 = vld [vmem:[#allocation5 + $0xa0] sm:$0xff]
    %v158 = vld [vmem:[#allocation5 + $0xa8] sm:$0xff]
    %v159 = vld [vmem:[#allocation5 + $0xb0] sm:$0xff]
    %v160 = vld [vmem:[#allocation5 + $0xb8] sm:$0xff]
    %v161 = vld [vmem:[#allocation5 + $0xc0] sm:$0xff]
    %v162 = vld [vmem:[#allocation5 + $0xc8] sm:$0xff]
    %v163 = vld [vmem:[#allocation5 + $0xd0] sm:$0xff]
    %v164 = vld [vmem:[#allocation5 + $0xd8] sm:$0xff]
    %v165 = vld [vmem:[#allocation5 + $0xe0] sm:$0xff]
    %v166 = vld [vmem:[#allocation5 + $0xe8] sm:$0xff]
    %v167 = vld [vmem:[#allocation5 + $0xf0] sm:$0xff]
    %v168 = vld [vmem:[#allocation5 + $0xf8] sm:$0xff]
    %v169 = vld [vmem:[#allocation5 + $0x100] sm:$0xff]
    %v170 = vld [vmem:[#allocation5 + $0x108] sm:$0xff]
    %v171 = vld [vmem:[#allocation2] sm:$0xff]
    %v172 = vld [vmem:[#allocation2 + $0x8] sm:$0xff]
    %v173 = vld [vmem:[#allocation2 + $0x10] sm:$0xff]
    %v174 = vld [vmem:[#allocation2 + $0x18] sm:$0xff]
    %v175 = vld [vmem:[#allocation2 + $0x20] sm:$0xff]
    %v176 = vld [vmem:[#allocation2 + $0x28] sm:$0xff]
    %v177 = vld [vmem:[#allocation2 + $0x30] sm:$0xff]
    %v178 = vld [vmem:[#allocation2 + $0x38] sm:$0xff]
    %v179 = vld [vmem:[#allocation2 + $0x40] sm:$0xff]
    %v180 = vld [vmem:[#allocation2 + $0x48] sm:$0xff]
    %v181 = vld [vmem:[#allocation2 + $0x50] sm:$0xff]
    %v182 = vld [vmem:[#allocation2 + $0x58] sm:$0xff]
    %v183 = vld [vmem:[#allocation2 + $0x60] sm:$0xff]
    %v184 = vld [vmem:[#allocation2 + $0x68] sm:$0xff]
    %v185 = vld [vmem:[#allocation2 + $0x70] sm:$0xff]
    %v186 = vld [vmem:[#allocation2 + $0x78] sm:$0xff]
    %187 = vmatpush.msra.mxu0 %v186
    %188 = vmatpush.msra.mxu0 %v185
    %189 = vmatpush.msra.mxu0 %v184
    %190 = vmatpush.msra.mxu0 %v183
    %191 = vmatpush.msra.mxu0 %v182
    %192 = vmatpush.msra.mxu0 %v181
    %193 = vmatpush.msra.mxu0 %v180
    %194 = vmatpush.msra.mxu0 %v179
    %195 = vmatpush.msra.mxu0 %v178
    %196 = vmatpush.msra.mxu0 %v177
    %197 = vmatpush.msra.mxu0 %v176
    %198 = vmatpush.msra.mxu0 %v175
    %199 = vmatpush.msra.mxu0 %v174
    %200 = vmatpush.msra.mxu0 %v173
    %201 = vmatpush.msra.mxu0 %v172
    %202 = vmatpush.msra.mxu0 %v171
    %203 = vmatmul.f32.gmra.mxu0 %v137
    %v204 = vpop.f32.mrf.mxu0
    %v205 = vadd.f32 0.0, %v204
    %206 = vmatmul.f32.gmra.mxu0 %v138
    %v207 = vpop.f32.mrf.mxu0
    %v208 = vadd.f32 0.0, %v207
    %209 = vmatmul.f32.gmra.mxu0 %v139
    %v210 = vpop.f32.mrf.mxu0
    %v211 = vadd.f32 0.0, %v210
    %212 = vmatmul.f32.gmra.mxu0 %v140
    %v213 = vpop.f32.mrf.mxu0
    %v214 = vadd.f32 0.0, %v213
    %215 = vmatmul.f32.gmra.mxu0 %v141
    %v216 = vpop.f32.mrf.mxu0
    %v217 = vadd.f32 0.0, %v216
    %218 = vmatmul.f32.gmra.mxu0 %v142
    %v219 = vpop.f32.mrf.mxu0
    %v220 = vadd.f32 0.0, %v219
    %221 = vmatmul.f32.gmra.mxu0 %v143
    %v222 = vpop.f32.mrf.mxu0
    %v223 = vadd.f32 0.0, %v222
    %224 = vmatmul.f32.gmra.mxu0 %v144
    %v225 = vpop.f32.mrf.mxu0
    %v226 = vadd.f32 0.0, %v225
    %227 = vmatmul.f32.gmra.mxu0 %v145
    %v228 = vpop.f32.mrf.mxu0
    %v229 = vadd.f32 0.0, %v228
    %230 = vmatmul.f32.gmra.mxu0 %v146
    %v231 = vpop.f32.mrf.mxu0
    %v232 = vadd.f32 0.0, %v231
    %233 = vmatmul.f32.gmra.mxu0 %v147
    %v234 = vpop.f32.mrf.mxu0
    %v235 = vadd.f32 0.0, %v234
    %236 = vmatmul.f32.gmra.mxu0 %v148
    %v237 = vpop.f32.mrf.mxu0
    %v238 = vadd.f32 0.0, %v237
    %239 = vmatmul.f32.gmra.mxu0 %v149
    %v240 = vpop.f32.mrf.mxu0
    %v241 = vadd.f32 0.0, %v240
    %242 = vmatmul.f32.gmra.mxu0 %v150
    %v243 = vpop.f32.mrf.mxu0
    %v244 = vadd.f32 0.0, %v243
    %245 = vmatmul.f32.gmra.mxu0 %v151
    %v246 = vpop.f32.mrf.mxu0
    %v247 = vadd.f32 0.0, %v246
    %248 = vmatmul.f32.gmra.mxu0 %v152
    %v249 = vpop.f32.mrf.mxu0
    %v250 = vadd.f32 0.0, %v249
    %251 = vmatmul.f32.gmra.mxu0 %v153
    %v252 = vpop.f32.mrf.mxu0
    %v253 = vadd.f32 0.0, %v252
    %254 = vdwg.mxu0
    %v255 = vpack.c.bf16 %v205, %v205
    %v256 = vpack.c.bf16 %v208, %v208
    %v257 = vpack.c.bf16 %v211, %v211
    %v258 = vpack.c.bf16 %v214, %v214
    %v259 = vpack.c.bf16 %v217, %v217
    %v260 = vpack.c.bf16 %v220, %v220
    %v261 = vpack.c.bf16 %v223, %v223
    %v262 = vpack.c.bf16 %v226, %v226
    %v263 = vpack.c.bf16 %v229, %v229
    %v264 = vpack.c.bf16 %v232, %v232
    %v265 = vpack.c.bf16 %v235, %v235
    %v266 = vpack.c.bf16 %v238, %v238
    %v267 = vpack.c.bf16 %v241, %v241
    %v268 = vpack.c.bf16 %v244, %v244
    %v269 = vpack.c.bf16 %v247, %v247
    %v270 = vpack.c.bf16 %v250, %v250
    %v271 = vpack.c.bf16 %v253, %v253
    %v280 = vunpack.c.l.b16 %v255
    %v281 = vunpack.c.l.b16 %v256
    %v282 = vunpack.c.l.b16 %v257
    %v283 = vunpack.c.l.b16 %v258
    %v284 = vunpack.c.l.b16 %v259
    %v285 = vunpack.c.l.b16 %v260
    %v286 = vunpack.c.l.b16 %v261
    %v287 = vunpack.c.l.b16 %v262
    %v288 = vpack.c.b16 %v281, %v280
    %v289 = vpack.c.b16 %v283, %v282
    %v290 = vpack.c.b16 %v285, %v284
    %v291 = vpack.c.b16 %v287, %v286
    %v301 = vunpack.c.l.b16 %v263
    %v302 = vunpack.c.l.b16 %v264
    %v303 = vunpack.c.l.b16 %v265
    %v304 = vunpack.c.l.b16 %v266
    %v305 = vunpack.c.l.b16 %v267
    %v306 = vunpack.c.l.b16 %v268
    %v307 = vunpack.c.l.b16 %v269
    %v308 = vunpack.c.l.b16 %v270
    %v309 = vunpack.c.l.b16 %v271
    %v310 = vpack.c.b16 %v302, %v301
    %v311 = vpack.c.b16 %v304, %v303
    %v312 = vpack.c.b16 %v306, %v305
    %v313 = vpack.c.b16 %v308, %v307
    %v314 = vpack.c.b16 %v309, %v309
    %vm315 = vcmask 1046528
    %v316 = vrot.slane %v310, 1
    %v317 = vrot.slane %v311, 1
    %v318 = vsel %vm315, %v316, %v317
    %v319 = vrot.slane %v312, 1
    %v320 = vsel %vm315, %v317, %v319
    %v321 = vrot.slane %v313, 1
    %v322 = vsel %vm315, %v319, %v321
    %v323 = vrot.slane %v314, 1
    %v324 = vsel %vm315, %v321, %v323
    %325 = vrot.lane.b32.xlu0 %v318, 64
    %v326 = vpop.permute.xlu0 %325
    %327 = vrot.lane.b32.xlu0 %v320, 64
    %v328 = vpop.permute.xlu0 %327
    %329 = vrot.lane.b32.xlu0 %v322, 64
    %v330 = vpop.permute.xlu0 %329
    %331 = vrot.lane.b32.xlu0 %v324, 64
    %v332 = vpop.permute.xlu0 %331
    %v333 = vpack.c.b16 %v301, %v301
    %v334 = vrot.slane %v288, 1
    %v335 = vrot.slane %v289, 1
    %v336 = vsel %vm315, %v334, %v335
    %v337 = vrot.slane %v290, 1
    %v338 = vsel %vm315, %v335, %v337
    %v339 = vrot.slane %v291, 1
    %v340 = vsel %vm315, %v337, %v339
    %v341 = vrot.slane %v333, 1
    %v342 = vsel %vm315, %v339, %v341
    %vm343 = vcmask 1045504
    %v344 = vrot.slane %v310, 2
    %v345 = vrot.slane %v311, 2
    %v346 = vsel %vm343, %v344, %v345
    %v347 = vrot.slane %v312, 2
    %v348 = vsel %vm343, %v345, %v347
    %v349 = vrot.slane %v313, 2
    %v350 = vsel %vm343, %v347, %v349
    %v351 = vrot.slane %v314, 2
    %v352 = vsel %vm343, %v349, %v351
    %353 = vrot.lane.b32.xlu0 %v346, 64
    %v354 = vpop.permute.xlu0 %353
    %355 = vrot.lane.b32.xlu0 %v348, 64
    %v356 = vpop.permute.xlu0 %355
    %357 = vrot.lane.b32.xlu0 %v350, 64
    %v358 = vpop.permute.xlu0 %357
    %359 = vrot.lane.b32.xlu0 %v352, 64
    %v360 = vpop.permute.xlu0 %359
    %vm361 = vcmask 523264
    %v364 = vsel %vm361, %v288, %v326
    %v368 = vsel %vm361, %v289, %v328
    %v372 = vsel %vm361, %v290, %v330
    %v376 = vsel %vm361, %v291, %v332
    %v380 = vsel %vm361, %v336, %v354
    %v384 = vsel %vm361, %v338, %v356
    %v388 = vsel %vm361, %v340, %v358
    %v392 = vsel %vm361, %v342, %v360
    %v394 = vld [vmem:[#allocation7] sm:$0xff]
    %v395 = vld [vmem:[#allocation7 + $0x8] sm:$0xff]
    %v396 = vld [vmem:[#allocation7 + $0x10] sm:$0xff]
    %v397 = vld [vmem:[#allocation7 + $0x18] sm:$0xff]
    %v398 = vld [vmem:[#allocation7 + $0x20] sm:$0xff]
    %v399 = vld [vmem:[#allocation7 + $0x28] sm:$0xff]
    %v400 = vld [vmem:[#allocation7 + $0x30] sm:$0xff]
    %v401 = vld [vmem:[#allocation7 + $0x38] sm:$0xff]
    %v402 = vld [vmem:[#allocation7 + $0x40] sm:$0xff]
    %v403 = vld [vmem:[#allocation7 + $0x48] sm:$0xff]
    %v404 = vld [vmem:[#allocation7 + $0x50] sm:$0xff]
    %v405 = vld [vmem:[#allocation7 + $0x58] sm:$0xff]
    %v406 = vld [vmem:[#allocation7 + $0x60] sm:$0xff]
    %v407 = vld [vmem:[#allocation7 + $0x68] sm:$0xff]
    %v408 = vld [vmem:[#allocation7 + $0x70] sm:$0xff]
    %v409 = vld [vmem:[#allocation7 + $0x78] sm:$0xff]
    %v410 = vld [vmem:[#allocation7 + $0x80] sm:$0xff]
    %v411 = vld [vmem:[#allocation7 + $0x88] sm:$0xff]
    %v412 = vld [vmem:[#allocation7 + $0x90] sm:$0xff]
    %v413 = vld [vmem:[#allocation7 + $0x98] sm:$0xff]
    %v414 = vld [vmem:[#allocation7 + $0xa0] sm:$0xff]
    %v415 = vld [vmem:[#allocation7 + $0xa8] sm:$0xff]
    %v416 = vld [vmem:[#allocation7 + $0xb0] sm:$0xff]
    %v417 = vld [vmem:[#allocation7 + $0xb8] sm:$0xff]
    %v418 = vld [vmem:[#allocation7 + $0xc0] sm:$0xff]
    %v419 = vld [vmem:[#allocation7 + $0xc8] sm:$0xff]
    %v420 = vld [vmem:[#allocation7 + $0xd0] sm:$0xff]
    %v421 = vld [vmem:[#allocation7 + $0xd8] sm:$0xff]
    %v422 = vld [vmem:[#allocation7 + $0xe0] sm:$0xff]
    %v423 = vld [vmem:[#allocation7 + $0xe8] sm:$0xff]
    %v424 = vld [vmem:[#allocation7 + $0xf0] sm:$0xff]
    %v425 = vld [vmem:[#allocation7 + $0xf8] sm:$0xff]
    %v458 = vunpack.c.l.b16 %v394
    %v459 = vunpack.c.h.b16 %v394
    %v460 = vunpack.c.l.b16 %v395
    %v461 = vunpack.c.h.b16 %v395
    %v462 = vunpack.c.l.b16 %v396
    %v463 = vunpack.c.h.b16 %v396
    %v464 = vunpack.c.l.b16 %v397
    %v465 = vunpack.c.h.b16 %v397
    %v466 = vunpack.c.l.b16 %v398
    %v467 = vunpack.c.h.b16 %v398
    %v468 = vunpack.c.l.b16 %v399
    %v469 = vunpack.c.h.b16 %v399
    %v470 = vunpack.c.l.b16 %v400
    %v471 = vunpack.c.h.b16 %v400
    %v472 = vunpack.c.l.b16 %v401
    %v473 = vunpack.c.h.b16 %v401
    %v474 = vunpack.c.l.b16 %v402
    %v475 = vunpack.c.h.b16 %v402
    %v476 = vunpack.c.l.b16 %v403
    %v477 = vunpack.c.h.b16 %v403
    %v478 = vunpack.c.l.b16 %v404
    %v479 = vunpack.c.h.b16 %v404
    %v480 = vunpack.c.l.b16 %v405
    %v481 = vunpack.c.h.b16 %v405
    %v482 = vunpack.c.l.b16 %v406
    %v483 = vunpack.c.h.b16 %v406
    %v484 = vunpack.c.l.b16 %v407
    %v485 = vunpack.c.h.b16 %v407
    %v486 = vunpack.c.l.b16 %v408
    %v487 = vunpack.c.h.b16 %v408
    %v488 = vunpack.c.l.b16 %v409
    %v489 = vunpack.c.h.b16 %v409
    %v490 = vunpack.c.l.b16 %v410
    %v491 = vunpack.c.h.b16 %v410
    %v492 = vunpack.c.l.b16 %v411
    %v493 = vunpack.c.h.b16 %v411
    %v494 = vunpack.c.l.b16 %v412
    %v495 = vunpack.c.h.b16 %v412
    %v496 = vunpack.c.l.b16 %v413
    %v497 = vunpack.c.h.b16 %v413
    %v498 = vunpack.c.l.b16 %v414
    %v499 = vunpack.c.h.b16 %v414
    %v500 = vunpack.c.l.b16 %v415
    %v501 = vunpack.c.h.b16 %v415
    %v502 = vunpack.c.l.b16 %v416
    %v503 = vunpack.c.h.b16 %v416
    %v504 = vunpack.c.l.b16 %v417
    %v505 = vunpack.c.h.b16 %v417
    %v506 = vunpack.c.l.b16 %v418
    %v507 = vunpack.c.h.b16 %v418
    %v508 = vunpack.c.l.b16 %v419
    %v509 = vunpack.c.h.b16 %v419
    %v510 = vunpack.c.l.b16 %v420
    %v511 = vunpack.c.h.b16 %v420
    %v512 = vunpack.c.l.b16 %v421
    %v513 = vunpack.c.h.b16 %v421
    %v514 = vunpack.c.l.b16 %v422
    %v515 = vunpack.c.h.b16 %v422
    %v516 = vunpack.c.l.b16 %v423
    %v517 = vunpack.c.h.b16 %v423
    %v518 = vunpack.c.l.b16 %v424
    %v519 = vunpack.c.h.b16 %v424
    %v520 = vunpack.c.l.b16 %v425
    %v521 = vunpack.c.h.b16 %v425
    %v522 = vpack.c.b16 %v460, %v458
    %v523 = vpack.c.b16 %v461, %v459
    %v524 = vpack.c.b16 %v464, %v462
    %v525 = vpack.c.b16 %v465, %v463
    %v526 = vpack.c.b16 %v468, %v466
    %v527 = vpack.c.b16 %v469, %v467
    %v528 = vpack.c.b16 %v472, %v470
    %v529 = vpack.c.b16 %v473, %v471
    %v530 = vpack.c.b16 %v476, %v474
    %v531 = vpack.c.b16 %v477, %v475
    %v532 = vpack.c.b16 %v480, %v478
    %v533 = vpack.c.b16 %v481, %v479
    %v534 = vpack.c.b16 %v484, %v482
    %v535 = vpack.c.b16 %v485, %v483
    %v536 = vpack.c.b16 %v488, %v486
    %v537 = vpack.c.b16 %v489, %v487
    %v538 = vpack.c.b16 %v492, %v490
    %v539 = vpack.c.b16 %v493, %v491
    %v540 = vpack.c.b16 %v496, %v494
    %v541 = vpack.c.b16 %v497, %v495
    %v542 = vpack.c.b16 %v500, %v498
    %v543 = vpack.c.b16 %v501, %v499
    %v544 = vpack.c.b16 %v504, %v502
    %v545 = vpack.c.b16 %v505, %v503
    %v546 = vpack.c.b16 %v508, %v506
    %v547 = vpack.c.b16 %v509, %v507
    %v548 = vpack.c.b16 %v512, %v510
    %v549 = vpack.c.b16 %v513, %v511
    %v550 = vpack.c.b16 %v516, %v514
    %v551 = vpack.c.b16 %v517, %v515
    %v552 = vpack.c.b16 %v520, %v518
    %v553 = vpack.c.b16 %v521, %v519
    %586 = vmatpush.bf16.msra.mxu0 %v536
    %587 = vmatpush.bf16.msra.mxu0 %v534
    %588 = vmatpush.bf16.msra.mxu0 %v532
    %589 = vmatpush.bf16.msra.mxu0 %v530
    %590 = vmatpush.bf16.msra.mxu0 %v528
    %591 = vmatpush.bf16.msra.mxu0 %v526
    %592 = vmatpush.bf16.msra.mxu0 %v524
    %593 = vmatpush.bf16.msra.mxu0 %v522
    %594 = vmatmul.bf16.gmra.mxu0 %v364
    %v595 = vpop.f32.mrf.mxu0
    %v596 = vadd.f32 0.0, %v595
    %v597 = vpop.f32.mrf.mxu0
    %v598 = vadd.f32 0.0, %v597
    %599 = vmatmul.bf16.gmra.mxu0 %v368
    %v600 = vpop.f32.mrf.mxu0
    %v601 = vadd.f32 0.0, %v600
    %v602 = vpop.f32.mrf.mxu0
    %v603 = vadd.f32 0.0, %v602
    %604 = vmatmul.bf16.gmra.mxu0 %v372
    %v605 = vpop.f32.mrf.mxu0
    %v606 = vadd.f32 0.0, %v605
    %v607 = vpop.f32.mrf.mxu0
    %v608 = vadd.f32 0.0, %v607
    %609 = vmatmul.bf16.gmra.mxu0 %v376
    %v610 = vpop.f32.mrf.mxu0
    %v611 = vadd.f32 0.0, %v610
    %v612 = vpop.f32.mrf.mxu0
    %v613 = vadd.f32 0.0, %v612
    %614 = vdwg.mxu0
    %615 = vmatpush.bf16.msra.mxu0 %v552
    %616 = vmatpush.bf16.msra.mxu0 %v550
    %617 = vmatpush.bf16.msra.mxu0 %v548
    %618 = vmatpush.bf16.msra.mxu0 %v546
    %619 = vmatpush.bf16.msra.mxu0 %v544
    %620 = vmatpush.bf16.msra.mxu0 %v542
    %621 = vmatpush.bf16.msra.mxu0 %v540
    %622 = vmatpush.bf16.msra.mxu0 %v538
    %623 = vmatmul.bf16.gmra.mxu0 %v380
    %v624 = vpop.f32.mrf.mxu0
    %v625 = vadd.f32 %v596, %v624
    %v626 = vpop.f32.mrf.mxu0
    %v627 = vadd.f32 %v598, %v626
    %628 = vmatmul.bf16.gmra.mxu0 %v384
    %v629 = vpop.f32.mrf.mxu0
    %v630 = vadd.f32 %v601, %v629
    %v631 = vpop.f32.mrf.mxu0
    %v632 = vadd.f32 %v603, %v631
    %633 = vmatmul.bf16.gmra.mxu0 %v388
    %v634 = vpop.f32.mrf.mxu0
    %v635 = vadd.f32 %v606, %v634
    %v636 = vpop.f32.mrf.mxu0
    %v637 = vadd.f32 %v608, %v636
    %638 = vmatmul.bf16.gmra.mxu0 %v392
    %v639 = vpop.f32.mrf.mxu0
    %v640 = vadd.f32 %v611, %v639
    %v641 = vpop.f32.mrf.mxu0
    %v642 = vadd.f32 %v613, %v641
    %643 = vdwg.mxu0
    %644 = vmatpush.bf16.msra.mxu0 %v537
    %645 = vmatpush.bf16.msra.mxu0 %v535
    %646 = vmatpush.bf16.msra.mxu0 %v533
    %647 = vmatpush.bf16.msra.mxu0 %v531
    %648 = vmatpush.bf16.msra.mxu0 %v529
    %649 = vmatpush.bf16.msra.mxu0 %v527
    %650 = vmatpush.bf16.msra.mxu0 %v525
    %651 = vmatpush.bf16.msra.mxu0 %v523
    %652 = vmatmul.bf16.gmra.mxu0 %v364
    %v653 = vpop.f32.mrf.mxu0
    %v654 = vadd.f32 0.0, %v653
    %v655 = vpop.f32.mrf.mxu0
    %v656 = vadd.f32 0.0, %v655
    %657 = vmatmul.bf16.gmra.mxu0 %v368
    %v658 = vpop.f32.mrf.mxu0
    %v659 = vadd.f32 0.0, %v658
    %v660 = vpop.f32.mrf.mxu0
    %v661 = vadd.f32 0.0, %v660
    %662 = vmatmul.bf16.gmra.mxu0 %v372
    %v663 = vpop.f32.mrf.mxu0
    %v664 = vadd.f32 0.0, %v663
    %v665 = vpop.f32.mrf.mxu0
    %v666 = vadd.f32 0.0, %v665
    %667 = vmatmul.bf16.gmra.mxu0 %v376
    %v668 = vpop.f32.mrf.mxu0
    %v669 = vadd.f32 0.0, %v668
    %v670 = vpop.f32.mrf.mxu0
    %v671 = vadd.f32 0.0, %v670
    %672 = vdwg.mxu0
    %673 = vmatpush.bf16.msra.mxu0 %v553
    %674 = vmatpush.bf16.msra.mxu0 %v551
    %675 = vmatpush.bf16.msra.mxu0 %v549
    %676 = vmatpush.bf16.msra.mxu0 %v547
    %677 = vmatpush.bf16.msra.mxu0 %v545
    %678 = vmatpush.bf16.msra.mxu0 %v543
    %679 = vmatpush.bf16.msra.mxu0 %v541
    %680 = vmatpush.bf16.msra.mxu0 %v539
    %681 = vmatmul.bf16.gmra.mxu0 %v380
    %v682 = vpop.f32.mrf.mxu0
    %v683 = vadd.f32 %v654, %v682
    %v684 = vpop.f32.mrf.mxu0
    %v685 = vadd.f32 %v656, %v684
    %686 = vmatmul.bf16.gmra.mxu0 %v384
    %v687 = vpop.f32.mrf.mxu0
    %v688 = vadd.f32 %v659, %v687
    %v689 = vpop.f32.mrf.mxu0
    %v690 = vadd.f32 %v661, %v689
    %691 = vmatmul.bf16.gmra.mxu0 %v388
    %v692 = vpop.f32.mrf.mxu0
    %v693 = vadd.f32 %v664, %v692
    %v694 = vpop.f32.mrf.mxu0
    %v695 = vadd.f32 %v666, %v694
    %696 = vmatmul.bf16.gmra.mxu0 %v392
    %v697 = vpop.f32.mrf.mxu0
    %v698 = vadd.f32 %v669, %v697
    %v699 = vpop.f32.mrf.mxu0
    %v700 = vadd.f32 %v671, %v699
    %701 = vdwg.mxu0
    %vm702 = vcmp.ge.f32.partialorder %v625, 0.0
    %vm703 = vcmp.ge.f32.partialorder %v683, 0.0
    %vm704 = vcmp.ge.f32.partialorder %v627, 0.0
    %vm705 = vcmp.ge.f32.partialorder %v685, 0.0
    %vm706 = vcmp.ge.f32.partialorder %v630, 0.0
    %vm707 = vcmp.ge.f32.partialorder %v688, 0.0
    %vm708 = vcmp.ge.f32.partialorder %v632, 0.0
    %vm709 = vcmp.ge.f32.partialorder %v690, 0.0
    %vm710 = vcmp.ge.f32.partialorder %v635, 0.0
    %vm711 = vcmp.ge.f32.partialorder %v693, 0.0
    %vm712 = vcmp.ge.f32.partialorder %v637, 0.0
    %vm713 = vcmp.ge.f32.partialorder %v695, 0.0
    %vm714 = vcmp.ge.f32.partialorder %v640, 0.0
    %vm715 = vcmp.ge.f32.partialorder %v698, 0.0
    %vm716 = vcmp.ge.f32.partialorder %v642, 0.0
    %vm717 = vcmp.ge.f32.partialorder %v700, 0.0
    %v718 = vmul.f32 %v625, 0.2
    %v719 = vmul.f32 %v683, 0.2
    %v720 = vmul.f32 %v627, 0.2
    %v721 = vmul.f32 %v685, 0.2
    %v722 = vmul.f32 %v630, 0.2
    %v723 = vmul.f32 %v688, 0.2
    %v724 = vmul.f32 %v632, 0.2
    %v725 = vmul.f32 %v690, 0.2
    %v726 = vmul.f32 %v635, 0.2
    %v727 = vmul.f32 %v693, 0.2
    %v728 = vmul.f32 %v637, 0.2
    %v729 = vmul.f32 %v695, 0.2
    %v730 = vmul.f32 %v640, 0.2
    %v731 = vmul.f32 %v698, 0.2
    %v732 = vmul.f32 %v642, 0.2
    %v733 = vmul.f32 %v700, 0.2
    %v734 = vsel %vm702, %v625, %v718
    %v735 = vsel %vm703, %v683, %v719
    %v736 = vsel %vm704, %v627, %v720
    %v737 = vsel %vm705, %v685, %v721
    %v738 = vsel %vm706, %v630, %v722
    %v739 = vsel %vm707, %v688, %v723
    %v740 = vsel %vm708, %v632, %v724
    %v741 = vsel %vm709, %v690, %v725
    %v742 = vsel %vm710, %v635, %v726
    %v743 = vsel %vm711, %v693, %v727
    %v744 = vsel %vm712, %v637, %v728
    %v745 = vsel %vm713, %v695, %v729
    %v746 = vsel %vm714, %v640, %v730
    %v747 = vsel %vm715, %v698, %v731
    %v748 = vsel %vm716, %v642, %v732
    %v749 = vsel %vm717, %v700, %v733
    %v751 = vsel %vm361, %v154, 0
    %v754 = vsel %vm361, %v155, 0
    %v757 = vsel %vm361, %v156, 0
    %v760 = vsel %vm361, %v157, 0
    %v763 = vsel %vm361, %v158, 0
    %v766 = vsel %vm361, %v159, 0
    %v769 = vsel %vm361, %v160, 0
    %v772 = vsel %vm361, %v161, 0
    %v775 = vsel %vm361, %v162, 0
    %777 = vmatpush.msra.mxu0 0.0
    %778 = vmatpush.msra.mxu0 0.0
    %779 = vmatpush.msra.mxu0 0.0
    %780 = vmatpush.msra.mxu0 0.0
    %781 = vmatpush.msra.mxu0 0.0
    %782 = vmatpush.msra.mxu0 0.0
    %783 = vmatpush.msra.mxu0 0.0
    %784 = vmatpush.msra.mxu0 0.0
    %785 = vmatpush.msra.mxu0 %v748
    %786 = vmatpush.msra.mxu0 %v746
    %787 = vmatpush.msra.mxu0 %v744
    %788 = vmatpush.msra.mxu0 %v742
    %789 = vmatpush.msra.mxu0 %v740
    %790 = vmatpush.msra.mxu0 %v738
    %791 = vmatpush.msra.mxu0 %v736
    %792 = vmatpush.msra.mxu0 %v734
    %793 = vmatmul.f32.gmra.mxu0 %v751
    %v794 = vpop.f32.mrf.mxu0
    %v795 = vadd.f32 0.0, %v794
    %796 = vmatmul.f32.gmra.mxu0 %v754
    %v797 = vpop.f32.mrf.mxu0
    %v798 = vadd.f32 0.0, %v797
    %799 = vmatmul.f32.gmra.mxu0 %v757
    %v800 = vpop.f32.mrf.mxu0
    %v801 = vadd.f32 0.0, %v800
    %802 = vmatmul.f32.gmra.mxu0 %v760
    %v803 = vpop.f32.mrf.mxu0
    %v804 = vadd.f32 0.0, %v803
    %805 = vmatmul.f32.gmra.mxu0 %v763
    %v806 = vpop.f32.mrf.mxu0
    %v807 = vadd.f32 0.0, %v806
    %808 = vmatmul.f32.gmra.mxu0 %v766
    %v809 = vpop.f32.mrf.mxu0
    %v810 = vadd.f32 0.0, %v809
    %811 = vmatmul.f32.gmra.mxu0 %v769
    %v812 = vpop.f32.mrf.mxu0
    %v813 = vadd.f32 0.0, %v812
    %814 = vmatmul.f32.gmra.mxu0 %v772
    %v815 = vpop.f32.mrf.mxu0
    %v816 = vadd.f32 0.0, %v815
    %817 = vmatmul.f32.gmra.mxu0 %v775
    %v818 = vpop.f32.mrf.mxu0
    %v819 = vadd.f32 0.0, %v818
    %820 = vdwg.mxu0
    %821 = vmatpush.msra.mxu0 0.0
    %822 = vmatpush.msra.mxu0 0.0
    %823 = vmatpush.msra.mxu0 0.0
    %824 = vmatpush.msra.mxu0 0.0
    %825 = vmatpush.msra.mxu0 0.0
    %826 = vmatpush.msra.mxu0 0.0
    %827 = vmatpush.msra.mxu0 0.0
    %828 = vmatpush.msra.mxu0 0.0
    %829 = vmatpush.msra.mxu0 %v749
    %830 = vmatpush.msra.mxu0 %v747
    %831 = vmatpush.msra.mxu0 %v745
    %832 = vmatpush.msra.mxu0 %v743
    %833 = vmatpush.msra.mxu0 %v741
    %834 = vmatpush.msra.mxu0 %v739
    %835 = vmatpush.msra.mxu0 %v737
    %836 = vmatpush.msra.mxu0 %v735
    %837 = vmatmul.f32.gmra.mxu0 %v751
    %v838 = vpop.f32.mrf.mxu0
    %v839 = vadd.f32 0.0, %v838
    %840 = vmatmul.f32.gmra.mxu0 %v754
    %v841 = vpop.f32.mrf.mxu0
    %v842 = vadd.f32 0.0, %v841
    %843 = vmatmul.f32.gmra.mxu0 %v757
    %v844 = vpop.f32.mrf.mxu0
    %v845 = vadd.f32 0.0, %v844
    %846 = vmatmul.f32.gmra.mxu0 %v760
    %v847 = vpop.f32.mrf.mxu0
    %v848 = vadd.f32 0.0, %v847
    %849 = vmatmul.f32.gmra.mxu0 %v763
    %v850 = vpop.f32.mrf.mxu0
    %v851 = vadd.f32 0.0, %v850
    %852 = vmatmul.f32.gmra.mxu0 %v766
    %v853 = vpop.f32.mrf.mxu0
    %v854 = vadd.f32 0.0, %v853
    %855 = vmatmul.f32.gmra.mxu0 %v769
    %v856 = vpop.f32.mrf.mxu0
    %v857 = vadd.f32 0.0, %v856
    %858 = vmatmul.f32.gmra.mxu0 %v772
    %v859 = vpop.f32.mrf.mxu0
    %v860 = vadd.f32 0.0, %v859
    %861 = vmatmul.f32.gmra.mxu0 %v775
    %v862 = vpop.f32.mrf.mxu0
    %v863 = vadd.f32 0.0, %v862
    %864 = vdwg.mxu0
    %v865 = vpack.c.bf16 %v839, %v795
    %v866 = vpack.c.bf16 %v842, %v798
    %v867 = vpack.c.bf16 %v845, %v801
    %v868 = vpack.c.bf16 %v848, %v804
    %v869 = vpack.c.bf16 %v851, %v807
    %v870 = vpack.c.bf16 %v854, %v810
    %v871 = vpack.c.bf16 %v857, %v813
    %v872 = vpack.c.bf16 %v860, %v816
    %v873 = vpack.c.bf16 %v863, %v819
    %v878 = vunpack.c.l.b16 %v865
    %v879 = vunpack.c.h.b16 %v865
    %v880 = vunpack.c.l.b16 %v866
    %v881 = vunpack.c.h.b16 %v866
    %v882 = vunpack.c.l.b16 %v867
    %v883 = vunpack.c.h.b16 %v867
    %v884 = vunpack.c.l.b16 %v868
    %v885 = vunpack.c.h.b16 %v868
    %v886 = vpack.c.b16 %v880, %v878
    %v887 = vpack.c.b16 %v881, %v879
    %v888 = vpack.c.b16 %v884, %v882
    %v889 = vpack.c.b16 %v885, %v883
    %v899 = vunpack.c.l.b16 %v869
    %v900 = vunpack.c.h.b16 %v869
    %v901 = vunpack.c.l.b16 %v870
    %v902 = vunpack.c.h.b16 %v870
    %v903 = vunpack.c.l.b16 %v871
    %v904 = vunpack.c.h.b16 %v871
    %v905 = vunpack.c.l.b16 %v872
    %v906 = vunpack.c.h.b16 %v872
    %v907 = vunpack.c.l.b16 %v873
    %v908 = vunpack.c.h.b16 %v873
    %v909 = vpack.c.b16 %v901, %v899
    %v910 = vpack.c.b16 %v902, %v900
    %v911 = vpack.c.b16 %v905, %v903
    %v912 = vpack.c.b16 %v906, %v904
    %v913 = vpack.c.b16 %v907, %v907
    %v914 = vpack.c.b16 %v908, %v908
    %v915 = vrot.slane %v909, 1
    %v916 = vrot.slane %v911, 1
    %v917 = vsel %vm315, %v915, %v916
    %v918 = vrot.slane %v910, 1
    %v919 = vrot.slane %v912, 1
    %v920 = vsel %vm315, %v918, %v919
    %v921 = vrot.slane %v913, 1
    %v922 = vsel %vm315, %v916, %v921
    %v923 = vrot.slane %v914, 1
    %v924 = vsel %vm315, %v919, %v923
    %v929 = vpack.c.b16 %v899, %v899
    %v930 = vpack.c.b16 %v900, %v900
    %v931 = vrot.slane %v886, 1
    %v932 = vrot.slane %v888, 1
    %v933 = vsel %vm315, %v931, %v932
    %v934 = vrot.slane %v887, 1
    %v935 = vrot.slane %v889, 1
    %v936 = vsel %vm315, %v934, %v935
    %v937 = vrot.slane %v929, 1
    %v938 = vsel %vm315, %v932, %v937
    %v939 = vrot.slane %v930, 1
    %v940 = vsel %vm315, %v935, %v939
    %v945 = vrot.slane %v909, 2
    %v946 = vrot.slane %v911, 2
    %v947 = vsel %vm343, %v945, %v946
    %v948 = vrot.slane %v910, 2
    %v949 = vrot.slane %v912, 2
    %v950 = vsel %vm343, %v948, %v949
    %v951 = vrot.slane %v913, 2
    %v952 = vsel %vm343, %v946, %v951
    %v953 = vrot.slane %v914, 2
    %v954 = vsel %vm343, %v949, %v953
    %v959 = vld [vmem:[#allocation8] sm:$0xff]
    %v960 = vld [vmem:[#allocation8 + $0x8] sm:$0xff]
    %v961 = vld [vmem:[#allocation8 + $0x10] sm:$0xff]
    %v962 = vld [vmem:[#allocation8 + $0x18] sm:$0xff]
    %v963 = vld [vmem:[#allocation8 + $0x20] sm:$0xff]
    %v964 = vld [vmem:[#allocation8 + $0x28] sm:$0xff]
    %v965 = vld [vmem:[#allocation8 + $0x30] sm:$0xff]
    %v966 = vld [vmem:[#allocation8 + $0x38] sm:$0xff]
    %v967 = vld [vmem:[#allocation8 + $0x40] sm:$0xff]
    %v968 = vld [vmem:[#allocation8 + $0x48] sm:$0xff]
    %v969 = vld [vmem:[#allocation8 + $0x50] sm:$0xff]
    %v970 = vld [vmem:[#allocation8 + $0x58] sm:$0xff]
    %v971 = vld [vmem:[#allocation8 + $0x60] sm:$0xff]
    %v972 = vld [vmem:[#allocation8 + $0x68] sm:$0xff]
    %v973 = vld [vmem:[#allocation8 + $0x70] sm:$0xff]
    %v974 = vld [vmem:[#allocation8 + $0x78] sm:$0xff]
    %v975 = vld [vmem:[#allocation8 + $0x80] sm:$0xff]
    %v976 = vld [vmem:[#allocation8 + $0x88] sm:$0xff]
    %v977 = vld [vmem:[#allocation8 + $0x90] sm:$0xff]
    %v978 = vld [vmem:[#allocation8 + $0x98] sm:$0xff]
    %v979 = vld [vmem:[#allocation8 + $0xa0] sm:$0xff]
    %v980 = vld [vmem:[#allocation8 + $0xa8] sm:$0xff]
    %v981 = vld [vmem:[#allocation8 + $0xb0] sm:$0xff]
    %v982 = vld [vmem:[#allocation8 + $0xb8] sm:$0xff]
    %v983 = vld [vmem:[#allocation8 + $0xc0] sm:$0xff]
    %v984 = vld [vmem:[#allocation8 + $0xc8] sm:$0xff]
    %v985 = vld [vmem:[#allocation8 + $0xd0] sm:$0xff]
    %v986 = vld [vmem:[#allocation8 + $0xd8] sm:$0xff]
    %v987 = vld [vmem:[#allocation8 + $0xe0] sm:$0xff]
    %v988 = vld [vmem:[#allocation8 + $0xe8] sm:$0xff]
    %v989 = vld [vmem:[#allocation8 + $0xf0] sm:$0xff]
    %v990 = vld [vmem:[#allocation8 + $0xf8] sm:$0xff]
    %v991 = vld [vmem:[#allocation8 + $0x100] sm:$0xff]
    %v992 = vld [vmem:[#allocation8 + $0x108] sm:$0xff]
    %v993 = vld [vmem:[#allocation8 + $0x110] sm:$0xff]
    %v994 = vld [vmem:[#allocation8 + $0x118] sm:$0xff]
    %v995 = vld [vmem:[#allocation8 + $0x120] sm:$0xff]
    %v996 = vld [vmem:[#allocation8 + $0x128] sm:$0xff]
    %v997 = vld [vmem:[#allocation8 + $0x130] sm:$0xff]
    %v998 = vld [vmem:[#allocation8 + $0x138] sm:$0xff]
    %v999 = vld [vmem:[#allocation8 + $0x140] sm:$0xff]
    %v1000 = vld [vmem:[#allocation8 + $0x148] sm:$0xff]
    %v1001 = vld [vmem:[#allocation8 + $0x150] sm:$0xff]
    %v1002 = vld [vmem:[#allocation8 + $0x158] sm:$0xff]
    %v1003 = vld [vmem:[#allocation8 + $0x160] sm:$0xff]
    %v1004 = vld [vmem:[#allocation8 + $0x168] sm:$0xff]
    %v1005 = vld [vmem:[#allocation8 + $0x170] sm:$0xff]
    %v1006 = vld [vmem:[#allocation8 + $0x178] sm:$0xff]
    %v1007 = vld [vmem:[#allocation8 + $0x180] sm:$0xff]
    %v1008 = vld [vmem:[#allocation8 + $0x188] sm:$0xff]
    %v1009 = vld [vmem:[#allocation8 + $0x190] sm:$0xff]
    %v1010 = vld [vmem:[#allocation8 + $0x198] sm:$0xff]
    %v1011 = vld [vmem:[#allocation8 + $0x1a0] sm:$0xff]
    %v1012 = vld [vmem:[#allocation8 + $0x1a8] sm:$0xff]
    %v1013 = vld [vmem:[#allocation8 + $0x1b0] sm:$0xff]
    %v1014 = vld [vmem:[#allocation8 + $0x1b8] sm:$0xff]
    %v1015 = vld [vmem:[#allocation8 + $0x1c0] sm:$0xff]
    %v1016 = vld [vmem:[#allocation8 + $0x1c8] sm:$0xff]
    %v1017 = vld [vmem:[#allocation8 + $0x1d0] sm:$0xff]
    %v1018 = vld [vmem:[#allocation8 + $0x1d8] sm:$0xff]
    %v1019 = vld [vmem:[#allocation8 + $0x1e0] sm:$0xff]
    %v1020 = vld [vmem:[#allocation8 + $0x1e8] sm:$0xff]
    %v1021 = vld [vmem:[#allocation8 + $0x1f0] sm:$0xff]
    %v1022 = vld [vmem:[#allocation8 + $0x1f8] sm:$0xff]
    %v1023 = vld [vmem:[#allocation8 + $0x200] sm:$0xff]
    %v1024 = vld [vmem:[#allocation8 + $0x208] sm:$0xff]
    %v1025 = vld [vmem:[#allocation8 + $0x210] sm:$0xff]
    %v1026 = vld [vmem:[#allocation8 + $0x218] sm:$0xff]
    %v1027 = vld [vmem:[#allocation8 + $0x220] sm:$0xff]
    %v1028 = vld [vmem:[#allocation8 + $0x228] sm:$0xff]
    %v1029 = vld [vmem:[#allocation8 + $0x230] sm:$0xff]
    %v1030 = vld [vmem:[#allocation8 + $0x238] sm:$0xff]
    %v1031 = vld [vmem:[#allocation8 + $0x240] sm:$0xff]
    %v1032 = vld [vmem:[#allocation8 + $0x248] sm:$0xff]
    %v1033 = vld [vmem:[#allocation8 + $0x250] sm:$0xff]
    %v1034 = vld [vmem:[#allocation8 + $0x258] sm:$0xff]
    %v1035 = vld [vmem:[#allocation8 + $0x260] sm:$0xff]
    %v1036 = vld [vmem:[#allocation8 + $0x268] sm:$0xff]
    %v1037 = vld [vmem:[#allocation8 + $0x270] sm:$0xff]
    %v1038 = vld [vmem:[#allocation8 + $0x278] sm:$0xff]
    %v1039 = vld [vmem:[#allocation8 + $0x280] sm:$0xff]
    %v1040 = vld [vmem:[#allocation8 + $0x288] sm:$0xff]
    %v1041 = vld [vmem:[#allocation8 + $0x290] sm:$0xff]
    %v1042 = vld [vmem:[#allocation8 + $0x298] sm:$0xff]
    %v1043 = vld [vmem:[#allocation8 + $0x2a0] sm:$0xff]
    %v1044 = vld [vmem:[#allocation8 + $0x2a8] sm:$0xff]
    %v1045 = vld [vmem:[#allocation8 + $0x2b0] sm:$0xff]
    %v1046 = vld [vmem:[#allocation8 + $0x2b8] sm:$0xff]
    %v1047 = vld [vmem:[#allocation8 + $0x2c0] sm:$0xff]
    %v1048 = vld [vmem:[#allocation8 + $0x2c8] sm:$0xff]
    %v1049 = vld [vmem:[#allocation8 + $0x2d0] sm:$0xff]
    %v1050 = vld [vmem:[#allocation8 + $0x2d8] sm:$0xff]
    %v1051 = vld [vmem:[#allocation8 + $0x2e0] sm:$0xff]
    %v1052 = vld [vmem:[#allocation8 + $0x2e8] sm:$0xff]
    %v1053 = vld [vmem:[#allocation8 + $0x2f0] sm:$0xff]
    %v1054 = vld [vmem:[#allocation8 + $0x2f8] sm:$0xff]
    %v1055 = vld [vmem:[#allocation8 + $0x300] sm:$0xff]
    %v1056 = vld [vmem:[#allocation8 + $0x308] sm:$0xff]
    %v1057 = vld [vmem:[#allocation8 + $0x310] sm:$0xff]
    %v1058 = vld [vmem:[#allocation8 + $0x318] sm:$0xff]
    %v1059 = vld [vmem:[#allocation8 + $0x320] sm:$0xff]
    %v1060 = vld [vmem:[#allocation8 + $0x328] sm:$0xff]
    %v1061 = vld [vmem:[#allocation8 + $0x330] sm:$0xff]
    %v1062 = vld [vmem:[#allocation8 + $0x338] sm:$0xff]
    %v1063 = vld [vmem:[#allocation8 + $0x340] sm:$0xff]
    %v1064 = vld [vmem:[#allocation8 + $0x348] sm:$0xff]
    %v1065 = vld [vmem:[#allocation8 + $0x350] sm:$0xff]
    %v1066 = vld [vmem:[#allocation8 + $0x358] sm:$0xff]
    %v1067 = vld [vmem:[#allocation8 + $0x360] sm:$0xff]
    %v1068 = vld [vmem:[#allocation8 + $0x368] sm:$0xff]
    %v1069 = vld [vmem:[#allocation8 + $0x370] sm:$0xff]
    %v1070 = vld [vmem:[#allocation8 + $0x378] sm:$0xff]
    %v1071 = vld [vmem:[#allocation8 + $0x380] sm:$0xff]
    %v1072 = vld [vmem:[#allocation8 + $0x388] sm:$0xff]
    %v1073 = vld [vmem:[#allocation8 + $0x390] sm:$0xff]
    %v1074 = vld [vmem:[#allocation8 + $0x398] sm:$0xff]
    %v1075 = vld [vmem:[#allocation8 + $0x3a0] sm:$0xff]
    %v1076 = vld [vmem:[#allocation8 + $0x3a8] sm:$0xff]
    %v1077 = vld [vmem:[#allocation8 + $0x3b0] sm:$0xff]
    %v1078 = vld [vmem:[#allocation8 + $0x3b8] sm:$0xff]
    %v1079 = vld [vmem:[#allocation8 + $0x3c0] sm:$0xff]
    %v1080 = vld [vmem:[#allocation8 + $0x3c8] sm:$0xff]
    %v1081 = vld [vmem:[#allocation8 + $0x3d0] sm:$0xff]
    %v1082 = vld [vmem:[#allocation8 + $0x3d8] sm:$0xff]
    %v1083 = vld [vmem:[#allocation8 + $0x3e0] sm:$0xff]
    %v1084 = vld [vmem:[#allocation8 + $0x3e8] sm:$0xff]
    %v1085 = vld [vmem:[#allocation8 + $0x3f0] sm:$0xff]
    %v1086 = vld [vmem:[#allocation8 + $0x3f8] sm:$0xff]
    %v1215 = vunpack.c.l.b16 %v959
    %v1216 = vunpack.c.h.b16 %v959
    %v1217 = vunpack.c.l.b16 %v960
    %v1218 = vunpack.c.h.b16 %v960
    %v1219 = vunpack.c.l.b16 %v961
    %v1220 = vunpack.c.h.b16 %v961
    %v1221 = vunpack.c.l.b16 %v962
    %v1222 = vunpack.c.h.b16 %v962
    %v1223 = vunpack.c.l.b16 %v963
    %v1224 = vunpack.c.h.b16 %v963
    %v1225 = vunpack.c.l.b16 %v964
    %v1226 = vunpack.c.h.b16 %v964
    %v1227 = vunpack.c.l.b16 %v965
    %v1228 = vunpack.c.h.b16 %v965
    %v1229 = vunpack.c.l.b16 %v966
    %v1230 = vunpack.c.h.b16 %v966
    %v1231 = vunpack.c.l.b16 %v967
    %v1232 = vunpack.c.h.b16 %v967
    %v1233 = vunpack.c.l.b16 %v968
    %v1234 = vunpack.c.h.b16 %v968
    %v1235 = vunpack.c.l.b16 %v969
    %v1236 = vunpack.c.h.b16 %v969
    %v1237 = vunpack.c.l.b16 %v970
    %v1238 = vunpack.c.h.b16 %v970
    %v1239 = vunpack.c.l.b16 %v971
    %v1240 = vunpack.c.h.b16 %v971
    %v1241 = vunpack.c.l.b16 %v972
    %v1242 = vunpack.c.h.b16 %v972
    %v1243 = vunpack.c.l.b16 %v973
    %v1244 = vunpack.c.h.b16 %v973
    %v1245 = vunpack.c.l.b16 %v974
    %v1246 = vunpack.c.h.b16 %v974
    %v1247 = vunpack.c.l.b16 %v975
    %v1248 = vunpack.c.h.b16 %v975
    %v1249 = vunpack.c.l.b16 %v976
    %v1250 = vunpack.c.h.b16 %v976
    %v1251 = vunpack.c.l.b16 %v977
    %v1252 = vunpack.c.h.b16 %v977
    %v1253 = vunpack.c.l.b16 %v978
    %v1254 = vunpack.c.h.b16 %v978
    %v1255 = vunpack.c.l.b16 %v979
    %v1256 = vunpack.c.h.b16 %v979
    %v1257 = vunpack.c.l.b16 %v980
    %v1258 = vunpack.c.h.b16 %v980
    %v1259 = vunpack.c.l.b16 %v981
    %v1260 = vunpack.c.h.b16 %v981
    %v1261 = vunpack.c.l.b16 %v982
    %v1262 = vunpack.c.h.b16 %v982
    %v1263 = vunpack.c.l.b16 %v983
    %v1264 = vunpack.c.h.b16 %v983
    %v1265 = vunpack.c.l.b16 %v984
    %v1266 = vunpack.c.h.b16 %v984
    %v1267 = vunpack.c.l.b16 %v985
    %v1268 = vunpack.c.h.b16 %v985
    %v1269 = vunpack.c.l.b16 %v986
    %v1270 = vunpack.c.h.b16 %v986
    %v1271 = vunpack.c.l.b16 %v987
    %v1272 = vunpack.c.h.b16 %v987
    %v1273 = vunpack.c.l.b16 %v988
    %v1274 = vunpack.c.h.b16 %v988
    %v1275 = vunpack.c.l.b16 %v989
    %v1276 = vunpack.c.h.b16 %v989
    %v1277 = vunpack.c.l.b16 %v990
    %v1278 = vunpack.c.h.b16 %v990
    %v1279 = vunpack.c.l.b16 %v991
    %v1280 = vunpack.c.h.b16 %v991
    %v1281 = vunpack.c.l.b16 %v992
    %v1282 = vunpack.c.h.b16 %v992
    %v1283 = vunpack.c.l.b16 %v993
    %v1284 = vunpack.c.h.b16 %v993
    %v1285 = vunpack.c.l.b16 %v994
    %v1286 = vunpack.c.h.b16 %v994
    %v1287 = vunpack.c.l.b16 %v995
    %v1288 = vunpack.c.h.b16 %v995
    %v1289 = vunpack.c.l.b16 %v996
    %v1290 = vunpack.c.h.b16 %v996
    %v1291 = vunpack.c.l.b16 %v997
    %v1292 = vunpack.c.h.b16 %v997
    %v1293 = vunpack.c.l.b16 %v998
    %v1294 = vunpack.c.h.b16 %v998
    %v1295 = vunpack.c.l.b16 %v999
    %v1296 = vunpack.c.h.b16 %v999
    %v1297 = vunpack.c.l.b16 %v1000
    %v1298 = vunpack.c.h.b16 %v1000
    %v1299 = vunpack.c.l.b16 %v1001
    %v1300 = vunpack.c.h.b16 %v1001
    %v1301 = vunpack.c.l.b16 %v1002
    %v1302 = vunpack.c.h.b16 %v1002
    %v1303 = vunpack.c.l.b16 %v1003
    %v1304 = vunpack.c.h.b16 %v1003
    %v1305 = vunpack.c.l.b16 %v1004
    %v1306 = vunpack.c.h.b16 %v1004
    %v1307 = vunpack.c.l.b16 %v1005
    %v1308 = vunpack.c.h.b16 %v1005
    %v1309 = vunpack.c.l.b16 %v1006
    %v1310 = vunpack.c.h.b16 %v1006
    %v1311 = vunpack.c.l.b16 %v1007
    %v1312 = vunpack.c.h.b16 %v1007
    %v1313 = vunpack.c.l.b16 %v1008
    %v1314 = vunpack.c.h.b16 %v1008
    %v1315 = vunpack.c.l.b16 %v1009
    %v1316 = vunpack.c.h.b16 %v1009
    %v1317 = vunpack.c.l.b16 %v1010
    %v1318 = vunpack.c.h.b16 %v1010
    %v1319 = vunpack.c.l.b16 %v1011
    %v1320 = vunpack.c.h.b16 %v1011
    %v1321 = vunpack.c.l.b16 %v1012
    %v1322 = vunpack.c.h.b16 %v1012
    %v1323 = vunpack.c.l.b16 %v1013
    %v1324 = vunpack.c.h.b16 %v1013
    %v1325 = vunpack.c.l.b16 %v1014
    %v1326 = vunpack.c.h.b16 %v1014
    %v1327 = vunpack.c.l.b16 %v1015
    %v1328 = vunpack.c.h.b16 %v1015
    %v1329 = vunpack.c.l.b16 %v1016
    %v1330 = vunpack.c.h.b16 %v1016
    %v1331 = vunpack.c.l.b16 %v1017
    %v1332 = vunpack.c.h.b16 %v1017
    %v1333 = vunpack.c.l.b16 %v1018
    %v1334 = vunpack.c.h.b16 %v1018
    %v1335 = vunpack.c.l.b16 %v1019
    %v1336 = vunpack.c.h.b16 %v1019
    %v1337 = vunpack.c.l.b16 %v1020
    %v1338 = vunpack.c.h.b16 %v1020
    %v1339 = vunpack.c.l.b16 %v1021
    %v1340 = vunpack.c.h.b16 %v1021
    %v1341 = vunpack.c.l.b16 %v1022
    %v1342 = vunpack.c.h.b16 %v1022
    %v1343 = vunpack.c.l.b16 %v1023
    %v1344 = vunpack.c.h.b16 %v1023
    %v1345 = vunpack.c.l.b16 %v1024
    %v1346 = vunpack.c.h.b16 %v1024
    %v1347 = vunpack.c.l.b16 %v1025
    %v1348 = vunpack.c.h.b16 %v1025
    %v1349 = vunpack.c.l.b16 %v1026
    %v1350 = vunpack.c.h.b16 %v1026
    %v1351 = vunpack.c.l.b16 %v1027
    %v1352 = vunpack.c.h.b16 %v1027
    %v1353 = vunpack.c.l.b16 %v1028
    %v1354 = vunpack.c.h.b16 %v1028
    %v1355 = vunpack.c.l.b16 %v1029
    %v1356 = vunpack.c.h.b16 %v1029
    %v1357 = vunpack.c.l.b16 %v1030
    %v1358 = vunpack.c.h.b16 %v1030
    %v1359 = vunpack.c.l.b16 %v1031
    %v1360 = vunpack.c.h.b16 %v1031
    %v1361 = vunpack.c.l.b16 %v1032
    %v1362 = vunpack.c.h.b16 %v1032
    %v1363 = vunpack.c.l.b16 %v1033
    %v1364 = vunpack.c.h.b16 %v1033
    %v1365 = vunpack.c.l.b16 %v1034
    %v1366 = vunpack.c.h.b16 %v1034
    %v1367 = vunpack.c.l.b16 %v1035
    %v1368 = vunpack.c.h.b16 %v1035
    %v1369 = vunpack.c.l.b16 %v1036
    %v1370 = vunpack.c.h.b16 %v1036
    %v1371 = vunpack.c.l.b16 %v1037
    %v1372 = vunpack.c.h.b16 %v1037
    %v1373 = vunpack.c.l.b16 %v1038
    %v1374 = vunpack.c.h.b16 %v1038
    %v1375 = vunpack.c.l.b16 %v1039
    %v1376 = vunpack.c.h.b16 %v1039
    %v1377 = vunpack.c.l.b16 %v1040
    %v1378 = vunpack.c.h.b16 %v1040
    %v1379 = vunpack.c.l.b16 %v1041
    %v1380 = vunpack.c.h.b16 %v1041
    %v1381 = vunpack.c.l.b16 %v1042
    %v1382 = vunpack.c.h.b16 %v1042
    %v1383 = vunpack.c.l.b16 %v1043
    %v1384 = vunpack.c.h.b16 %v1043
    %v1385 = vunpack.c.l.b16 %v1044
    %v1386 = vunpack.c.h.b16 %v1044
    %v1387 = vunpack.c.l.b16 %v1045
    %v1388 = vunpack.c.h.b16 %v1045
    %v1389 = vunpack.c.l.b16 %v1046
    %v1390 = vunpack.c.h.b16 %v1046
    %v1391 = vunpack.c.l.b16 %v1047
    %v1392 = vunpack.c.h.b16 %v1047
    %v1393 = vunpack.c.l.b16 %v1048
    %v1394 = vunpack.c.h.b16 %v1048
    %v1395 = vunpack.c.l.b16 %v1049
    %v1396 = vunpack.c.h.b16 %v1049
    %v1397 = vunpack.c.l.b16 %v1050
    %v1398 = vunpack.c.h.b16 %v1050
    %v1399 = vunpack.c.l.b16 %v1051
    %v1400 = vunpack.c.h.b16 %v1051
    %v1401 = vunpack.c.l.b16 %v1052
    %v1402 = vunpack.c.h.b16 %v1052
    %v1403 = vunpack.c.l.b16 %v1053
    %v1404 = vunpack.c.h.b16 %v1053
    %v1405 = vunpack.c.l.b16 %v1054
    %v1406 = vunpack.c.h.b16 %v1054
    %v1407 = vunpack.c.l.b16 %v1055
    %v1408 = vunpack.c.h.b16 %v1055
    %v1409 = vunpack.c.l.b16 %v1056
    %v1410 = vunpack.c.h.b16 %v1056
    %v1411 = vunpack.c.l.b16 %v1057
    %v1412 = vunpack.c.h.b16 %v1057
    %v1413 = vunpack.c.l.b16 %v1058
    %v1414 = vunpack.c.h.b16 %v1058
    %v1415 = vunpack.c.l.b16 %v1059
    %v1416 = vunpack.c.h.b16 %v1059
    %v1417 = vunpack.c.l.b16 %v1060
    %v1418 = vunpack.c.h.b16 %v1060
    %v1419 = vunpack.c.l.b16 %v1061
    %v1420 = vunpack.c.h.b16 %v1061
    %v1421 = vunpack.c.l.b16 %v1062
    %v1422 = vunpack.c.h.b16 %v1062
    %v1423 = vunpack.c.l.b16 %v1063
    %v1424 = vunpack.c.h.b16 %v1063
    %v1425 = vunpack.c.l.b16 %v1064
    %v1426 = vunpack.c.h.b16 %v1064
    %v1427 = vunpack.c.l.b16 %v1065
    %v1428 = vunpack.c.h.b16 %v1065
    %v1429 = vunpack.c.l.b16 %v1066
    %v1430 = vunpack.c.h.b16 %v1066
    %v1431 = vunpack.c.l.b16 %v1067
    %v1432 = vunpack.c.h.b16 %v1067
    %v1433 = vunpack.c.l.b16 %v1068
    %v1434 = vunpack.c.h.b16 %v1068
    %v1435 = vunpack.c.l.b16 %v1069
    %v1436 = vunpack.c.h.b16 %v1069
    %v1437 = vunpack.c.l.b16 %v1070
    %v1438 = vunpack.c.h.b16 %v1070
    %v1439 = vunpack.c.l.b16 %v1071
    %v1440 = vunpack.c.h.b16 %v1071
    %v1441 = vunpack.c.l.b16 %v1072
    %v1442 = vunpack.c.h.b16 %v1072
    %v1443 = vunpack.c.l.b16 %v1073
    %v1444 = vunpack.c.h.b16 %v1073
    %v1445 = vunpack.c.l.b16 %v1074
    %v1446 = vunpack.c.h.b16 %v1074
    %v1447 = vunpack.c.l.b16 %v1075
    %v1448 = vunpack.c.h.b16 %v1075
    %v1449 = vunpack.c.l.b16 %v1076
    %v1450 = vunpack.c.h.b16 %v1076
    %v1451 = vunpack.c.l.b16 %v1077
    %v1452 = vunpack.c.h.b16 %v1077
    %v1453 = vunpack.c.l.b16 %v1078
    %v1454 = vunpack.c.h.b16 %v1078
    %v1455 = vunpack.c.l.b16 %v1079
    %v1456 = vunpack.c.h.b16 %v1079
    %v1457 = vunpack.c.l.b16 %v1080
    %v1458 = vunpack.c.h.b16 %v1080
    %v1459 = vunpack.c.l.b16 %v1081
    %v1460 = vunpack.c.h.b16 %v1081
    %v1461 = vunpack.c.l.b16 %v1082
    %v1462 = vunpack.c.h.b16 %v1082
    %v1463 = vunpack.c.l.b16 %v1083
    %v1464 = vunpack.c.h.b16 %v1083
    %v1465 = vunpack.c.l.b16 %v1084
    %v1466 = vunpack.c.h.b16 %v1084
    %v1467 = vunpack.c.l.b16 %v1085
    %v1468 = vunpack.c.h.b16 %v1085
    %v1469 = vunpack.c.l.b16 %v1086
    %v1470 = vunpack.c.h.b16 %v1086
    %v1471 = vpack.c.b16 %v1217, %v1215
    %v1472 = vpack.c.b16 %v1218, %v1216
    %v1473 = vpack.c.b16 %v1221, %v1219
    %v1474 = vpack.c.b16 %v1222, %v1220
    %v1475 = vpack.c.b16 %v1225, %v1223
    %v1476 = vpack.c.b16 %v1226, %v1224
    %v1477 = vpack.c.b16 %v1229, %v1227
    %v1478 = vpack.c.b16 %v1230, %v1228
    %v1479 = vpack.c.b16 %v1233, %v1231
    %v1480 = vpack.c.b16 %v1234, %v1232
    %v1481 = vpack.c.b16 %v1237, %v1235
    %v1482 = vpack.c.b16 %v1238, %v1236
    %v1483 = vpack.c.b16 %v1241, %v1239
    %v1484 = vpack.c.b16 %v1242, %v1240
    %v1485 = vpack.c.b16 %v1245, %v1243
    %v1486 = vpack.c.b16 %v1246, %v1244
    %v1487 = vpack.c.b16 %v1249, %v1247
    %v1488 = vpack.c.b16 %v1250, %v1248
    %v1489 = vpack.c.b16 %v1253, %v1251
    %v1490 = vpack.c.b16 %v1254, %v1252
    %v1491 = vpack.c.b16 %v1257, %v1255
    %v1492 = vpack.c.b16 %v1258, %v1256
    %v1493 = vpack.c.b16 %v1261, %v1259
    %v1494 = vpack.c.b16 %v1262, %v1260
    %v1495 = vpack.c.b16 %v1265, %v1263
    %v1496 = vpack.c.b16 %v1266, %v1264
    %v1497 = vpack.c.b16 %v1269, %v1267
    %v1498 = vpack.c.b16 %v1270, %v1268
    %v1499 = vpack.c.b16 %v1273, %v1271
    %v1500 = vpack.c.b16 %v1274, %v1272
    %v1501 = vpack.c.b16 %v1277, %v1275
    %v1502 = vpack.c.b16 %v1278, %v1276
    %v1503 = vpack.c.b16 %v1281, %v1279
    %v1504 = vpack.c.b16 %v1282, %v1280
    %v1505 = vpack.c.b16 %v1285, %v1283
    %v1506 = vpack.c.b16 %v1286, %v1284
    %v1507 = vpack.c.b16 %v1289, %v1287
    %v1508 = vpack.c.b16 %v1290, %v1288
    %v1509 = vpack.c.b16 %v1293, %v1291
    %v1510 = vpack.c.b16 %v1294, %v1292
    %v1511 = vpack.c.b16 %v1297, %v1295
    %v1512 = vpack.c.b16 %v1298, %v1296
    %v1513 = vpack.c.b16 %v1301, %v1299
    %v1514 = vpack.c.b16 %v1302, %v1300
    %v1515 = vpack.c.b16 %v1305, %v1303
    %v1516 = vpack.c.b16 %v1306, %v1304
    %v1517 = vpack.c.b16 %v1309, %v1307
    %v1518 = vpack.c.b16 %v1310, %v1308
    %v1519 = vpack.c.b16 %v1313, %v1311
    %v1520 = vpack.c.b16 %v1314, %v1312
    %v1521 = vpack.c.b16 %v1317, %v1315
    %v1522 = vpack.c.b16 %v1318, %v1316
    %v1523 = vpack.c.b16 %v1321, %v1319
    %v1524 = vpack.c.b16 %v1322, %v1320
    %v1525 = vpack.c.b16 %v1325, %v1323
    %v1526 = vpack.c.b16 %v1326, %v1324
    %v1527 = vpack.c.b16 %v1329, %v1327
    %v1528 = vpack.c.b16 %v1330, %v1328
    %v1529 = vpack.c.b16 %v1333, %v1331
    %v1530 = vpack.c.b16 %v1334, %v1332
    %v1531 = vpack.c.b16 %v1337, %v1335
    %v1532 = vpack.c.b16 %v1338, %v1336
    %v1533 = vpack.c.b16 %v1341, %v1339
    %v1534 = vpack.c.b16 %v1342, %v1340
    %v1535 = vpack.c.b16 %v1345, %v1343
    %v1536 = vpack.c.b16 %v1346, %v1344
    %v1537 = vpack.c.b16 %v1349, %v1347
    %v1538 = vpack.c.b16 %v1350, %v1348
    %v1539 = vpack.c.b16 %v1353, %v1351
    %v1540 = vpack.c.b16 %v1354, %v1352
    %v1541 = vpack.c.b16 %v1357, %v1355
    %v1542 = vpack.c.b16 %v1358, %v1356
    %v1543 = vpack.c.b16 %v1361, %v1359
    %v1544 = vpack.c.b16 %v1362, %v1360
    %v1545 = vpack.c.b16 %v1365, %v1363
    %v1546 = vpack.c.b16 %v1366, %v1364
    %v1547 = vpack.c.b16 %v1369, %v1367
    %v1548 = vpack.c.b16 %v1370, %v1368
    %v1549 = vpack.c.b16 %v1373, %v1371
    %v1550 = vpack.c.b16 %v1374, %v1372
    %v1551 = vpack.c.b16 %v1377, %v1375
    %v1552 = vpack.c.b16 %v1378, %v1376
    %v1553 = vpack.c.b16 %v1381, %v1379
    %v1554 = vpack.c.b16 %v1382, %v1380
    %v1555 = vpack.c.b16 %v1385, %v1383
    %v1556 = vpack.c.b16 %v1386, %v1384
    %v1557 = vpack.c.b16 %v1389, %v1387
    %v1558 = vpack.c.b16 %v1390, %v1388
    %v1559 = vpack.c.b16 %v1393, %v1391
    %v1560 = vpack.c.b16 %v1394, %v1392
    %v1561 = vpack.c.b16 %v1397, %v1395
    %v1562 = vpack.c.b16 %v1398, %v1396
    %v1563 = vpack.c.b16 %v1401, %v1399
    %v1564 = vpack.c.b16 %v1402, %v1400
    %v1565 = vpack.c.b16 %v1405, %v1403
    %v1566 = vpack.c.b16 %v1406, %v1404
    %v1567 = vpack.c.b16 %v1409, %v1407
    %v1568 = vpack.c.b16 %v1410, %v1408
    %v1569 = vpack.c.b16 %v1413, %v1411
    %v1570 = vpack.c.b16 %v1414, %v1412
    %v1571 = vpack.c.b16 %v1417, %v1415
    %v1572 = vpack.c.b16 %v1418, %v1416
    %v1573 = vpack.c.b16 %v1421, %v1419
    %v1574 = vpack.c.b16 %v1422, %v1420
    %v1575 = vpack.c.b16 %v1425, %v1423
    %v1576 = vpack.c.b16 %v1426, %v1424
    %v1577 = vpack.c.b16 %v1429, %v1427
    %v1578 = vpack.c.b16 %v1430, %v1428
    %v1579 = vpack.c.b16 %v1433, %v1431
    %v1580 = vpack.c.b16 %v1434, %v1432
    %v1581 = vpack.c.b16 %v1437, %v1435
    %v1582 = vpack.c.b16 %v1438, %v1436
    %v1583 = vpack.c.b16 %v1441, %v1439
    %v1584 = vpack.c.b16 %v1442, %v1440
    %v1585 = vpack.c.b16 %v1445, %v1443
    %v1586 = vpack.c.b16 %v1446, %v1444
    %v1587 = vpack.c.b16 %v1449, %v1447
    %v1588 = vpack.c.b16 %v1450, %v1448
    %v1589 = vpack.c.b16 %v1453, %v1451
    %v1590 = vpack.c.b16 %v1454, %v1452
    %v1591 = vpack.c.b16 %v1457, %v1455
    %v1592 = vpack.c.b16 %v1458, %v1456
    %v1593 = vpack.c.b16 %v1461, %v1459
    %v1594 = vpack.c.b16 %v1462, %v1460
    %v1595 = vpack.c.b16 %v1465, %v1463
    %v1596 = vpack.c.b16 %v1466, %v1464
    %v1597 = vpack.c.b16 %v1469, %v1467
    %v1598 = vpack.c.b16 %v1470, %v1468
    %1727 = vmatpush.bf16.msra.mxu0 %v1485
    %1728 = vmatpush.bf16.msra.mxu0 %v1483
    %1729 = vmatpush.bf16.msra.mxu0 %v1481
    %1730 = vmatpush.bf16.msra.mxu0 %v1479
    %1731 = vmatpush.bf16.msra.mxu0 %v1477
    %1732 = vmatpush.bf16.msra.mxu0 %v1475
    %1733 = vmatpush.bf16.msra.mxu0 %v1473
    %1734 = vmatpush.bf16.msra.mxu0 %v1471
    %1735 = vmatmul.bf16.gmra.mxu0 %v886
    %v1736 = vpop.f32.mrf.mxu0
    %v1737 = vadd.f32 0.0, %v1736
    %v1738 = vpop.f32.mrf.mxu0
    %v1739 = vadd.f32 0.0, %v1738
    %1740 = vmatmul.bf16.gmra.mxu0 %v888
    %v1741 = vpop.f32.mrf.mxu0
    %v1742 = vadd.f32 0.0, %v1741
    %v1743 = vpop.f32.mrf.mxu0
    %v1744 = vadd.f32 0.0, %v1743
    %1745 = vdwg.mxu0
    %1746 = vmatpush.bf16.msra.mxu0 %v1501
    %1747 = vmatpush.bf16.msra.mxu0 %v1499
    %1748 = vmatpush.bf16.msra.mxu0 %v1497
    %1749 = vmatpush.bf16.msra.mxu0 %v1495
    %1750 = vmatpush.bf16.msra.mxu0 %v1493
    %1751 = vmatpush.bf16.msra.mxu0 %v1491
    %1752 = vmatpush.bf16.msra.mxu0 %v1489
    %1753 = vmatpush.bf16.msra.mxu0 %v1487
    %1754 = vmatmul.bf16.gmra.mxu0 %v887
    %v1755 = vpop.f32.mrf.mxu0
    %v1756 = vadd.f32 %v1737, %v1755
    %v1757 = vpop.f32.mrf.mxu0
    %v1758 = vadd.f32 %v1739, %v1757
    %1759 = vmatmul.bf16.gmra.mxu0 %v889
    %v1760 = vpop.f32.mrf.mxu0
    %v1761 = vadd.f32 %v1742, %v1760
    %v1762 = vpop.f32.mrf.mxu0
    %v1763 = vadd.f32 %v1744, %v1762
    %1764 = vdwg.mxu0
    %1765 = vmatpush.bf16.msra.mxu0 %v1517
    %1766 = vmatpush.bf16.msra.mxu0 %v1515
    %1767 = vmatpush.bf16.msra.mxu0 %v1513
    %1768 = vmatpush.bf16.msra.mxu0 %v1511
    %1769 = vmatpush.bf16.msra.mxu0 %v1509
    %1770 = vmatpush.bf16.msra.mxu0 %v1507
    %1771 = vmatpush.bf16.msra.mxu0 %v1505
    %1772 = vmatpush.bf16.msra.mxu0 %v1503
    %1773 = vmatmul.bf16.gmra.mxu0 %v917
    %v1774 = vpop.f32.mrf.mxu0
    %v1775 = vadd.f32 %v1756, %v1774
    %v1776 = vpop.f32.mrf.mxu0
    %v1777 = vadd.f32 %v1758, %v1776
    %1778 = vmatmul.bf16.gmra.mxu0 %v922
    %v1779 = vpop.f32.mrf.mxu0
    %v1780 = vadd.f32 %v1761, %v1779
    %v1781 = vpop.f32.mrf.mxu0
    %v1782 = vadd.f32 %v1763, %v1781
    %1783 = vdwg.mxu0
    %1784 = vmatpush.bf16.msra.mxu0 %v1533
    %1785 = vmatpush.bf16.msra.mxu0 %v1531
    %1786 = vmatpush.bf16.msra.mxu0 %v1529
    %1787 = vmatpush.bf16.msra.mxu0 %v1527
    %1788 = vmatpush.bf16.msra.mxu0 %v1525
    %1789 = vmatpush.bf16.msra.mxu0 %v1523
    %1790 = vmatpush.bf16.msra.mxu0 %v1521
    %1791 = vmatpush.bf16.msra.mxu0 %v1519
    %1792 = vmatmul.bf16.gmra.mxu0 %v920
    %v1793 = vpop.f32.mrf.mxu0
    %v1794 = vadd.f32 %v1775, %v1793
    %v1795 = vpop.f32.mrf.mxu0
    %v1796 = vadd.f32 %v1777, %v1795
    %1797 = vmatmul.bf16.gmra.mxu0 %v924
    %v1798 = vpop.f32.mrf.mxu0
    %v1799 = vadd.f32 %v1780, %v1798
    %v1800 = vpop.f32.mrf.mxu0
    %v1801 = vadd.f32 %v1782, %v1800
    %1802 = vdwg.mxu0
    %1803 = vmatpush.bf16.msra.mxu0 %v1549
    %1804 = vmatpush.bf16.msra.mxu0 %v1547
    %1805 = vmatpush.bf16.msra.mxu0 %v1545
    %1806 = vmatpush.bf16.msra.mxu0 %v1543
    %1807 = vmatpush.bf16.msra.mxu0 %v1541
    %1808 = vmatpush.bf16.msra.mxu0 %v1539
    %1809 = vmatpush.bf16.msra.mxu0 %v1537
    %1810 = vmatpush.bf16.msra.mxu0 %v1535
    %1811 = vmatmul.bf16.gmra.mxu0 %v933
    %v1812 = vpop.f32.mrf.mxu0
    %v1813 = vadd.f32 %v1794, %v1812
    %v1814 = vpop.f32.mrf.mxu0
    %v1815 = vadd.f32 %v1796, %v1814
    %1816 = vmatmul.bf16.gmra.mxu0 %v938
    %v1817 = vpop.f32.mrf.mxu0
    %v1818 = vadd.f32 %v1799, %v1817
    %v1819 = vpop.f32.mrf.mxu0
    %v1820 = vadd.f32 %v1801, %v1819
    %1821 = vdwg.mxu0
    %1822 = vmatpush.bf16.msra.mxu0 %v1565
    %1823 = vmatpush.bf16.msra.mxu0 %v1563
    %1824 = vmatpush.bf16.msra.mxu0 %v1561
    %1825 = vmatpush.bf16.msra.mxu0 %v1559
    %1826 = vmatpush.bf16.msra.mxu0 %v1557
    %1827 = vmatpush.bf16.msra.mxu0 %v1555
    %1828 = vmatpush.bf16.msra.mxu0 %v1553
    %1829 = vmatpush.bf16.msra.mxu0 %v1551
    %1830 = vmatmul.bf16.gmra.mxu0 %v936
    %v1831 = vpop.f32.mrf.mxu0
    %v1832 = vadd.f32 %v1813, %v1831
    %v1833 = vpop.f32.mrf.mxu0
    %v1834 = vadd.f32 %v1815, %v1833
    %1835 = vmatmul.bf16.gmra.mxu0 %v940
    %v1836 = vpop.f32.mrf.mxu0
    %v1837 = vadd.f32 %v1818, %v1836
    %v1838 = vpop.f32.mrf.mxu0
    %v1839 = vadd.f32 %v1820, %v1838
    %1840 = vdwg.mxu0
    %1841 = vmatpush.bf16.msra.mxu0 %v1581
    %1842 = vmatpush.bf16.msra.mxu0 %v1579
    %1843 = vmatpush.bf16.msra.mxu0 %v1577
    %1844 = vmatpush.bf16.msra.mxu0 %v1575
    %1845 = vmatpush.bf16.msra.mxu0 %v1573
    %1846 = vmatpush.bf16.msra.mxu0 %v1571
    %1847 = vmatpush.bf16.msra.mxu0 %v1569
    %1848 = vmatpush.bf16.msra.mxu0 %v1567
    %1849 = vmatmul.bf16.gmra.mxu0 %v947
    %v1850 = vpop.f32.mrf.mxu0
    %v1851 = vadd.f32 %v1832, %v1850
    %v1852 = vpop.f32.mrf.mxu0
    %v1853 = vadd.f32 %v1834, %v1852
    %1854 = vmatmul.bf16.gmra.mxu0 %v952
    %v1855 = vpop.f32.mrf.mxu0
    %v1856 = vadd.f32 %v1837, %v1855
    %v1857 = vpop.f32.mrf.mxu0
    %v1858 = vadd.f32 %v1839, %v1857
    %1859 = vdwg.mxu0
    %1860 = vmatpush.bf16.msra.mxu0 %v1597
    %1861 = vmatpush.bf16.msra.mxu0 %v1595
    %1862 = vmatpush.bf16.msra.mxu0 %v1593
    %1863 = vmatpush.bf16.msra.mxu0 %v1591
    %1864 = vmatpush.bf16.msra.mxu0 %v1589
    %1865 = vmatpush.bf16.msra.mxu0 %v1587
    %1866 = vmatpush.bf16.msra.mxu0 %v1585
    %1867 = vmatpush.bf16.msra.mxu0 %v1583
    %1868 = vmatmul.bf16.gmra.mxu0 %v950
    %v1869 = vpop.f32.mrf.mxu0
    %v1870 = vadd.f32 %v1851, %v1869
    %v1871 = vpop.f32.mrf.mxu0
    %v1872 = vadd.f32 %v1853, %v1871
    %1873 = vmatmul.bf16.gmra.mxu0 %v954
    %v1874 = vpop.f32.mrf.mxu0
    %v1875 = vadd.f32 %v1856, %v1874
    %v1876 = vpop.f32.mrf.mxu0
    %v1877 = vadd.f32 %v1858, %v1876
    %1878 = vdwg.mxu0
    %1879 = vmatpush.bf16.msra.mxu0 %v1486
    %1880 = vmatpush.bf16.msra.mxu0 %v1484
    %1881 = vmatpush.bf16.msra.mxu0 %v1482
    %1882 = vmatpush.bf16.msra.mxu0 %v1480
    %1883 = vmatpush.bf16.msra.mxu0 %v1478
    %1884 = vmatpush.bf16.msra.mxu0 %v1476
    %1885 = vmatpush.bf16.msra.mxu0 %v1474
    %1886 = vmatpush.bf16.msra.mxu0 %v1472
    %1887 = vmatmul.bf16.gmra.mxu0 %v886
    %v1888 = vpop.f32.mrf.mxu0
    %v1889 = vadd.f32 0.0, %v1888
    %v1890 = vpop.f32.mrf.mxu0
    %v1891 = vadd.f32 0.0, %v1890
    %1892 = vmatmul.bf16.gmra.mxu0 %v888
    %v1893 = vpop.f32.mrf.mxu0
    %v1894 = vadd.f32 0.0, %v1893
    %v1895 = vpop.f32.mrf.mxu0
    %v1896 = vadd.f32 0.0, %v1895
    %1897 = vdwg.mxu0
    %1898 = vmatpush.bf16.msra.mxu0 %v1502
    %1899 = vmatpush.bf16.msra.mxu0 %v1500
    %1900 = vmatpush.bf16.msra.mxu0 %v1498
    %1901 = vmatpush.bf16.msra.mxu0 %v1496
    %1902 = vmatpush.bf16.msra.mxu0 %v1494
    %1903 = vmatpush.bf16.msra.mxu0 %v1492
    %1904 = vmatpush.bf16.msra.mxu0 %v1490
    %1905 = vmatpush.bf16.msra.mxu0 %v1488
    %1906 = vmatmul.bf16.gmra.mxu0 %v887
    %v1907 = vpop.f32.mrf.mxu0
    %v1908 = vadd.f32 %v1889, %v1907
    %v1909 = vpop.f32.mrf.mxu0
    %v1910 = vadd.f32 %v1891, %v1909
    %1911 = vmatmul.bf16.gmra.mxu0 %v889
    %v1912 = vpop.f32.mrf.mxu0
    %v1913 = vadd.f32 %v1894, %v1912
    %v1914 = vpop.f32.mrf.mxu0
    %v1915 = vadd.f32 %v1896, %v1914
    %1916 = vdwg.mxu0
    %1917 = vmatpush.bf16.msra.mxu0 %v1518
    %1918 = vmatpush.bf16.msra.mxu0 %v1516
    %1919 = vmatpush.bf16.msra.mxu0 %v1514
    %1920 = vmatpush.bf16.msra.mxu0 %v1512
    %1921 = vmatpush.bf16.msra.mxu0 %v1510
    %1922 = vmatpush.bf16.msra.mxu0 %v1508
    %1923 = vmatpush.bf16.msra.mxu0 %v1506
    %1924 = vmatpush.bf16.msra.mxu0 %v1504
    %1925 = vmatmul.bf16.gmra.mxu0 %v917
    %v1926 = vpop.f32.mrf.mxu0
    %v1927 = vadd.f32 %v1908, %v1926
    %v1928 = vpop.f32.mrf.mxu0
    %v1929 = vadd.f32 %v1910, %v1928
    %1930 = vmatmul.bf16.gmra.mxu0 %v922
    %v1931 = vpop.f32.mrf.mxu0
    %v1932 = vadd.f32 %v1913, %v1931
    %v1933 = vpop.f32.mrf.mxu0
    %v1934 = vadd.f32 %v1915, %v1933
    %1935 = vdwg.mxu0
    %1936 = vmatpush.bf16.msra.mxu0 %v1534
    %1937 = vmatpush.bf16.msra.mxu0 %v1532
    %1938 = vmatpush.bf16.msra.mxu0 %v1530
    %1939 = vmatpush.bf16.msra.mxu0 %v1528
    %1940 = vmatpush.bf16.msra.mxu0 %v1526
    %1941 = vmatpush.bf16.msra.mxu0 %v1524
    %1942 = vmatpush.bf16.msra.mxu0 %v1522
    %1943 = vmatpush.bf16.msra.mxu0 %v1520
    %1944 = vmatmul.bf16.gmra.mxu0 %v920
    %v1945 = vpop.f32.mrf.mxu0
    %v1946 = vadd.f32 %v1927, %v1945
    %v1947 = vpop.f32.mrf.mxu0
    %v1948 = vadd.f32 %v1929, %v1947
    %1949 = vmatmul.bf16.gmra.mxu0 %v924
    %v1950 = vpop.f32.mrf.mxu0
    %v1951 = vadd.f32 %v1932, %v1950
    %v1952 = vpop.f32.mrf.mxu0
    %v1953 = vadd.f32 %v1934, %v1952
    %1954 = vdwg.mxu0
    %1955 = vmatpush.bf16.msra.mxu0 %v1550
    %1956 = vmatpush.bf16.msra.mxu0 %v1548
    %1957 = vmatpush.bf16.msra.mxu0 %v1546
    %1958 = vmatpush.bf16.msra.mxu0 %v1544
    %1959 = vmatpush.bf16.msra.mxu0 %v1542
    %1960 = vmatpush.bf16.msra.mxu0 %v1540
    %1961 = vmatpush.bf16.msra.mxu0 %v1538
    %1962 = vmatpush.bf16.msra.mxu0 %v1536
    %1963 = vmatmul.bf16.gmra.mxu0 %v933
    %v1964 = vpop.f32.mrf.mxu0
    %v1965 = vadd.f32 %v1946, %v1964
    %v1966 = vpop.f32.mrf.mxu0
    %v1967 = vadd.f32 %v1948, %v1966
    %1968 = vmatmul.bf16.gmra.mxu0 %v938
    %v1969 = vpop.f32.mrf.mxu0
    %v1970 = vadd.f32 %v1951, %v1969
    %v1971 = vpop.f32.mrf.mxu0
    %v1972 = vadd.f32 %v1953, %v1971
    %1973 = vdwg.mxu0
    %1974 = vmatpush.bf16.msra.mxu0 %v1566
    %1975 = vmatpush.bf16.msra.mxu0 %v1564
    %1976 = vmatpush.bf16.msra.mxu0 %v1562
    %1977 = vmatpush.bf16.msra.mxu0 %v1560
    %1978 = vmatpush.bf16.msra.mxu0 %v1558
    %1979 = vmatpush.bf16.msra.mxu0 %v1556
    %1980 = vmatpush.bf16.msra.mxu0 %v1554
    %1981 = vmatpush.bf16.msra.mxu0 %v1552
    %1982 = vmatmul.bf16.gmra.mxu0 %v936
    %v1983 = vpop.f32.mrf.mxu0
    %v1984 = vadd.f32 %v1965, %v1983
    %v1985 = vpop.f32.mrf.mxu0
    %v1986 = vadd.f32 %v1967, %v1985
    %1987 = vmatmul.bf16.gmra.mxu0 %v940
    %v1988 = vpop.f32.mrf.mxu0
    %v1989 = vadd.f32 %v1970, %v1988
    %v1990 = vpop.f32.mrf.mxu0
    %v1991 = vadd.f32 %v1972, %v1990
    %1992 = vdwg.mxu0
    %1993 = vmatpush.bf16.msra.mxu0 %v1582
    %1994 = vmatpush.bf16.msra.mxu0 %v1580
    %1995 = vmatpush.bf16.msra.mxu0 %v1578
    %1996 = vmatpush.bf16.msra.mxu0 %v1576
    %1997 = vmatpush.bf16.msra.mxu0 %v1574
    %1998 = vmatpush.bf16.msra.mxu0 %v1572
    %1999 = vmatpush.bf16.msra.mxu0 %v1570
    %2000 = vmatpush.bf16.msra.mxu0 %v1568
    %2001 = vmatmul.bf16.gmra.mxu0 %v947
    %v2002 = vpop.f32.mrf.mxu0
    %v2003 = vadd.f32 %v1984, %v2002
    %v2004 = vpop.f32.mrf.mxu0
    %v2005 = vadd.f32 %v1986, %v2004
    %2006 = vmatmul.bf16.gmra.mxu0 %v952
    %v2007 = vpop.f32.mrf.mxu0
    %v2008 = vadd.f32 %v1989, %v2007
    %v2009 = vpop.f32.mrf.mxu0
    %v2010 = vadd.f32 %v1991, %v2009
    %2011 = vdwg.mxu0
    %2012 = vmatpush.bf16.msra.mxu0 %v1598
    %2013 = vmatpush.bf16.msra.mxu0 %v1596
    %2014 = vmatpush.bf16.msra.mxu0 %v1594
    %2015 = vmatpush.bf16.msra.mxu0 %v1592
    %2016 = vmatpush.bf16.msra.mxu0 %v1590
    %2017 = vmatpush.bf16.msra.mxu0 %v1588
    %2018 = vmatpush.bf16.msra.mxu0 %v1586
    %2019 = vmatpush.bf16.msra.mxu0 %v1584
    %2020 = vmatmul.bf16.gmra.mxu0 %v950
    %v2021 = vpop.f32.mrf.mxu0
    %v2022 = vadd.f32 %v2003, %v2021
    %v2023 = vpop.f32.mrf.mxu0
    %v2024 = vadd.f32 %v2005, %v2023
    %2025 = vmatmul.bf16.gmra.mxu0 %v954
    %v2026 = vpop.f32.mrf.mxu0
    %v2027 = vadd.f32 %v2008, %v2026
    %v2028 = vpop.f32.mrf.mxu0
    %v2029 = vadd.f32 %v2010, %v2028
    %2030 = vdwg.mxu0
    %v2031 = vld [vmem:[#allocation10] sm:$0xff]
    %v2032 = vld [vmem:[#allocation10 + $0x8] sm:$0xff]
    %v2033 = vld [vmem:[#allocation10 + $0x10] sm:$0xff]
    %v2034 = vld [vmem:[#allocation10 + $0x18] sm:$0xff]
    %v2035 = vld [vmem:[#allocation10 + $0x20] sm:$0xff]
    %v2036 = vld [vmem:[#allocation10 + $0x28] sm:$0xff]
    %v2037 = vld [vmem:[#allocation10 + $0x30] sm:$0xff]
    %v2038 = vld [vmem:[#allocation10 + $0x38] sm:$0xff]
    %v2039 = vld [vmem:[#allocation10 + $0x40] sm:$0xff]
    %v2040 = vld [vmem:[#allocation10 + $0x48] sm:$0xff]
    %v2041 = vld [vmem:[#allocation10 + $0x50] sm:$0xff]
    %v2042 = vld [vmem:[#allocation10 + $0x58] sm:$0xff]
    %v2043 = vld [vmem:[#allocation10 + $0x60] sm:$0xff]
    %v2044 = vld [vmem:[#allocation10 + $0x68] sm:$0xff]
    %v2045 = vld [vmem:[#allocation10 + $0x70] sm:$0xff]
    %v2046 = vld [vmem:[#allocation10 + $0x78] sm:$0xff]
    %v2047 = vld [vmem:[#allocation10 + $0x80] sm:$0xff]
    %v2048 = vld [vmem:[#allocation10 + $0x88] sm:$0xff]
    %v2049 = vld [vmem:[#allocation10 + $0x90] sm:$0xff]
    %v2050 = vld [vmem:[#allocation10 + $0x98] sm:$0xff]
    %v2051 = vld [vmem:[#allocation10 + $0xa0] sm:$0xff]
    %v2052 = vld [vmem:[#allocation10 + $0xa8] sm:$0xff]
    %v2053 = vld [vmem:[#allocation10 + $0xb0] sm:$0xff]
    %v2054 = vld [vmem:[#allocation10 + $0xb8] sm:$0xff]
    %v2055 = vld [vmem:[#allocation10 + $0xc0] sm:$0xff]
    %v2056 = vld [vmem:[#allocation10 + $0xc8] sm:$0xff]
    %v2057 = vld [vmem:[#allocation10 + $0xd0] sm:$0xff]
    %v2058 = vld [vmem:[#allocation10 + $0xd8] sm:$0xff]
    %v2059 = vld [vmem:[#allocation10 + $0xe0] sm:$0xff]
    %v2060 = vld [vmem:[#allocation10 + $0xe8] sm:$0xff]
    %v2061 = vld [vmem:[#allocation10 + $0xf0] sm:$0xff]
    %v2062 = vld [vmem:[#allocation10 + $0xf8] sm:$0xff]
    %v2063 = vld [vmem:[#allocation10 + $0x100] sm:$0xff]
    %v2064 = vld [vmem:[#allocation10 + $0x108] sm:$0xff]
    %v2065 = vld [vmem:[#allocation10 + $0x110] sm:$0xff]
    %v2066 = vld [vmem:[#allocation10 + $0x118] sm:$0xff]
    %v2067 = vld [vmem:[#allocation10 + $0x120] sm:$0xff]
    %v2068 = vld [vmem:[#allocation10 + $0x128] sm:$0xff]
    %v2069 = vld [vmem:[#allocation10 + $0x130] sm:$0xff]
    %v2070 = vld [vmem:[#allocation10 + $0x138] sm:$0xff]
    %v2071 = vld [vmem:[#allocation10 + $0x140] sm:$0xff]
    %v2072 = vld [vmem:[#allocation10 + $0x148] sm:$0xff]
    %v2073 = vld [vmem:[#allocation10 + $0x150] sm:$0xff]
    %v2074 = vld [vmem:[#allocation10 + $0x158] sm:$0xff]
    %v2075 = vld [vmem:[#allocation10 + $0x160] sm:$0xff]
    %v2076 = vld [vmem:[#allocation10 + $0x168] sm:$0xff]
    %v2077 = vld [vmem:[#allocation10 + $0x170] sm:$0xff]
    %v2078 = vld [vmem:[#allocation10 + $0x178] sm:$0xff]
    %v2079 = vld [vmem:[#allocation10 + $0x180] sm:$0xff]
    %v2080 = vld [vmem:[#allocation10 + $0x188] sm:$0xff]
    %v2081 = vld [vmem:[#allocation10 + $0x190] sm:$0xff]
    %v2082 = vld [vmem:[#allocation10 + $0x198] sm:$0xff]
    %v2083 = vld [vmem:[#allocation10 + $0x1a0] sm:$0xff]
    %v2084 = vld [vmem:[#allocation10 + $0x1a8] sm:$0xff]
    %v2085 = vld [vmem:[#allocation10 + $0x1b0] sm:$0xff]
    %v2086 = vld [vmem:[#allocation10 + $0x1b8] sm:$0xff]
    %v2087 = vld [vmem:[#allocation10 + $0x1c0] sm:$0xff]
    %v2088 = vld [vmem:[#allocation10 + $0x1c8] sm:$0xff]
    %v2089 = vld [vmem:[#allocation10 + $0x1d0] sm:$0xff]
    %v2090 = vld [vmem:[#allocation10 + $0x1d8] sm:$0xff]
    %v2091 = vld [vmem:[#allocation10 + $0x1e0] sm:$0xff]
    %v2092 = vld [vmem:[#allocation10 + $0x1e8] sm:$0xff]
    %v2093 = vld [vmem:[#allocation10 + $0x1f0] sm:$0xff]
    %v2094 = vld [vmem:[#allocation10 + $0x1f8] sm:$0xff]
    %v2095 = vld [vmem:[#allocation11] sm:$0xf]
    %v2096 = vadd.f32 %v1870, %v1872
    %v2097 = vadd.f32 %v2096, %v1875
    %v2098 = vadd.f32 %v2097, %v1877
    %v2099 = vrot.slane %v2098, 4
    %v2100 = vadd.f32 %v2098, %v2099
    %v2101 = vrot.slane %v2100, 2
    %v2102 = vadd.f32 %v2100, %v2101
    %v2103 = vrot.slane %v2102, 1
    %v2104 = vadd.f32 %v2102, %v2103
    %v2105 = vadd.f32 %v2022, %v2024
    %v2106 = vadd.f32 %v2105, %v2027
    %v2107 = vadd.f32 %v2106, %v2029
    %v2108 = vrot.slane %v2107, 4
    %v2109 = vadd.f32 %v2107, %v2108
    %v2110 = vrot.slane %v2109, 2
    %v2111 = vadd.f32 %v2109, %v2110
    %v2112 = vrot.slane %v2111, 1
    %v2113 = vadd.f32 %v2111, %v2112
    %v2114 = vmul.f32 %v1870, %v1870
    %v2115 = vmul.f32 %v2022, %v2022
    %v2116 = vmul.f32 %v1872, %v1872
    %v2117 = vmul.f32 %v2024, %v2024
    %v2118 = vmul.f32 %v1875, %v1875
    %v2119 = vmul.f32 %v2027, %v2027
    %v2120 = vmul.f32 %v1877, %v1877
    %v2121 = vmul.f32 %v2029, %v2029
    %v2122 = vadd.f32 %v2114, %v2116
    %v2123 = vadd.f32 %v2122, %v2118
    %v2124 = vadd.f32 %v2123, %v2120
    %v2125 = vrot.slane %v2124, 4
    %v2126 = vadd.f32 %v2124, %v2125
    %v2127 = vrot.slane %v2126, 2
    %v2128 = vadd.f32 %v2126, %v2127
    %v2129 = vrot.slane %v2128, 1
    %v2130 = vadd.f32 %v2128, %v2129
    %v2131 = vadd.f32 %v2115, %v2117
    %v2132 = vadd.f32 %v2131, %v2119
    %v2133 = vadd.f32 %v2132, %v2121
    %v2134 = vrot.slane %v2133, 4
    %v2135 = vadd.f32 %v2133, %v2134
    %v2136 = vrot.slane %v2135, 2
    %v2137 = vadd.f32 %v2135, %v2136
    %v2138 = vrot.slane %v2137, 1
    %v2139 = vadd.f32 %v2137, %v2138
    %vm2140 = vcmask 1040384
    %v2141 = vsel %vm2140, %v2104, %v2130
    %v2142 = vsel %vm2140, %v2113, %v2139
    %2143 = vmatpush.msra.mxu0 %v2061
    %2144 = vmatpush.msra.mxu0 %v2059
    %2145 = vmatpush.msra.mxu0 %v2057
    %2146 = vmatpush.msra.mxu0 %v2055
    %2147 = vmatpush.msra.mxu0 %v2053
    %2148 = vmatpush.msra.mxu0 %v2051
    %2149 = vmatpush.msra.mxu0 %v2049
    %2150 = vmatpush.msra.mxu0 %v2047
    %2151 = vmatpush.msra.mxu0 %v2045
    %2152 = vmatpush.msra.mxu0 %v2043
    %2153 = vmatpush.msra.mxu0 %v2041
    %2154 = vmatpush.msra.mxu0 %v2039
    %2155 = vmatpush.msra.mxu0 %v2037
    %2156 = vmatpush.msra.mxu0 %v2035
    %2157 = vmatpush.msra.mxu0 %v2033
    %2158 = vmatpush.msra.mxu0 %v2031
    %2159 = vmatmul.f32.gmra.mxu0 %v2141
    %v2160 = vpop.f32.mrf.mxu0
    %v2161 = vadd.f32 0.0, %v2160
    %2162 = vdwg.mxu0
    %2163 = vmatpush.msra.mxu0 %v2093
    %2164 = vmatpush.msra.mxu0 %v2091
    %2165 = vmatpush.msra.mxu0 %v2089
    %2166 = vmatpush.msra.mxu0 %v2087
    %2167 = vmatpush.msra.mxu0 %v2085
    %2168 = vmatpush.msra.mxu0 %v2083
    %2169 = vmatpush.msra.mxu0 %v2081
    %2170 = vmatpush.msra.mxu0 %v2079
    %2171 = vmatpush.msra.mxu0 %v2077
    %2172 = vmatpush.msra.mxu0 %v2075
    %2173 = vmatpush.msra.mxu0 %v2073
    %2174 = vmatpush.msra.mxu0 %v2071
    %2175 = vmatpush.msra.mxu0 %v2069
    %2176 = vmatpush.msra.mxu0 %v2067
    %2177 = vmatpush.msra.mxu0 %v2065
    %2178 = vmatpush.msra.mxu0 %v2063
    %2179 = vmatmul.f32.gmra.mxu0 %v2142
    %v2180 = vpop.f32.mrf.mxu0
    %v2181 = vadd.f32 %v2161, %v2180
    %2182 = vdwg.mxu0
    %2183 = vmatpush.msra.mxu0 %v2062
    %2184 = vmatpush.msra.mxu0 %v2060
    %2185 = vmatpush.msra.mxu0 %v2058
    %2186 = vmatpush.msra.mxu0 %v2056
    %2187 = vmatpush.msra.mxu0 %v2054
    %2188 = vmatpush.msra.mxu0 %v2052
    %2189 = vmatpush.msra.mxu0 %v2050
    %2190 = vmatpush.msra.mxu0 %v2048
    %2191 = vmatpush.msra.mxu0 %v2046
    %2192 = vmatpush.msra.mxu0 %v2044
    %2193 = vmatpush.msra.mxu0 %v2042
    %2194 = vmatpush.msra.mxu0 %v2040
    %2195 = vmatpush.msra.mxu0 %v2038
    %2196 = vmatpush.msra.mxu0 %v2036
    %2197 = vmatpush.msra.mxu0 %v2034
    %2198 = vmatpush.msra.mxu0 %v2032
    %2199 = vmatmul.f32.gmra.mxu0 %v2141
    %v2200 = vpop.f32.mrf.mxu0
    %v2201 = vadd.f32 0.0, %v2200
    %2202 = vdwg.mxu0
    %2203 = vmatpush.msra.mxu0 %v2094
    %2204 = vmatpush.msra.mxu0 %v2092
    %2205 = vmatpush.msra.mxu0 %v2090
    %2206 = vmatpush.msra.mxu0 %v2088
    %2207 = vmatpush.msra.mxu0 %v2086
    %2208 = vmatpush.msra.mxu0 %v2084
    %2209 = vmatpush.msra.mxu0 %v2082
    %2210 = vmatpush.msra.mxu0 %v2080
    %2211 = vmatpush.msra.mxu0 %v2078
    %2212 = vmatpush.msra.mxu0 %v2076
    %2213 = vmatpush.msra.mxu0 %v2074
    %2214 = vmatpush.msra.mxu0 %v2072
    %2215 = vmatpush.msra.mxu0 %v2070
    %2216 = vmatpush.msra.mxu0 %v2068
    %2217 = vmatpush.msra.mxu0 %v2066
    %2218 = vmatpush.msra.mxu0 %v2064
    %2219 = vmatmul.f32.gmra.mxu0 %v2142
    %v2220 = vpop.f32.mrf.mxu0
    %v2221 = vadd.f32 %v2201, %v2220
    %2222 = vdwg.mxu0
    %v2223 = vmul.f32 %v2181, %v2181
    %v2224 = vmul.f32 %v2221, %v2221
    %v2227 = vrot.slane %v2223, 7
    %v2228 = vrot.slane %v2224, 7
    %v2231 = vsub.f32 %v2181, %v2227
    %v2232 = vsub.f32 %v2221, %v2228
    %v2233 = vmax.f32 %v2231, 0.0
    %v2234 = vmax.f32 %v2232, 0.0
    %v2235 = vadd.f32 %v2233, 1e-05
    %v2236 = vadd.f32 %v2234, 1e-05
    %v2237 = vrsqrt.pop %v2235
    %v2238 = vmul.f32 %v2237, %v2235
    %v2239 = vmul.f32 %v2238, %v2237
    %v2240 = vmul.f32 0.5, %v2239
    %v2241 = vsub.f32 1.5, %v2240
    %v2242 = vmul.f32 %v2237, %v2241
    %vm2243 = vweird.f32 %v2235
    %vm2244 = vweird.f32 %v2237
    %vm2245 = vmor %vm2243, %vm2244
    %v2246 = vsel %vm2245, %v2237, %v2242
    %v2247 = vrsqrt.pop %v2236
    %v2248 = vmul.f32 %v2247, %v2236
    %v2249 = vmul.f32 %v2248, %v2247
    %v2250 = vmul.f32 0.5, %v2249
    %v2251 = vsub.f32 1.5, %v2250
    %v2252 = vmul.f32 %v2247, %v2251
    %vm2253 = vweird.f32 %v2236
    %vm2254 = vweird.f32 %v2247
    %vm2255 = vmor %vm2253, %vm2254
    %v2256 = vsel %vm2255, %v2247, %v2252
    %v2259 = vrot.slane %v2256, 6
    %vm2260 = vcmask 1041408
    %v2261 = vsel %vm2260, %v2246, %v2259
    %v2262 = vrot.slane %v2261, 7
    %v2263 = vrot.slane %v2262, 2
    %v2265 = vmul.f32 %v2095, %v2263
    %v2267 = vperm.slane %v2265, 0
    %v2268 = vperm.slane %v2265, 2
    %v2271 = vmul.f32 %v2181, %v2267
    %v2272 = vmul.f32 %v2221, %v2268
    %v2275 = vrot.slane %v2272, 6
    %v2276 = vsel %vm2260, %v2271, %v2275
    %v2277 = vrot.slane %v2276, 7
    %v2279 = vsub.f32 %v2095, %v2277
    %v2280 = vperm.slane %v2267, 0
    %v2281 = vperm.slane %v2268, 0
    %v2282 = vmul.f32 %v1870, %v2280
    %v2283 = vmul.f32 %v2022, %v2281
    %v2284 = vmul.f32 %v1872, %v2280
    %v2285 = vmul.f32 %v2024, %v2281
    %v2286 = vmul.f32 %v1875, %v2280
    %v2287 = vmul.f32 %v2027, %v2281
    %v2288 = vmul.f32 %v1877, %v2280
    %v2289 = vmul.f32 %v2029, %v2281
    %v2291 = vperm.slane %v2279, 1
    %v2292 = vperm.slane %v2279, 3
    %v2295 = vperm.slane %v2291, 1
    %v2296 = vperm.slane %v2292, 1
    %v2297 = vadd.f32 %v2282, %v2295
    %v2298 = vadd.f32 %v2283, %v2296
    %v2299 = vadd.f32 %v2284, %v2295
    %v2300 = vadd.f32 %v2285, %v2296
    %v2301 = vadd.f32 %v2286, %v2295
    %v2302 = vadd.f32 %v2287, %v2296
    %v2303 = vadd.f32 %v2288, %v2295
    %v2304 = vadd.f32 %v2289, %v2296
    %vm2305 = vcmp.ge.f32.partialorder %v2297, 0.0
    %vm2306 = vcmp.ge.f32.partialorder %v2298, 0.0
    %vm2307 = vcmp.ge.f32.partialorder %v2299, 0.0
    %vm2308 = vcmp.ge.f32.partialorder %v2300, 0.0
    %vm2309 = vcmp.ge.f32.partialorder %v2301, 0.0
    %vm2310 = vcmp.ge.f32.partialorder %v2302, 0.0
    %vm2311 = vcmp.ge.f32.partialorder %v2303, 0.0
    %vm2312 = vcmp.ge.f32.partialorder %v2304, 0.0
    %v2313 = vmul.f32 %v2297, 0.2
    %v2314 = vmul.f32 %v2298, 0.2
    %v2315 = vmul.f32 %v2299, 0.2
    %v2316 = vmul.f32 %v2300, 0.2
    %v2317 = vmul.f32 %v2301, 0.2
    %v2318 = vmul.f32 %v2302, 0.2
    %v2319 = vmul.f32 %v2303, 0.2
    %v2320 = vmul.f32 %v2304, 0.2
    %v2321 = vsel %vm2305, %v2297, %v2313
    %v2322 = vsel %vm2306, %v2298, %v2314
    %v2323 = vsel %vm2307, %v2299, %v2315
    %v2324 = vsel %vm2308, %v2300, %v2316
    %v2325 = vsel %vm2309, %v2301, %v2317
    %v2326 = vsel %vm2310, %v2302, %v2318
    %v2327 = vsel %vm2311, %v2303, %v2319
    %v2328 = vsel %vm2312, %v2304, %v2320
    %vm2329 = vcmask 261120
    %v2331 = vsel %vm2329, %v163, 0
    %v2334 = vsel %vm2329, %v164, 0
    %v2337 = vsel %vm2329, %v165, 0
    %v2340 = vsel %vm2329, %v166, 0
    %v2343 = vsel %vm2329, %v167, 0
    %2345 = vmatpush.msra.mxu0 0.0
    %2346 = vmatpush.msra.mxu0 0.0
    %2347 = vmatpush.msra.mxu0 0.0
    %2348 = vmatpush.msra.mxu0 0.0
    %2349 = vmatpush.msra.mxu0 0.0
    %2350 = vmatpush.msra.mxu0 0.0
    %2351 = vmatpush.msra.mxu0 0.0
    %2352 = vmatpush.msra.mxu0 0.0
    %2353 = vmatpush.msra.mxu0 0.0
    %2354 = vmatpush.msra.mxu0 0.0
    %2355 = vmatpush.msra.mxu0 0.0
    %2356 = vmatpush.msra.mxu0 0.0
    %2357 = vmatpush.msra.mxu0 %v2327
    %2358 = vmatpush.msra.mxu0 %v2325
    %2359 = vmatpush.msra.mxu0 %v2323
    %2360 = vmatpush.msra.mxu0 %v2321
    %2361 = vmatmul.f32.gmra.mxu0 %v2331
    %v2362 = vpop.f32.mrf.mxu0
    %v2363 = vadd.f32 0.0, %v2362
    %2364 = vmatmul.f32.gmra.mxu0 %v2334
    %v2365 = vpop.f32.mrf.mxu0
    %v2366 = vadd.f32 0.0, %v2365
    %2367 = vmatmul.f32.gmra.mxu0 %v2337
    %v2368 = vpop.f32.mrf.mxu0
    %v2369 = vadd.f32 0.0, %v2368
    %2370 = vmatmul.f32.gmra.mxu0 %v2340
    %v2371 = vpop.f32.mrf.mxu0
    %v2372 = vadd.f32 0.0, %v2371
    %2373 = vmatmul.f32.gmra.mxu0 %v2343
    %v2374 = vpop.f32.mrf.mxu0
    %v2375 = vadd.f32 0.0, %v2374
    %2376 = vdwg.mxu0
    %2377 = vmatpush.msra.mxu0 0.0
    %2378 = vmatpush.msra.mxu0 0.0
    %2379 = vmatpush.msra.mxu0 0.0
    %2380 = vmatpush.msra.mxu0 0.0
    %2381 = vmatpush.msra.mxu0 0.0
    %2382 = vmatpush.msra.mxu0 0.0
    %2383 = vmatpush.msra.mxu0 0.0
    %2384 = vmatpush.msra.mxu0 0.0
    %2385 = vmatpush.msra.mxu0 0.0
    %2386 = vmatpush.msra.mxu0 0.0
    %2387 = vmatpush.msra.mxu0 0.0
    %2388 = vmatpush.msra.mxu0 0.0
    %2389 = vmatpush.msra.mxu0 %v2328
    %2390 = vmatpush.msra.mxu0 %v2326
    %2391 = vmatpush.msra.mxu0 %v2324
    %2392 = vmatpush.msra.mxu0 %v2322
    %2393 = vmatmul.f32.gmra.mxu0 %v2331
    %v2394 = vpop.f32.mrf.mxu0
    %v2395 = vadd.f32 0.0, %v2394
    %2396 = vmatmul.f32.gmra.mxu0 %v2334
    %v2397 = vpop.f32.mrf.mxu0
    %v2398 = vadd.f32 0.0, %v2397
    %2399 = vmatmul.f32.gmra.mxu0 %v2337
    %v2400 = vpop.f32.mrf.mxu0
    %v2401 = vadd.f32 0.0, %v2400
    %2402 = vmatmul.f32.gmra.mxu0 %v2340
    %v2403 = vpop.f32.mrf.mxu0
    %v2404 = vadd.f32 0.0, %v2403
    %2405 = vmatmul.f32.gmra.mxu0 %v2343
    %v2406 = vpop.f32.mrf.mxu0
    %v2407 = vadd.f32 0.0, %v2406
    %2408 = vdwg.mxu0
    %v2409 = vpack.c.bf16 %v2395, %v2363
    %v2410 = vpack.c.bf16 %v2398, %v2366
    %v2411 = vpack.c.bf16 %v2401, %v2369
    %v2412 = vpack.c.bf16 %v2404, %v2372
    %v2413 = vpack.c.bf16 %v2407, %v2375
    %v2416 = vunpack.c.l.b16 %v2409
    %v2417 = vunpack.c.h.b16 %v2409
    %v2418 = vunpack.c.l.b16 %v2410
    %v2419 = vunpack.c.h.b16 %v2410
    %v2420 = vpack.c.b16 %v2418, %v2416
    %v2421 = vpack.c.b16 %v2419, %v2417
    %v2427 = vunpack.c.l.b16 %v2411
    %v2428 = vunpack.c.h.b16 %v2411
    %v2429 = vunpack.c.l.b16 %v2412
    %v2430 = vunpack.c.h.b16 %v2412
    %v2431 = vunpack.c.l.b16 %v2413
    %v2432 = vunpack.c.h.b16 %v2413
    %v2433 = vpack.c.b16 %v2429, %v2427
    %v2434 = vpack.c.b16 %v2430, %v2428
    %v2435 = vpack.c.b16 %v2431, %v2431
    %v2436 = vpack.c.b16 %v2432, %v2432
    %v2437 = vrot.slane %v2433, 1
    %v2438 = vrot.slane %v2435, 1
    %v2439 = vsel %vm315, %v2437, %v2438
    %v2440 = vrot.slane %v2434, 1
    %v2441 = vrot.slane %v2436, 1
    %v2442 = vsel %vm315, %v2440, %v2441
    %v2445 = vpack.c.b16 %v2427, %v2427
    %v2446 = vpack.c.b16 %v2428, %v2428
    %v2447 = vrot.slane %v2420, 1
    %v2448 = vrot.slane %v2445, 1
    %v2449 = vsel %vm315, %v2447, %v2448
    %v2450 = vrot.slane %v2421, 1
    %v2451 = vrot.slane %v2446, 1
    %v2452 = vsel %vm315, %v2450, %v2451
    %v2455 = vrot.slane %v2433, 2
    %v2456 = vrot.slane %v2435, 2
    %v2457 = vsel %vm343, %v2455, %v2456
    %v2458 = vrot.slane %v2434, 2
    %v2459 = vrot.slane %v2436, 2
    %v2460 = vsel %vm343, %v2458, %v2459
    %s2463 = scalar_lea.vmem [#allocation8], 1024
    %v2464 = vld [vmem:[%s2463] sm:$0xff]
    %v2465 = vld [vmem:[%s2463 + $0x8] sm:$0xff]
    %v2466 = vld [vmem:[%s2463 + $0x10] sm:$0xff]
    %v2467 = vld [vmem:[%s2463 + $0x18] sm:$0xff]
    %v2468 = vld [vmem:[%s2463 + $0x20] sm:$0xff]
    %v2469 = vld [vmem:[%s2463 + $0x28] sm:$0xff]
    %v2470 = vld [vmem:[%s2463 + $0x30] sm:$0xff]
    %v2471 = vld [vmem:[%s2463 + $0x38] sm:$0xff]
    %v2472 = vld [vmem:[%s2463 + $0x40] sm:$0xff]
    %v2473 = vld [vmem:[%s2463 + $0x48] sm:$0xff]
    %v2474 = vld [vmem:[%s2463 + $0x50] sm:$0xff]
    %v2475 = vld [vmem:[%s2463 + $0x58] sm:$0xff]
    %v2476 = vld [vmem:[%s2463 + $0x60] sm:$0xff]
    %v2477 = vld [vmem:[%s2463 + $0x68] sm:$0xff]
    %v2478 = vld [vmem:[%s2463 + $0x70] sm:$0xff]
    %v2479 = vld [vmem:[%s2463 + $0x78] sm:$0xff]
    %v2480 = vld [vmem:[%s2463 + $0x80] sm:$0xff]
    %v2481 = vld [vmem:[%s2463 + $0x88] sm:$0xff]
    %v2482 = vld [vmem:[%s2463 + $0x90] sm:$0xff]
    %v2483 = vld [vmem:[%s2463 + $0x98] sm:$0xff]
    %v2484 = vld [vmem:[%s2463 + $0xa0] sm:$0xff]
    %v2485 = vld [vmem:[%s2463 + $0xa8] sm:$0xff]
    %v2486 = vld [vmem:[%s2463 + $0xb0] sm:$0xff]
    %v2487 = vld [vmem:[%s2463 + $0xb8] sm:$0xff]
    %v2488 = vld [vmem:[%s2463 + $0xc0] sm:$0xff]
    %v2489 = vld [vmem:[%s2463 + $0xc8] sm:$0xff]
    %v2490 = vld [vmem:[%s2463 + $0xd0] sm:$0xff]
    %v2491 = vld [vmem:[%s2463 + $0xd8] sm:$0xff]
    %v2492 = vld [vmem:[%s2463 + $0xe0] sm:$0xff]
    %v2493 = vld [vmem:[%s2463 + $0xe8] sm:$0xff]
    %v2494 = vld [vmem:[%s2463 + $0xf0] sm:$0xff]
    %v2495 = vld [vmem:[%s2463 + $0xf8] sm:$0xff]
    %v2496 = vld [vmem:[%s2463 + $0x100] sm:$0xff]
    %v2497 = vld [vmem:[%s2463 + $0x108] sm:$0xff]
    %v2498 = vld [vmem:[%s2463 + $0x110] sm:$0xff]
    %v2499 = vld [vmem:[%s2463 + $0x118] sm:$0xff]
    %v2500 = vld [vmem:[%s2463 + $0x120] sm:$0xff]
    %v2501 = vld [vmem:[%s2463 + $0x128] sm:$0xff]
    %v2502 = vld [vmem:[%s2463 + $0x130] sm:$0xff]
    %v2503 = vld [vmem:[%s2463 + $0x138] sm:$0xff]
    %v2504 = vld [vmem:[%s2463 + $0x140] sm:$0xff]
    %v2505 = vld [vmem:[%s2463 + $0x148] sm:$0xff]
    %v2506 = vld [vmem:[%s2463 + $0x150] sm:$0xff]
    %v2507 = vld [vmem:[%s2463 + $0x158] sm:$0xff]
    %v2508 = vld [vmem:[%s2463 + $0x160] sm:$0xff]
    %v2509 = vld [vmem:[%s2463 + $0x168] sm:$0xff]
    %v2510 = vld [vmem:[%s2463 + $0x170] sm:$0xff]
    %v2511 = vld [vmem:[%s2463 + $0x178] sm:$0xff]
    %v2512 = vld [vmem:[%s2463 + $0x180] sm:$0xff]
    %v2513 = vld [vmem:[%s2463 + $0x188] sm:$0xff]
    %v2514 = vld [vmem:[%s2463 + $0x190] sm:$0xff]
    %v2515 = vld [vmem:[%s2463 + $0x198] sm:$0xff]
    %v2516 = vld [vmem:[%s2463 + $0x1a0] sm:$0xff]
    %v2517 = vld [vmem:[%s2463 + $0x1a8] sm:$0xff]
    %v2518 = vld [vmem:[%s2463 + $0x1b0] sm:$0xff]
    %v2519 = vld [vmem:[%s2463 + $0x1b8] sm:$0xff]
    %v2520 = vld [vmem:[%s2463 + $0x1c0] sm:$0xff]
    %v2521 = vld [vmem:[%s2463 + $0x1c8] sm:$0xff]
    %v2522 = vld [vmem:[%s2463 + $0x1d0] sm:$0xff]
    %v2523 = vld [vmem:[%s2463 + $0x1d8] sm:$0xff]
    %v2524 = vld [vmem:[%s2463 + $0x1e0] sm:$0xff]
    %v2525 = vld [vmem:[%s2463 + $0x1e8] sm:$0xff]
    %v2526 = vld [vmem:[%s2463 + $0x1f0] sm:$0xff]
    %v2527 = vld [vmem:[%s2463 + $0x1f8] sm:$0xff]
    %v2528 = vld [vmem:[%s2463 + $0x200] sm:$0xff]
    %v2529 = vld [vmem:[%s2463 + $0x208] sm:$0xff]
    %v2530 = vld [vmem:[%s2463 + $0x210] sm:$0xff]
    %v2531 = vld [vmem:[%s2463 + $0x218] sm:$0xff]
    %v2532 = vld [vmem:[%s2463 + $0x220] sm:$0xff]
    %v2533 = vld [vmem:[%s2463 + $0x228] sm:$0xff]
    %v2534 = vld [vmem:[%s2463 + $0x230] sm:$0xff]
    %v2535 = vld [vmem:[%s2463 + $0x238] sm:$0xff]
    %v2536 = vld [vmem:[%s2463 + $0x240] sm:$0xff]
    %v2537 = vld [vmem:[%s2463 + $0x248] sm:$0xff]
    %v2538 = vld [vmem:[%s2463 + $0x250] sm:$0xff]
    %v2539 = vld [vmem:[%s2463 + $0x258] sm:$0xff]
    %v2540 = vld [vmem:[%s2463 + $0x260] sm:$0xff]
    %v2541 = vld [vmem:[%s2463 + $0x268] sm:$0xff]
    %v2542 = vld [vmem:[%s2463 + $0x270] sm:$0xff]
    %v2543 = vld [vmem:[%s2463 + $0x278] sm:$0xff]
    %v2544 = vld [vmem:[%s2463 + $0x280] sm:$0xff]
    %v2545 = vld [vmem:[%s2463 + $0x288] sm:$0xff]
    %v2546 = vld [vmem:[%s2463 + $0x290] sm:$0xff]
    %v2547 = vld [vmem:[%s2463 + $0x298] sm:$0xff]
    %v2548 = vld [vmem:[%s2463 + $0x2a0] sm:$0xff]
    %v2549 = vld [vmem:[%s2463 + $0x2a8] sm:$0xff]
    %v2550 = vld [vmem:[%s2463 + $0x2b0] sm:$0xff]
    %v2551 = vld [vmem:[%s2463 + $0x2b8] sm:$0xff]
    %v2552 = vld [vmem:[%s2463 + $0x2c0] sm:$0xff]
    %v2553 = vld [vmem:[%s2463 + $0x2c8] sm:$0xff]
    %v2554 = vld [vmem:[%s2463 + $0x2d0] sm:$0xff]
    %v2555 = vld [vmem:[%s2463 + $0x2d8] sm:$0xff]
    %v2556 = vld [vmem:[%s2463 + $0x2e0] sm:$0xff]
    %v2557 = vld [vmem:[%s2463 + $0x2e8] sm:$0xff]
    %v2558 = vld [vmem:[%s2463 + $0x2f0] sm:$0xff]
    %v2559 = vld [vmem:[%s2463 + $0x2f8] sm:$0xff]
    %v2560 = vld [vmem:[%s2463 + $0x300] sm:$0xff]
    %v2561 = vld [vmem:[%s2463 + $0x308] sm:$0xff]
    %v2562 = vld [vmem:[%s2463 + $0x310] sm:$0xff]
    %v2563 = vld [vmem:[%s2463 + $0x318] sm:$0xff]
    %v2564 = vld [vmem:[%s2463 + $0x320] sm:$0xff]
    %v2565 = vld [vmem:[%s2463 + $0x328] sm:$0xff]
    %v2566 = vld [vmem:[%s2463 + $0x330] sm:$0xff]
    %v2567 = vld [vmem:[%s2463 + $0x338] sm:$0xff]
    %v2568 = vld [vmem:[%s2463 + $0x340] sm:$0xff]
    %v2569 = vld [vmem:[%s2463 + $0x348] sm:$0xff]
    %v2570 = vld [vmem:[%s2463 + $0x350] sm:$0xff]
    %v2571 = vld [vmem:[%s2463 + $0x358] sm:$0xff]
    %v2572 = vld [vmem:[%s2463 + $0x360] sm:$0xff]
    %v2573 = vld [vmem:[%s2463 + $0x368] sm:$0xff]
    %v2574 = vld [vmem:[%s2463 + $0x370] sm:$0xff]
    %v2575 = vld [vmem:[%s2463 + $0x378] sm:$0xff]
    %v2576 = vld [vmem:[%s2463 + $0x380] sm:$0xff]
    %v2577 = vld [vmem:[%s2463 + $0x388] sm:$0xff]
    %v2578 = vld [vmem:[%s2463 + $0x390] sm:$0xff]
    %v2579 = vld [vmem:[%s2463 + $0x398] sm:$0xff]
    %v2580 = vld [vmem:[%s2463 + $0x3a0] sm:$0xff]
    %v2581 = vld [vmem:[%s2463 + $0x3a8] sm:$0xff]
    %v2582 = vld [vmem:[%s2463 + $0x3b0] sm:$0xff]
    %v2583 = vld [vmem:[%s2463 + $0x3b8] sm:$0xff]
    %v2584 = vld [vmem:[%s2463 + $0x3c0] sm:$0xff]
    %v2585 = vld [vmem:[%s2463 + $0x3c8] sm:$0xff]
    %v2586 = vld [vmem:[%s2463 + $0x3d0] sm:$0xff]
    %v2587 = vld [vmem:[%s2463 + $0x3d8] sm:$0xff]
    %v2588 = vld [vmem:[%s2463 + $0x3e0] sm:$0xff]
    %v2589 = vld [vmem:[%s2463 + $0x3e8] sm:$0xff]
    %v2590 = vld [vmem:[%s2463 + $0x3f0] sm:$0xff]
    %v2591 = vld [vmem:[%s2463 + $0x3f8] sm:$0xff]
    %v2720 = vunpack.c.l.b16 %v2464
    %v2721 = vunpack.c.h.b16 %v2464
    %v2722 = vunpack.c.l.b16 %v2465
    %v2723 = vunpack.c.h.b16 %v2465
    %v2724 = vunpack.c.l.b16 %v2466
    %v2725 = vunpack.c.h.b16 %v2466
    %v2726 = vunpack.c.l.b16 %v2467
    %v2727 = vunpack.c.h.b16 %v2467
    %v2728 = vunpack.c.l.b16 %v2468
    %v2729 = vunpack.c.h.b16 %v2468
    %v2730 = vunpack.c.l.b16 %v2469
    %v2731 = vunpack.c.h.b16 %v2469
    %v2732 = vunpack.c.l.b16 %v2470
    %v2733 = vunpack.c.h.b16 %v2470
    %v2734 = vunpack.c.l.b16 %v2471
    %v2735 = vunpack.c.h.b16 %v2471
    %v2736 = vunpack.c.l.b16 %v2472
    %v2737 = vunpack.c.h.b16 %v2472
    %v2738 = vunpack.c.l.b16 %v2473
    %v2739 = vunpack.c.h.b16 %v2473
    %v2740 = vunpack.c.l.b16 %v2474
    %v2741 = vunpack.c.h.b16 %v2474
    %v2742 = vunpack.c.l.b16 %v2475
    %v2743 = vunpack.c.h.b16 %v2475
    %v2744 = vunpack.c.l.b16 %v2476
    %v2745 = vunpack.c.h.b16 %v2476
    %v2746 = vunpack.c.l.b16 %v2477
    %v2747 = vunpack.c.h.b16 %v2477
    %v2748 = vunpack.c.l.b16 %v2478
    %v2749 = vunpack.c.h.b16 %v2478
    %v2750 = vunpack.c.l.b16 %v2479
    %v2751 = vunpack.c.h.b16 %v2479
    %v2752 = vunpack.c.l.b16 %v2480
    %v2753 = vunpack.c.h.b16 %v2480
    %v2754 = vunpack.c.l.b16 %v2481
    %v2755 = vunpack.c.h.b16 %v2481
    %v2756 = vunpack.c.l.b16 %v2482
    %v2757 = vunpack.c.h.b16 %v2482
    %v2758 = vunpack.c.l.b16 %v2483
    %v2759 = vunpack.c.h.b16 %v2483
    %v2760 = vunpack.c.l.b16 %v2484
    %v2761 = vunpack.c.h.b16 %v2484
    %v2762 = vunpack.c.l.b16 %v2485
    %v2763 = vunpack.c.h.b16 %v2485
    %v2764 = vunpack.c.l.b16 %v2486
    %v2765 = vunpack.c.h.b16 %v2486
    %v2766 = vunpack.c.l.b16 %v2487
    %v2767 = vunpack.c.h.b16 %v2487
    %v2768 = vunpack.c.l.b16 %v2488
    %v2769 = vunpack.c.h.b16 %v2488
    %v2770 = vunpack.c.l.b16 %v2489
    %v2771 = vunpack.c.h.b16 %v2489
    %v2772 = vunpack.c.l.b16 %v2490
    %v2773 = vunpack.c.h.b16 %v2490
    %v2774 = vunpack.c.l.b16 %v2491
    %v2775 = vunpack.c.h.b16 %v2491
    %v2776 = vunpack.c.l.b16 %v2492
    %v2777 = vunpack.c.h.b16 %v2492
    %v2778 = vunpack.c.l.b16 %v2493
    %v2779 = vunpack.c.h.b16 %v2493
    %v2780 = vunpack.c.l.b16 %v2494
    %v2781 = vunpack.c.h.b16 %v2494
    %v2782 = vunpack.c.l.b16 %v2495
    %v2783 = vunpack.c.h.b16 %v2495
    %v2784 = vunpack.c.l.b16 %v2496
    %v2785 = vunpack.c.h.b16 %v2496
    %v2786 = vunpack.c.l.b16 %v2497
    %v2787 = vunpack.c.h.b16 %v2497
    %v2788 = vunpack.c.l.b16 %v2498
    %v2789 = vunpack.c.h.b16 %v2498
    %v2790 = vunpack.c.l.b16 %v2499
    %v2791 = vunpack.c.h.b16 %v2499
    %v2792 = vunpack.c.l.b16 %v2500
    %v2793 = vunpack.c.h.b16 %v2500
    %v2794 = vunpack.c.l.b16 %v2501
    %v2795 = vunpack.c.h.b16 %v2501
    %v2796 = vunpack.c.l.b16 %v2502
    %v2797 = vunpack.c.h.b16 %v2502
    %v2798 = vunpack.c.l.b16 %v2503
    %v2799 = vunpack.c.h.b16 %v2503
    %v2800 = vunpack.c.l.b16 %v2504
    %v2801 = vunpack.c.h.b16 %v2504
    %v2802 = vunpack.c.l.b16 %v2505
    %v2803 = vunpack.c.h.b16 %v2505
    %v2804 = vunpack.c.l.b16 %v2506
    %v2805 = vunpack.c.h.b16 %v2506
    %v2806 = vunpack.c.l.b16 %v2507
    %v2807 = vunpack.c.h.b16 %v2507
    %v2808 = vunpack.c.l.b16 %v2508
    %v2809 = vunpack.c.h.b16 %v2508
    %v2810 = vunpack.c.l.b16 %v2509
    %v2811 = vunpack.c.h.b16 %v2509
    %v2812 = vunpack.c.l.b16 %v2510
    %v2813 = vunpack.c.h.b16 %v2510
    %v2814 = vunpack.c.l.b16 %v2511
    %v2815 = vunpack.c.h.b16 %v2511
    %v2816 = vunpack.c.l.b16 %v2512
    %v2817 = vunpack.c.h.b16 %v2512
    %v2818 = vunpack.c.l.b16 %v2513
    %v2819 = vunpack.c.h.b16 %v2513
    %v2820 = vunpack.c.l.b16 %v2514
    %v2821 = vunpack.c.h.b16 %v2514
    %v2822 = vunpack.c.l.b16 %v2515
    %v2823 = vunpack.c.h.b16 %v2515
    %v2824 = vunpack.c.l.b16 %v2516
    %v2825 = vunpack.c.h.b16 %v2516
    %v2826 = vunpack.c.l.b16 %v2517
    %v2827 = vunpack.c.h.b16 %v2517
    %v2828 = vunpack.c.l.b16 %v2518
    %v2829 = vunpack.c.h.b16 %v2518
    %v2830 = vunpack.c.l.b16 %v2519
    %v2831 = vunpack.c.h.b16 %v2519
    %v2832 = vunpack.c.l.b16 %v2520
    %v2833 = vunpack.c.h.b16 %v2520
    %v2834 = vunpack.c.l.b16 %v2521
    %v2835 = vunpack.c.h.b16 %v2521
    %v2836 = vunpack.c.l.b16 %v2522
    %v2837 = vunpack.c.h.b16 %v2522
    %v2838 = vunpack.c.l.b16 %v2523
    %v2839 = vunpack.c.h.b16 %v2523
    %v2840 = vunpack.c.l.b16 %v2524
    %v2841 = vunpack.c.h.b16 %v2524
    %v2842 = vunpack.c.l.b16 %v2525
    %v2843 = vunpack.c.h.b16 %v2525
    %v2844 = vunpack.c.l.b16 %v2526
    %v2845 = vunpack.c.h.b16 %v2526
    %v2846 = vunpack.c.l.b16 %v2527
    %v2847 = vunpack.c.h.b16 %v2527
    %v2848 = vunpack.c.l.b16 %v2528
    %v2849 = vunpack.c.h.b16 %v2528
    %v2850 = vunpack.c.l.b16 %v2529
    %v2851 = vunpack.c.h.b16 %v2529
    %v2852 = vunpack.c.l.b16 %v2530
    %v2853 = vunpack.c.h.b16 %v2530
    %v2854 = vunpack.c.l.b16 %v2531
    %v2855 = vunpack.c.h.b16 %v2531
    %v2856 = vunpack.c.l.b16 %v2532
    %v2857 = vunpack.c.h.b16 %v2532
    %v2858 = vunpack.c.l.b16 %v2533
    %v2859 = vunpack.c.h.b16 %v2533
    %v2860 = vunpack.c.l.b16 %v2534
    %v2861 = vunpack.c.h.b16 %v2534
    %v2862 = vunpack.c.l.b16 %v2535
    %v2863 = vunpack.c.h.b16 %v2535
    %v2864 = vunpack.c.l.b16 %v2536
    %v2865 = vunpack.c.h.b16 %v2536
    %v2866 = vunpack.c.l.b16 %v2537
    %v2867 = vunpack.c.h.b16 %v2537
    %v2868 = vunpack.c.l.b16 %v2538
    %v2869 = vunpack.c.h.b16 %v2538
    %v2870 = vunpack.c.l.b16 %v2539
    %v2871 = vunpack.c.h.b16 %v2539
    %v2872 = vunpack.c.l.b16 %v2540
    %v2873 = vunpack.c.h.b16 %v2540
    %v2874 = vunpack.c.l.b16 %v2541
    %v2875 = vunpack.c.h.b16 %v2541
    %v2876 = vunpack.c.l.b16 %v2542
    %v2877 = vunpack.c.h.b16 %v2542
    %v2878 = vunpack.c.l.b16 %v2543
    %v2879 = vunpack.c.h.b16 %v2543
    %v2880 = vunpack.c.l.b16 %v2544
    %v2881 = vunpack.c.h.b16 %v2544
    %v2882 = vunpack.c.l.b16 %v2545
    %v2883 = vunpack.c.h.b16 %v2545
    %v2884 = vunpack.c.l.b16 %v2546
    %v2885 = vunpack.c.h.b16 %v2546
    %v2886 = vunpack.c.l.b16 %v2547
    %v2887 = vunpack.c.h.b16 %v2547
    %v2888 = vunpack.c.l.b16 %v2548
    %v2889 = vunpack.c.h.b16 %v2548
    %v2890 = vunpack.c.l.b16 %v2549
    %v2891 = vunpack.c.h.b16 %v2549
    %v2892 = vunpack.c.l.b16 %v2550
    %v2893 = vunpack.c.h.b16 %v2550
    %v2894 = vunpack.c.l.b16 %v2551
    %v2895 = vunpack.c.h.b16 %v2551
    %v2896 = vunpack.c.l.b16 %v2552
    %v2897 = vunpack.c.h.b16 %v2552
    %v2898 = vunpack.c.l.b16 %v2553
    %v2899 = vunpack.c.h.b16 %v2553
    %v2900 = vunpack.c.l.b16 %v2554
    %v2901 = vunpack.c.h.b16 %v2554
    %v2902 = vunpack.c.l.b16 %v2555
    %v2903 = vunpack.c.h.b16 %v2555
    %v2904 = vunpack.c.l.b16 %v2556
    %v2905 = vunpack.c.h.b16 %v2556
    %v2906 = vunpack.c.l.b16 %v2557
    %v2907 = vunpack.c.h.b16 %v2557
    %v2908 = vunpack.c.l.b16 %v2558
    %v2909 = vunpack.c.h.b16 %v2558
    %v2910 = vunpack.c.l.b16 %v2559
    %v2911 = vunpack.c.h.b16 %v2559
    %v2912 = vunpack.c.l.b16 %v2560
    %v2913 = vunpack.c.h.b16 %v2560
    %v2914 = vunpack.c.l.b16 %v2561
    %v2915 = vunpack.c.h.b16 %v2561
    %v2916 = vunpack.c.l.b16 %v2562
    %v2917 = vunpack.c.h.b16 %v2562
    %v2918 = vunpack.c.l.b16 %v2563
    %v2919 = vunpack.c.h.b16 %v2563
    %v2920 = vunpack.c.l.b16 %v2564
    %v2921 = vunpack.c.h.b16 %v2564
    %v2922 = vunpack.c.l.b16 %v2565
    %v2923 = vunpack.c.h.b16 %v2565
    %v2924 = vunpack.c.l.b16 %v2566
    %v2925 = vunpack.c.h.b16 %v2566
    %v2926 = vunpack.c.l.b16 %v2567
    %v2927 = vunpack.c.h.b16 %v2567
    %v2928 = vunpack.c.l.b16 %v2568
    %v2929 = vunpack.c.h.b16 %v2568
    %v2930 = vunpack.c.l.b16 %v2569
    %v2931 = vunpack.c.h.b16 %v2569
    %v2932 = vunpack.c.l.b16 %v2570
    %v2933 = vunpack.c.h.b16 %v2570
    %v2934 = vunpack.c.l.b16 %v2571
    %v2935 = vunpack.c.h.b16 %v2571
    %v2936 = vunpack.c.l.b16 %v2572
    %v2937 = vunpack.c.h.b16 %v2572
    %v2938 = vunpack.c.l.b16 %v2573
    %v2939 = vunpack.c.h.b16 %v2573
    %v2940 = vunpack.c.l.b16 %v2574
    %v2941 = vunpack.c.h.b16 %v2574
    %v2942 = vunpack.c.l.b16 %v2575
    %v2943 = vunpack.c.h.b16 %v2575
    %v2944 = vunpack.c.l.b16 %v2576
    %v2945 = vunpack.c.h.b16 %v2576
    %v2946 = vunpack.c.l.b16 %v2577
    %v2947 = vunpack.c.h.b16 %v2577
    %v2948 = vunpack.c.l.b16 %v2578
    %v2949 = vunpack.c.h.b16 %v2578
    %v2950 = vunpack.c.l.b16 %v2579
    %v2951 = vunpack.c.h.b16 %v2579
    %v2952 = vunpack.c.l.b16 %v2580
    %v2953 = vunpack.c.h.b16 %v2580
    %v2954 = vunpack.c.l.b16 %v2581
    %v2955 = vunpack.c.h.b16 %v2581
    %v2956 = vunpack.c.l.b16 %v2582
    %v2957 = vunpack.c.h.b16 %v2582
    %v2958 = vunpack.c.l.b16 %v2583
    %v2959 = vunpack.c.h.b16 %v2583
    %v2960 = vunpack.c.l.b16 %v2584
    %v2961 = vunpack.c.h.b16 %v2584
    %v2962 = vunpack.c.l.b16 %v2585
    %v2963 = vunpack.c.h.b16 %v2585
    %v2964 = vunpack.c.l.b16 %v2586
    %v2965 = vunpack.c.h.b16 %v2586
    %v2966 = vunpack.c.l.b16 %v2587
    %v2967 = vunpack.c.h.b16 %v2587
    %v2968 = vunpack.c.l.b16 %v2588
    %v2969 = vunpack.c.h.b16 %v2588
    %v2970 = vunpack.c.l.b16 %v2589
    %v2971 = vunpack.c.h.b16 %v2589
    %v2972 = vunpack.c.l.b16 %v2590
    %v2973 = vunpack.c.h.b16 %v2590
    %v2974 = vunpack.c.l.b16 %v2591
    %v2975 = vunpack.c.h.b16 %v2591
    %v2976 = vpack.c.b16 %v2722, %v2720
    %v2977 = vpack.c.b16 %v2723, %v2721
    %v2978 = vpack.c.b16 %v2726, %v2724
    %v2979 = vpack.c.b16 %v2727, %v2725
    %v2980 = vpack.c.b16 %v2730, %v2728
    %v2981 = vpack.c.b16 %v2731, %v2729
    %v2982 = vpack.c.b16 %v2734, %v2732
    %v2983 = vpack.c.b16 %v2735, %v2733
    %v2984 = vpack.c.b16 %v2738, %v2736
    %v2985 = vpack.c.b16 %v2739, %v2737
    %v2986 = vpack.c.b16 %v2742, %v2740
    %v2987 = vpack.c.b16 %v2743, %v2741
    %v2988 = vpack.c.b16 %v2746, %v2744
    %v2989 = vpack.c.b16 %v2747, %v2745
    %v2990 = vpack.c.b16 %v2750, %v2748
    %v2991 = vpack.c.b16 %v2751, %v2749
    %v2992 = vpack.c.b16 %v2754, %v2752
    %v2993 = vpack.c.b16 %v2755, %v2753
    %v2994 = vpack.c.b16 %v2758, %v2756
    %v2995 = vpack.c.b16 %v2759, %v2757
    %v2996 = vpack.c.b16 %v2762, %v2760
    %v2997 = vpack.c.b16 %v2763, %v2761
    %v2998 = vpack.c.b16 %v2766, %v2764
    %v2999 = vpack.c.b16 %v2767, %v2765
    %v3000 = vpack.c.b16 %v2770, %v2768
    %v3001 = vpack.c.b16 %v2771, %v2769
    %v3002 = vpack.c.b16 %v2774, %v2772
    %v3003 = vpack.c.b16 %v2775, %v2773
    %v3004 = vpack.c.b16 %v2778, %v2776
    %v3005 = vpack.c.b16 %v2779, %v2777
    %v3006 = vpack.c.b16 %v2782, %v2780
    %v3007 = vpack.c.b16 %v2783, %v2781
    %v3008 = vpack.c.b16 %v2786, %v2784
    %v3009 = vpack.c.b16 %v2787, %v2785
    %v3010 = vpack.c.b16 %v2790, %v2788
    %v3011 = vpack.c.b16 %v2791, %v2789
    %v3012 = vpack.c.b16 %v2794, %v2792
    %v3013 = vpack.c.b16 %v2795, %v2793
    %v3014 = vpack.c.b16 %v2798, %v2796
    %v3015 = vpack.c.b16 %v2799, %v2797
    %v3016 = vpack.c.b16 %v2802, %v2800
    %v3017 = vpack.c.b16 %v2803, %v2801
    %v3018 = vpack.c.b16 %v2806, %v2804
    %v3019 = vpack.c.b16 %v2807, %v2805
    %v3020 = vpack.c.b16 %v2810, %v2808
    %v3021 = vpack.c.b16 %v2811, %v2809
    %v3022 = vpack.c.b16 %v2814, %v2812
    %v3023 = vpack.c.b16 %v2815, %v2813
    %v3024 = vpack.c.b16 %v2818, %v2816
    %v3025 = vpack.c.b16 %v2819, %v2817
    %v3026 = vpack.c.b16 %v2822, %v2820
    %v3027 = vpack.c.b16 %v2823, %v2821
    %v3028 = vpack.c.b16 %v2826, %v2824
    %v3029 = vpack.c.b16 %v2827, %v2825
    %v3030 = vpack.c.b16 %v2830, %v2828
    %v3031 = vpack.c.b16 %v2831, %v2829
    %v3032 = vpack.c.b16 %v2834, %v2832
    %v3033 = vpack.c.b16 %v2835, %v2833
    %v3034 = vpack.c.b16 %v2838, %v2836
    %v3035 = vpack.c.b16 %v2839, %v2837
    %v3036 = vpack.c.b16 %v2842, %v2840
    %v3037 = vpack.c.b16 %v2843, %v2841
    %v3038 = vpack.c.b16 %v2846, %v2844
    %v3039 = vpack.c.b16 %v2847, %v2845
    %v3040 = vpack.c.b16 %v2850, %v2848
    %v3041 = vpack.c.b16 %v2851, %v2849
    %v3042 = vpack.c.b16 %v2854, %v2852
    %v3043 = vpack.c.b16 %v2855, %v2853
    %v3044 = vpack.c.b16 %v2858, %v2856
    %v3045 = vpack.c.b16 %v2859, %v2857
    %v3046 = vpack.c.b16 %v2862, %v2860
    %v3047 = vpack.c.b16 %v2863, %v2861
    %v3048 = vpack.c.b16 %v2866, %v2864
    %v3049 = vpack.c.b16 %v2867, %v2865
    %v3050 = vpack.c.b16 %v2870, %v2868
    %v3051 = vpack.c.b16 %v2871, %v2869
    %v3052 = vpack.c.b16 %v2874, %v2872
    %v3053 = vpack.c.b16 %v2875, %v2873
    %v3054 = vpack.c.b16 %v2878, %v2876
    %v3055 = vpack.c.b16 %v2879, %v2877
    %v3056 = vpack.c.b16 %v2882, %v2880
    %v3057 = vpack.c.b16 %v2883, %v2881
    %v3058 = vpack.c.b16 %v2886, %v2884
    %v3059 = vpack.c.b16 %v2887, %v2885
    %v3060 = vpack.c.b16 %v2890, %v2888
    %v3061 = vpack.c.b16 %v2891, %v2889
    %v3062 = vpack.c.b16 %v2894, %v2892
    %v3063 = vpack.c.b16 %v2895, %v2893
    %v3064 = vpack.c.b16 %v2898, %v2896
    %v3065 = vpack.c.b16 %v2899, %v2897
    %v3066 = vpack.c.b16 %v2902, %v2900
    %v3067 = vpack.c.b16 %v2903, %v2901
    %v3068 = vpack.c.b16 %v2906, %v2904
    %v3069 = vpack.c.b16 %v2907, %v2905
    %v3070 = vpack.c.b16 %v2910, %v2908
    %v3071 = vpack.c.b16 %v2911, %v2909
    %v3072 = vpack.c.b16 %v2914, %v2912
    %v3073 = vpack.c.b16 %v2915, %v2913
    %v3074 = vpack.c.b16 %v2918, %v2916
    %v3075 = vpack.c.b16 %v2919, %v2917
    %v3076 = vpack.c.b16 %v2922, %v2920
    %v3077 = vpack.c.b16 %v2923, %v2921
    %v3078 = vpack.c.b16 %v2926, %v2924
    %v3079 = vpack.c.b16 %v2927, %v2925
    %v3080 = vpack.c.b16 %v2930, %v2928
    %v3081 = vpack.c.b16 %v2931, %v2929
    %v3082 = vpack.c.b16 %v2934, %v2932
    %v3083 = vpack.c.b16 %v2935, %v2933
    %v3084 = vpack.c.b16 %v2938, %v2936
    %v3085 = vpack.c.b16 %v2939, %v2937
    %v3086 = vpack.c.b16 %v2942, %v2940
    %v3087 = vpack.c.b16 %v2943, %v2941
    %v3088 = vpack.c.b16 %v2946, %v2944
    %v3089 = vpack.c.b16 %v2947, %v2945
    %v3090 = vpack.c.b16 %v2950, %v2948
    %v3091 = vpack.c.b16 %v2951, %v2949
    %v3092 = vpack.c.b16 %v2954, %v2952
    %v3093 = vpack.c.b16 %v2955, %v2953
    %v3094 = vpack.c.b16 %v2958, %v2956
    %v3095 = vpack.c.b16 %v2959, %v2957
    %v3096 = vpack.c.b16 %v2962, %v2960
    %v3097 = vpack.c.b16 %v2963, %v2961
    %v3098 = vpack.c.b16 %v2966, %v2964
    %v3099 = vpack.c.b16 %v2967, %v2965
    %v3100 = vpack.c.b16 %v2970, %v2968
    %v3101 = vpack.c.b16 %v2971, %v2969
    %v3102 = vpack.c.b16 %v2974, %v2972
    %v3103 = vpack.c.b16 %v2975, %v2973
    %3232 = vmatpush.bf16.msra.mxu0 %v2990
    %3233 = vmatpush.bf16.msra.mxu0 %v2988
    %3234 = vmatpush.bf16.msra.mxu0 %v2986
    %3235 = vmatpush.bf16.msra.mxu0 %v2984
    %3236 = vmatpush.bf16.msra.mxu0 %v2982
    %3237 = vmatpush.bf16.msra.mxu0 %v2980
    %3238 = vmatpush.bf16.msra.mxu0 %v2978
    %3239 = vmatpush.bf16.msra.mxu0 %v2976
    %3240 = vmatmul.bf16.gmra.mxu0 %v2420
    %v3241 = vpop.f32.mrf.mxu0
    %v3242 = vadd.f32 0.0, %v3241
    %v3243 = vpop.f32.mrf.mxu0
    %v3244 = vadd.f32 0.0, %v3243
    %3245 = vdwg.mxu0
    %3246 = vmatpush.bf16.msra.mxu0 %v3006
    %3247 = vmatpush.bf16.msra.mxu0 %v3004
    %3248 = vmatpush.bf16.msra.mxu0 %v3002
    %3249 = vmatpush.bf16.msra.mxu0 %v3000
    %3250 = vmatpush.bf16.msra.mxu0 %v2998
    %3251 = vmatpush.bf16.msra.mxu0 %v2996
    %3252 = vmatpush.bf16.msra.mxu0 %v2994
    %3253 = vmatpush.bf16.msra.mxu0 %v2992
    %3254 = vmatmul.bf16.gmra.mxu0 %v2421
    %v3255 = vpop.f32.mrf.mxu0
    %v3256 = vadd.f32 %v3242, %v3255
    %v3257 = vpop.f32.mrf.mxu0
    %v3258 = vadd.f32 %v3244, %v3257
    %3259 = vdwg.mxu0
    %3260 = vmatpush.bf16.msra.mxu0 %v3022
    %3261 = vmatpush.bf16.msra.mxu0 %v3020
    %3262 = vmatpush.bf16.msra.mxu0 %v3018
    %3263 = vmatpush.bf16.msra.mxu0 %v3016
    %3264 = vmatpush.bf16.msra.mxu0 %v3014
    %3265 = vmatpush.bf16.msra.mxu0 %v3012
    %3266 = vmatpush.bf16.msra.mxu0 %v3010
    %3267 = vmatpush.bf16.msra.mxu0 %v3008
    %3268 = vmatmul.bf16.gmra.mxu0 %v2439
    %v3269 = vpop.f32.mrf.mxu0
    %v3270 = vadd.f32 %v3256, %v3269
    %v3271 = vpop.f32.mrf.mxu0
    %v3272 = vadd.f32 %v3258, %v3271
    %3273 = vdwg.mxu0
    %3274 = vmatpush.bf16.msra.mxu0 %v3038
    %3275 = vmatpush.bf16.msra.mxu0 %v3036
    %3276 = vmatpush.bf16.msra.mxu0 %v3034
    %3277 = vmatpush.bf16.msra.mxu0 %v3032
    %3278 = vmatpush.bf16.msra.mxu0 %v3030
    %3279 = vmatpush.bf16.msra.mxu0 %v3028
    %3280 = vmatpush.bf16.msra.mxu0 %v3026
    %3281 = vmatpush.bf16.msra.mxu0 %v3024
    %3282 = vmatmul.bf16.gmra.mxu0 %v2442
    %v3283 = vpop.f32.mrf.mxu0
    %v3284 = vadd.f32 %v3270, %v3283
    %v3285 = vpop.f32.mrf.mxu0
    %v3286 = vadd.f32 %v3272, %v3285
    %3287 = vdwg.mxu0
    %3288 = vmatpush.bf16.msra.mxu0 %v3054
    %3289 = vmatpush.bf16.msra.mxu0 %v3052
    %3290 = vmatpush.bf16.msra.mxu0 %v3050
    %3291 = vmatpush.bf16.msra.mxu0 %v3048
    %3292 = vmatpush.bf16.msra.mxu0 %v3046
    %3293 = vmatpush.bf16.msra.mxu0 %v3044
    %3294 = vmatpush.bf16.msra.mxu0 %v3042
    %3295 = vmatpush.bf16.msra.mxu0 %v3040
    %3296 = vmatmul.bf16.gmra.mxu0 %v2449
    %v3297 = vpop.f32.mrf.mxu0
    %v3298 = vadd.f32 %v3284, %v3297
    %v3299 = vpop.f32.mrf.mxu0
    %v3300 = vadd.f32 %v3286, %v3299
    %3301 = vdwg.mxu0
    %3302 = vmatpush.bf16.msra.mxu0 %v3070
    %3303 = vmatpush.bf16.msra.mxu0 %v3068
    %3304 = vmatpush.bf16.msra.mxu0 %v3066
    %3305 = vmatpush.bf16.msra.mxu0 %v3064
    %3306 = vmatpush.bf16.msra.mxu0 %v3062
    %3307 = vmatpush.bf16.msra.mxu0 %v3060
    %3308 = vmatpush.bf16.msra.mxu0 %v3058
    %3309 = vmatpush.bf16.msra.mxu0 %v3056
    %3310 = vmatmul.bf16.gmra.mxu0 %v2452
    %v3311 = vpop.f32.mrf.mxu0
    %v3312 = vadd.f32 %v3298, %v3311
    %v3313 = vpop.f32.mrf.mxu0
    %v3314 = vadd.f32 %v3300, %v3313
    %3315 = vdwg.mxu0
    %3316 = vmatpush.bf16.msra.mxu0 %v3086
    %3317 = vmatpush.bf16.msra.mxu0 %v3084
    %3318 = vmatpush.bf16.msra.mxu0 %v3082
    %3319 = vmatpush.bf16.msra.mxu0 %v3080
    %3320 = vmatpush.bf16.msra.mxu0 %v3078
    %3321 = vmatpush.bf16.msra.mxu0 %v3076
    %3322 = vmatpush.bf16.msra.mxu0 %v3074
    %3323 = vmatpush.bf16.msra.mxu0 %v3072
    %3324 = vmatmul.bf16.gmra.mxu0 %v2457
    %v3325 = vpop.f32.mrf.mxu0
    %v3326 = vadd.f32 %v3312, %v3325
    %v3327 = vpop.f32.mrf.mxu0
    %v3328 = vadd.f32 %v3314, %v3327
    %3329 = vdwg.mxu0
    %3330 = vmatpush.bf16.msra.mxu0 %v3102
    %3331 = vmatpush.bf16.msra.mxu0 %v3100
    %3332 = vmatpush.bf16.msra.mxu0 %v3098
    %3333 = vmatpush.bf16.msra.mxu0 %v3096
    %3334 = vmatpush.bf16.msra.mxu0 %v3094
    %3335 = vmatpush.bf16.msra.mxu0 %v3092
    %3336 = vmatpush.bf16.msra.mxu0 %v3090
    %3337 = vmatpush.bf16.msra.mxu0 %v3088
    %3338 = vmatmul.bf16.gmra.mxu0 %v2460
    %v3339 = vpop.f32.mrf.mxu0
    %v3340 = vadd.f32 %v3326, %v3339
    %v3341 = vpop.f32.mrf.mxu0
    %v3342 = vadd.f32 %v3328, %v3341
    %3343 = vdwg.mxu0
    %3344 = vmatpush.bf16.msra.mxu0 %v2991
    %3345 = vmatpush.bf16.msra.mxu0 %v2989
    %3346 = vmatpush.bf16.msra.mxu0 %v2987
    %3347 = vmatpush.bf16.msra.mxu0 %v2985
    %3348 = vmatpush.bf16.msra.mxu0 %v2983
    %3349 = vmatpush.bf16.msra.mxu0 %v2981
    %3350 = vmatpush.bf16.msra.mxu0 %v2979
    %3351 = vmatpush.bf16.msra.mxu0 %v2977
    %3352 = vmatmul.bf16.gmra.mxu0 %v2420
    %v3353 = vpop.f32.mrf.mxu0
    %v3354 = vadd.f32 0.0, %v3353
    %v3355 = vpop.f32.mrf.mxu0
    %v3356 = vadd.f32 0.0, %v3355
    %3357 = vdwg.mxu0
    %3358 = vmatpush.bf16.msra.mxu0 %v3007
    %3359 = vmatpush.bf16.msra.mxu0 %v3005
    %3360 = vmatpush.bf16.msra.mxu0 %v3003
    %3361 = vmatpush.bf16.msra.mxu0 %v3001
    %3362 = vmatpush.bf16.msra.mxu0 %v2999
    %3363 = vmatpush.bf16.msra.mxu0 %v2997
    %3364 = vmatpush.bf16.msra.mxu0 %v2995
    %3365 = vmatpush.bf16.msra.mxu0 %v2993
    %3366 = vmatmul.bf16.gmra.mxu0 %v2421
    %v3367 = vpop.f32.mrf.mxu0
    %v3368 = vadd.f32 %v3354, %v3367
    %v3369 = vpop.f32.mrf.mxu0
    %v3370 = vadd.f32 %v3356, %v3369
    %3371 = vdwg.mxu0
    %3372 = vmatpush.bf16.msra.mxu0 %v3023
    %3373 = vmatpush.bf16.msra.mxu0 %v3021
    %3374 = vmatpush.bf16.msra.mxu0 %v3019
    %3375 = vmatpush.bf16.msra.mxu0 %v3017
    %3376 = vmatpush.bf16.msra.mxu0 %v3015
    %3377 = vmatpush.bf16.msra.mxu0 %v3013
    %3378 = vmatpush.bf16.msra.mxu0 %v3011
    %3379 = vmatpush.bf16.msra.mxu0 %v3009
    %3380 = vmatmul.bf16.gmra.mxu0 %v2439
    %v3381 = vpop.f32.mrf.mxu0
    %v3382 = vadd.f32 %v3368, %v3381
    %v3383 = vpop.f32.mrf.mxu0
    %v3384 = vadd.f32 %v3370, %v3383
    %3385 = vdwg.mxu0
    %3386 = vmatpush.bf16.msra.mxu0 %v3039
    %3387 = vmatpush.bf16.msra.mxu0 %v3037
    %3388 = vmatpush.bf16.msra.mxu0 %v3035
    %3389 = vmatpush.bf16.msra.mxu0 %v3033
    %3390 = vmatpush.bf16.msra.mxu0 %v3031
    %3391 = vmatpush.bf16.msra.mxu0 %v3029
    %3392 = vmatpush.bf16.msra.mxu0 %v3027
    %3393 = vmatpush.bf16.msra.mxu0 %v3025
    %3394 = vmatmul.bf16.gmra.mxu0 %v2442
    %v3395 = vpop.f32.mrf.mxu0
    %v3396 = vadd.f32 %v3382, %v3395
    %v3397 = vpop.f32.mrf.mxu0
    %v3398 = vadd.f32 %v3384, %v3397
    %3399 = vdwg.mxu0
    %3400 = vmatpush.bf16.msra.mxu0 %v3055
    %3401 = vmatpush.bf16.msra.mxu0 %v3053
    %3402 = vmatpush.bf16.msra.mxu0 %v3051
    %3403 = vmatpush.bf16.msra.mxu0 %v3049
    %3404 = vmatpush.bf16.msra.mxu0 %v3047
    %3405 = vmatpush.bf16.msra.mxu0 %v3045
    %3406 = vmatpush.bf16.msra.mxu0 %v3043
    %3407 = vmatpush.bf16.msra.mxu0 %v3041
    %3408 = vmatmul.bf16.gmra.mxu0 %v2449
    %v3409 = vpop.f32.mrf.mxu0
    %v3410 = vadd.f32 %v3396, %v3409
    %v3411 = vpop.f32.mrf.mxu0
    %v3412 = vadd.f32 %v3398, %v3411
    %3413 = vdwg.mxu0
    %3414 = vmatpush.bf16.msra.mxu0 %v3071
    %3415 = vmatpush.bf16.msra.mxu0 %v3069
    %3416 = vmatpush.bf16.msra.mxu0 %v3067
    %3417 = vmatpush.bf16.msra.mxu0 %v3065
    %3418 = vmatpush.bf16.msra.mxu0 %v3063
    %3419 = vmatpush.bf16.msra.mxu0 %v3061
    %3420 = vmatpush.bf16.msra.mxu0 %v3059
    %3421 = vmatpush.bf16.msra.mxu0 %v3057
    %3422 = vmatmul.bf16.gmra.mxu0 %v2452
    %v3423 = vpop.f32.mrf.mxu0
    %v3424 = vadd.f32 %v3410, %v3423
    %v3425 = vpop.f32.mrf.mxu0
    %v3426 = vadd.f32 %v3412, %v3425
    %3427 = vdwg.mxu0
    %3428 = vmatpush.bf16.msra.mxu0 %v3087
    %3429 = vmatpush.bf16.msra.mxu0 %v3085
    %3430 = vmatpush.bf16.msra.mxu0 %v3083
    %3431 = vmatpush.bf16.msra.mxu0 %v3081
    %3432 = vmatpush.bf16.msra.mxu0 %v3079
    %3433 = vmatpush.bf16.msra.mxu0 %v3077
    %3434 = vmatpush.bf16.msra.mxu0 %v3075
    %3435 = vmatpush.bf16.msra.mxu0 %v3073
    %3436 = vmatmul.bf16.gmra.mxu0 %v2457
    %v3437 = vpop.f32.mrf.mxu0
    %v3438 = vadd.f32 %v3424, %v3437
    %v3439 = vpop.f32.mrf.mxu0
    %v3440 = vadd.f32 %v3426, %v3439
    %3441 = vdwg.mxu0
    %3442 = vmatpush.bf16.msra.mxu0 %v3103
    %3443 = vmatpush.bf16.msra.mxu0 %v3101
    %3444 = vmatpush.bf16.msra.mxu0 %v3099
    %3445 = vmatpush.bf16.msra.mxu0 %v3097
    %3446 = vmatpush.bf16.msra.mxu0 %v3095
    %3447 = vmatpush.bf16.msra.mxu0 %v3093
    %3448 = vmatpush.bf16.msra.mxu0 %v3091
    %3449 = vmatpush.bf16.msra.mxu0 %v3089
    %3450 = vmatmul.bf16.gmra.mxu0 %v2460
    %v3451 = vpop.f32.mrf.mxu0
    %v3452 = vadd.f32 %v3438, %v3451
    %v3453 = vpop.f32.mrf.mxu0
    %v3454 = vadd.f32 %v3440, %v3453
    %3455 = vdwg.mxu0
    %s3456 = scalar_lea.vmem [#allocation10], 512
    %v3457 = vld [vmem:[%s3456] sm:$0xff]
    %v3458 = vld [vmem:[%s3456 + $0x8] sm:$0xff]
    %v3459 = vld [vmem:[%s3456 + $0x10] sm:$0xff]
    %v3460 = vld [vmem:[%s3456 + $0x18] sm:$0xff]
    %v3461 = vld [vmem:[%s3456 + $0x20] sm:$0xff]
    %v3462 = vld [vmem:[%s3456 + $0x28] sm:$0xff]
    %v3463 = vld [vmem:[%s3456 + $0x30] sm:$0xff]
    %v3464 = vld [vmem:[%s3456 + $0x38] sm:$0xff]
    %v3465 = vld [vmem:[%s3456 + $0x40] sm:$0xff]
    %v3466 = vld [vmem:[%s3456 + $0x48] sm:$0xff]
    %v3467 = vld [vmem:[%s3456 + $0x50] sm:$0xff]
    %v3468 = vld [vmem:[%s3456 + $0x58] sm:$0xff]
    %v3469 = vld [vmem:[%s3456 + $0x60] sm:$0xff]
    %v3470 = vld [vmem:[%s3456 + $0x68] sm:$0xff]
    %v3471 = vld [vmem:[%s3456 + $0x70] sm:$0xff]
    %v3472 = vld [vmem:[%s3456 + $0x78] sm:$0xff]
    %v3473 = vld [vmem:[%s3456 + $0x80] sm:$0xff]
    %v3474 = vld [vmem:[%s3456 + $0x88] sm:$0xff]
    %v3475 = vld [vmem:[%s3456 + $0x90] sm:$0xff]
    %v3476 = vld [vmem:[%s3456 + $0x98] sm:$0xff]
    %v3477 = vld [vmem:[%s3456 + $0xa0] sm:$0xff]
    %v3478 = vld [vmem:[%s3456 + $0xa8] sm:$0xff]
    %v3479 = vld [vmem:[%s3456 + $0xb0] sm:$0xff]
    %v3480 = vld [vmem:[%s3456 + $0xb8] sm:$0xff]
    %v3481 = vld [vmem:[%s3456 + $0xc0] sm:$0xff]
    %v3482 = vld [vmem:[%s3456 + $0xc8] sm:$0xff]
    %v3483 = vld [vmem:[%s3456 + $0xd0] sm:$0xff]
    %v3484 = vld [vmem:[%s3456 + $0xd8] sm:$0xff]
    %v3485 = vld [vmem:[%s3456 + $0xe0] sm:$0xff]
    %v3486 = vld [vmem:[%s3456 + $0xe8] sm:$0xff]
    %v3487 = vld [vmem:[%s3456 + $0xf0] sm:$0xff]
    %v3488 = vld [vmem:[%s3456 + $0xf8] sm:$0xff]
    %v3489 = vld [vmem:[%s3456 + $0x100] sm:$0xff]
    %v3490 = vld [vmem:[%s3456 + $0x108] sm:$0xff]
    %v3491 = vld [vmem:[%s3456 + $0x110] sm:$0xff]
    %v3492 = vld [vmem:[%s3456 + $0x118] sm:$0xff]
    %v3493 = vld [vmem:[%s3456 + $0x120] sm:$0xff]
    %v3494 = vld [vmem:[%s3456 + $0x128] sm:$0xff]
    %v3495 = vld [vmem:[%s3456 + $0x130] sm:$0xff]
    %v3496 = vld [vmem:[%s3456 + $0x138] sm:$0xff]
    %v3497 = vld [vmem:[%s3456 + $0x140] sm:$0xff]
    %v3498 = vld [vmem:[%s3456 + $0x148] sm:$0xff]
    %v3499 = vld [vmem:[%s3456 + $0x150] sm:$0xff]
    %v3500 = vld [vmem:[%s3456 + $0x158] sm:$0xff]
    %v3501 = vld [vmem:[%s3456 + $0x160] sm:$0xff]
    %v3502 = vld [vmem:[%s3456 + $0x168] sm:$0xff]
    %v3503 = vld [vmem:[%s3456 + $0x170] sm:$0xff]
    %v3504 = vld [vmem:[%s3456 + $0x178] sm:$0xff]
    %v3505 = vld [vmem:[%s3456 + $0x180] sm:$0xff]
    %v3506 = vld [vmem:[%s3456 + $0x188] sm:$0xff]
    %v3507 = vld [vmem:[%s3456 + $0x190] sm:$0xff]
    %v3508 = vld [vmem:[%s3456 + $0x198] sm:$0xff]
    %v3509 = vld [vmem:[%s3456 + $0x1a0] sm:$0xff]
    %v3510 = vld [vmem:[%s3456 + $0x1a8] sm:$0xff]
    %v3511 = vld [vmem:[%s3456 + $0x1b0] sm:$0xff]
    %v3512 = vld [vmem:[%s3456 + $0x1b8] sm:$0xff]
    %v3513 = vld [vmem:[%s3456 + $0x1c0] sm:$0xff]
    %v3514 = vld [vmem:[%s3456 + $0x1c8] sm:$0xff]
    %v3515 = vld [vmem:[%s3456 + $0x1d0] sm:$0xff]
    %v3516 = vld [vmem:[%s3456 + $0x1d8] sm:$0xff]
    %v3517 = vld [vmem:[%s3456 + $0x1e0] sm:$0xff]
    %v3518 = vld [vmem:[%s3456 + $0x1e8] sm:$0xff]
    %v3519 = vld [vmem:[%s3456 + $0x1f0] sm:$0xff]
    %v3520 = vld [vmem:[%s3456 + $0x1f8] sm:$0xff]
    %s3521 = scalar_lea.vmem [#allocation11], 4
    %v3522 = vld [vmem:[%s3521] sm:$0xf]
    %v3523 = vadd.f32 %v3340, %v3342
    %v3524 = vrot.slane %v3523, 4
    %v3525 = vadd.f32 %v3523, %v3524
    %v3526 = vrot.slane %v3525, 2
    %v3527 = vadd.f32 %v3525, %v3526
    %v3528 = vrot.slane %v3527, 1
    %v3529 = vadd.f32 %v3527, %v3528
    %v3530 = vadd.f32 %v3452, %v3454
    %v3531 = vrot.slane %v3530, 4
    %v3532 = vadd.f32 %v3530, %v3531
    %v3533 = vrot.slane %v3532, 2
    %v3534 = vadd.f32 %v3532, %v3533
    %v3535 = vrot.slane %v3534, 1
    %v3536 = vadd.f32 %v3534, %v3535
    %v3537 = vmul.f32 %v3340, %v3340
    %v3538 = vmul.f32 %v3452, %v3452
    %v3539 = vmul.f32 %v3342, %v3342
    %v3540 = vmul.f32 %v3454, %v3454
    %v3541 = vadd.f32 %v3537, %v3539
    %v3542 = vrot.slane %v3541, 4
    %v3543 = vadd.f32 %v3541, %v3542
    %v3544 = vrot.slane %v3543, 2
    %v3545 = vadd.f32 %v3543, %v3544
    %v3546 = vrot.slane %v3545, 1
    %v3547 = vadd.f32 %v3545, %v3546
    %v3548 = vadd.f32 %v3538, %v3540
    %v3549 = vrot.slane %v3548, 4
    %v3550 = vadd.f32 %v3548, %v3549
    %v3551 = vrot.slane %v3550, 2
    %v3552 = vadd.f32 %v3550, %v3551
    %v3553 = vrot.slane %v3552, 1
    %v3554 = vadd.f32 %v3552, %v3553
    %v3555 = vsel %vm2140, %v3529, %v3547
    %v3556 = vsel %vm2140, %v3536, %v3554
    %3557 = vmatpush.msra.mxu0 %v3487
    %3558 = vmatpush.msra.mxu0 %v3485
    %3559 = vmatpush.msra.mxu0 %v3483
    %3560 = vmatpush.msra.mxu0 %v3481
    %3561 = vmatpush.msra.mxu0 %v3479
    %3562 = vmatpush.msra.mxu0 %v3477
    %3563 = vmatpush.msra.mxu0 %v3475
    %3564 = vmatpush.msra.mxu0 %v3473
    %3565 = vmatpush.msra.mxu0 %v3471
    %3566 = vmatpush.msra.mxu0 %v3469
    %3567 = vmatpush.msra.mxu0 %v3467
    %3568 = vmatpush.msra.mxu0 %v3465
    %3569 = vmatpush.msra.mxu0 %v3463
    %3570 = vmatpush.msra.mxu0 %v3461
    %3571 = vmatpush.msra.mxu0 %v3459
    %3572 = vmatpush.msra.mxu0 %v3457
    %3573 = vmatmul.f32.gmra.mxu0 %v3555
    %v3574 = vpop.f32.mrf.mxu0
    %v3575 = vadd.f32 0.0, %v3574
    %3576 = vdwg.mxu0
    %3577 = vmatpush.msra.mxu0 %v3519
    %3578 = vmatpush.msra.mxu0 %v3517
    %3579 = vmatpush.msra.mxu0 %v3515
    %3580 = vmatpush.msra.mxu0 %v3513
    %3581 = vmatpush.msra.mxu0 %v3511
    %3582 = vmatpush.msra.mxu0 %v3509
    %3583 = vmatpush.msra.mxu0 %v3507
    %3584 = vmatpush.msra.mxu0 %v3505
    %3585 = vmatpush.msra.mxu0 %v3503
    %3586 = vmatpush.msra.mxu0 %v3501
    %3587 = vmatpush.msra.mxu0 %v3499
    %3588 = vmatpush.msra.mxu0 %v3497
    %3589 = vmatpush.msra.mxu0 %v3495
    %3590 = vmatpush.msra.mxu0 %v3493
    %3591 = vmatpush.msra.mxu0 %v3491
    %3592 = vmatpush.msra.mxu0 %v3489
    %3593 = vmatmul.f32.gmra.mxu0 %v3556
    %v3594 = vpop.f32.mrf.mxu0
    %v3595 = vadd.f32 %v3575, %v3594
    %3596 = vdwg.mxu0
    %3597 = vmatpush.msra.mxu0 %v3488
    %3598 = vmatpush.msra.mxu0 %v3486
    %3599 = vmatpush.msra.mxu0 %v3484
    %3600 = vmatpush.msra.mxu0 %v3482
    %3601 = vmatpush.msra.mxu0 %v3480
    %3602 = vmatpush.msra.mxu0 %v3478
    %3603 = vmatpush.msra.mxu0 %v3476
    %3604 = vmatpush.msra.mxu0 %v3474
    %3605 = vmatpush.msra.mxu0 %v3472
    %3606 = vmatpush.msra.mxu0 %v3470
    %3607 = vmatpush.msra.mxu0 %v3468
    %3608 = vmatpush.msra.mxu0 %v3466
    %3609 = vmatpush.msra.mxu0 %v3464
    %3610 = vmatpush.msra.mxu0 %v3462
    %3611 = vmatpush.msra.mxu0 %v3460
    %3612 = vmatpush.msra.mxu0 %v3458
    %3613 = vmatmul.f32.gmra.mxu0 %v3555
    %v3614 = vpop.f32.mrf.mxu0
    %v3615 = vadd.f32 0.0, %v3614
    %3616 = vdwg.mxu0
    %3617 = vmatpush.msra.mxu0 %v3520
    %3618 = vmatpush.msra.mxu0 %v3518
    %3619 = vmatpush.msra.mxu0 %v3516
    %3620 = vmatpush.msra.mxu0 %v3514
    %3621 = vmatpush.msra.mxu0 %v3512
    %3622 = vmatpush.msra.mxu0 %v3510
    %3623 = vmatpush.msra.mxu0 %v3508
    %3624 = vmatpush.msra.mxu0 %v3506
    %3625 = vmatpush.msra.mxu0 %v3504
    %3626 = vmatpush.msra.mxu0 %v3502
    %3627 = vmatpush.msra.mxu0 %v3500
    %3628 = vmatpush.msra.mxu0 %v3498
    %3629 = vmatpush.msra.mxu0 %v3496
    %3630 = vmatpush.msra.mxu0 %v3494
    %3631 = vmatpush.msra.mxu0 %v3492
    %3632 = vmatpush.msra.mxu0 %v3490
    %3633 = vmatmul.f32.gmra.mxu0 %v3556
    %v3634 = vpop.f32.mrf.mxu0
    %v3635 = vadd.f32 %v3615, %v3634
    %3636 = vdwg.mxu0
    %v3637 = vmul.f32 %v3595, %v3595
    %v3638 = vmul.f32 %v3635, %v3635
    %v3641 = vrot.slane %v3637, 7
    %v3642 = vrot.slane %v3638, 7
    %v3645 = vsub.f32 %v3595, %v3641
    %v3646 = vsub.f32 %v3635, %v3642
    %v3647 = vmax.f32 %v3645, 0.0
    %v3648 = vmax.f32 %v3646, 0.0
    %v3649 = vadd.f32 %v3647, 1e-05
    %v3650 = vadd.f32 %v3648, 1e-05
    %v3651 = vrsqrt.pop %v3649
    %v3652 = vmul.f32 %v3651, %v3649
    %v3653 = vmul.f32 %v3652, %v3651
    %v3654 = vmul.f32 0.5, %v3653
    %v3655 = vsub.f32 1.5, %v3654
    %v3656 = vmul.f32 %v3651, %v3655
    %vm3657 = vweird.f32 %v3649
    %vm3658 = vweird.f32 %v3651
    %vm3659 = vmor %vm3657, %vm3658
    %v3660 = vsel %vm3659, %v3651, %v3656
    %v3661 = vrsqrt.pop %v3650
    %v3662 = vmul.f32 %v3661, %v3650
    %v3663 = vmul.f32 %v3662, %v3661
    %v3664 = vmul.f32 0.5, %v3663
    %v3665 = vsub.f32 1.5, %v3664
    %v3666 = vmul.f32 %v3661, %v3665
    %vm3667 = vweird.f32 %v3650
    %vm3668 = vweird.f32 %v3661
    %vm3669 = vmor %vm3667, %vm3668
    %v3670 = vsel %vm3669, %v3661, %v3666
    %v3673 = vrot.slane %v3670, 6
    %v3674 = vsel %vm2260, %v3660, %v3673
    %v3675 = vrot.slane %v3674, 7
    %v3676 = vrot.slane %v3675, 2
    %v3678 = vmul.f32 %v3522, %v3676
    %v3680 = vperm.slane %v3678, 0
    %v3681 = vperm.slane %v3678, 2
    %v3684 = vmul.f32 %v3595, %v3680
    %v3685 = vmul.f32 %v3635, %v3681
    %v3688 = vrot.slane %v3685, 6
    %v3689 = vsel %vm2260, %v3684, %v3688
    %v3690 = vrot.slane %v3689, 7
    %v3692 = vsub.f32 %v3522, %v3690
    %v3693 = vperm.slane %v3680, 0
    %v3694 = vperm.slane %v3681, 0
    %v3695 = vmul.f32 %v3340, %v3693
    %v3696 = vmul.f32 %v3452, %v3694
    %v3697 = vmul.f32 %v3342, %v3693
    %v3698 = vmul.f32 %v3454, %v3694
    %v3700 = vperm.slane %v3692, 1
    %v3701 = vperm.slane %v3692, 3
    %v3704 = vperm.slane %v3700, 1
    %v3705 = vperm.slane %v3701, 1
    %v3706 = vadd.f32 %v3695, %v3704
    %v3707 = vadd.f32 %v3696, %v3705
    %v3708 = vadd.f32 %v3697, %v3704
    %v3709 = vadd.f32 %v3698, %v3705
    %vm3710 = vcmp.ge.f32.partialorder %v3706, 0.0
    %vm3711 = vcmp.ge.f32.partialorder %v3707, 0.0
    %vm3712 = vcmp.ge.f32.partialorder %v3708, 0.0
    %vm3713 = vcmp.ge.f32.partialorder %v3709, 0.0
    %v3714 = vmul.f32 %v3706, 0.2
    %v3715 = vmul.f32 %v3707, 0.2
    %v3716 = vmul.f32 %v3708, 0.2
    %v3717 = vmul.f32 %v3709, 0.2
    %v3718 = vsel %vm3710, %v3706, %v3714
    %v3719 = vsel %vm3711, %v3707, %v3715
    %v3720 = vsel %vm3712, %v3708, %v3716
    %v3721 = vsel %vm3713, %v3709, %v3717
    %vm3722 = vcmask 130048
    %v3724 = vsel %vm3722, %v168, 0
    %v3727 = vsel %vm3722, %v169, 0
    %v3730 = vsel %vm3722, %v170, 0
    %3732 = vmatpush.msra.mxu0 0.0
    %3733 = vmatpush.msra.mxu0 0.0
    %3734 = vmatpush.msra.mxu0 0.0
    %3735 = vmatpush.msra.mxu0 0.0
    %3736 = vmatpush.msra.mxu0 0.0
    %3737 = vmatpush.msra.mxu0 0.0
    %3738 = vmatpush.msra.mxu0 0.0
    %3739 = vmatpush.msra.mxu0 0.0
    %3740 = vmatpush.msra.mxu0 0.0
    %3741 = vmatpush.msra.mxu0 0.0
    %3742 = vmatpush.msra.mxu0 0.0
    %3743 = vmatpush.msra.mxu0 0.0
    %3744 = vmatpush.msra.mxu0 0.0
    %3745 = vmatpush.msra.mxu0 0.0
    %3746 = vmatpush.msra.mxu0 %v3720
    %3747 = vmatpush.msra.mxu0 %v3718
    %3748 = vmatmul.f32.gmra.mxu0 %v3724
    %v3749 = vpop.f32.mrf.mxu0
    %v3750 = vadd.f32 0.0, %v3749
    %3751 = vmatmul.f32.gmra.mxu0 %v3727
    %v3752 = vpop.f32.mrf.mxu0
    %v3753 = vadd.f32 0.0, %v3752
    %3754 = vmatmul.f32.gmra.mxu0 %v3730
    %v3755 = vpop.f32.mrf.mxu0
    %v3756 = vadd.f32 0.0, %v3755
    %3757 = vdwg.mxu0
    %3758 = vmatpush.msra.mxu0 0.0
    %3759 = vmatpush.msra.mxu0 0.0
    %3760 = vmatpush.msra.mxu0 0.0
    %3761 = vmatpush.msra.mxu0 0.0
    %3762 = vmatpush.msra.mxu0 0.0
    %3763 = vmatpush.msra.mxu0 0.0
    %3764 = vmatpush.msra.mxu0 0.0
    %3765 = vmatpush.msra.mxu0 0.0
    %3766 = vmatpush.msra.mxu0 0.0
    %3767 = vmatpush.msra.mxu0 0.0
    %3768 = vmatpush.msra.mxu0 0.0
    %3769 = vmatpush.msra.mxu0 0.0
    %3770 = vmatpush.msra.mxu0 0.0
    %3771 = vmatpush.msra.mxu0 0.0
    %3772 = vmatpush.msra.mxu0 %v3721
    %3773 = vmatpush.msra.mxu0 %v3719
    %3774 = vmatmul.f32.gmra.mxu0 %v3724
    %v3775 = vpop.f32.mrf.mxu0
    %v3776 = vadd.f32 0.0, %v3775
    %3777 = vmatmul.f32.gmra.mxu0 %v3727
    %v3778 = vpop.f32.mrf.mxu0
    %v3779 = vadd.f32 0.0, %v3778
    %3780 = vmatmul.f32.gmra.mxu0 %v3730
    %v3781 = vpop.f32.mrf.mxu0
    %v3782 = vadd.f32 0.0, %v3781
    %3783 = vdwg.mxu0
    %v3784 = vpack.c.bf16 %v3776, %v3750
    %v3785 = vpack.c.bf16 %v3779, %v3753
    %v3786 = vpack.c.bf16 %v3782, %v3756
    %v3788 = vunpack.c.l.b16 %v3784
    %v3789 = vunpack.c.h.b16 %v3784
    %v3790 = vpack.c.b16 %v3788, %v3788
    %v3791 = vpack.c.b16 %v3789, %v3789
    %v3796 = vunpack.c.l.b16 %v3785
    %v3797 = vunpack.c.h.b16 %v3785
    %v3798 = vunpack.c.l.b16 %v3786
    %v3799 = vunpack.c.h.b16 %v3786
    %v3800 = vpack.c.b16 %v3798, %v3796
    %v3801 = vpack.c.b16 %v3799, %v3797
    %v3802 = vrot.slane %v3800, 1
    %v3803 = vrot.slane %v3801, 1
    %v3806 = vpack.c.b16 %v3796, %v3788
    %v3807 = vpack.c.b16 %v3797, %v3789
    %v3808 = vrot.slane %v3806, 1
    %v3809 = vrot.slane %v3807, 1
    %v3812 = vrot.slane %v3800, 2
    %v3813 = vrot.slane %v3801, 2
    %s3816 = scalar_lea.vmem [#allocation8], 2048
    %v3817 = vld [vmem:[%s3816] sm:$0xff]
    %v3818 = vld [vmem:[%s3816 + $0x8] sm:$0xff]
    %v3819 = vld [vmem:[%s3816 + $0x10] sm:$0xff]
    %v3820 = vld [vmem:[%s3816 + $0x18] sm:$0xff]
    %v3821 = vld [vmem:[%s3816 + $0x20] sm:$0xff]
    %v3822 = vld [vmem:[%s3816 + $0x28] sm:$0xff]
    %v3823 = vld [vmem:[%s3816 + $0x30] sm:$0xff]
    %v3824 = vld [vmem:[%s3816 + $0x38] sm:$0xff]
    %v3825 = vld [vmem:[%s3816 + $0x40] sm:$0xff]
    %v3826 = vld [vmem:[%s3816 + $0x48] sm:$0xff]
    %v3827 = vld [vmem:[%s3816 + $0x50] sm:$0xff]
    %v3828 = vld [vmem:[%s3816 + $0x58] sm:$0xff]
    %v3829 = vld [vmem:[%s3816 + $0x60] sm:$0xff]
    %v3830 = vld [vmem:[%s3816 + $0x68] sm:$0xff]
    %v3831 = vld [vmem:[%s3816 + $0x70] sm:$0xff]
    %v3832 = vld [vmem:[%s3816 + $0x78] sm:$0xff]
    %v3833 = vld [vmem:[%s3816 + $0x80] sm:$0xff]
    %v3834 = vld [vmem:[%s3816 + $0x88] sm:$0xff]
    %v3835 = vld [vmem:[%s3816 + $0x90] sm:$0xff]
    %v3836 = vld [vmem:[%s3816 + $0x98] sm:$0xff]
    %v3837 = vld [vmem:[%s3816 + $0xa0] sm:$0xff]
    %v3838 = vld [vmem:[%s3816 + $0xa8] sm:$0xff]
    %v3839 = vld [vmem:[%s3816 + $0xb0] sm:$0xff]
    %v3840 = vld [vmem:[%s3816 + $0xb8] sm:$0xff]
    %v3841 = vld [vmem:[%s3816 + $0xc0] sm:$0xff]
    %v3842 = vld [vmem:[%s3816 + $0xc8] sm:$0xff]
    %v3843 = vld [vmem:[%s3816 + $0xd0] sm:$0xff]
    %v3844 = vld [vmem:[%s3816 + $0xd8] sm:$0xff]
    %v3845 = vld [vmem:[%s3816 + $0xe0] sm:$0xff]
    %v3846 = vld [vmem:[%s3816 + $0xe8] sm:$0xff]
    %v3847 = vld [vmem:[%s3816 + $0xf0] sm:$0xff]
    %v3848 = vld [vmem:[%s3816 + $0xf8] sm:$0xff]
    %v3849 = vld [vmem:[%s3816 + $0x100] sm:$0xff]
    %v3850 = vld [vmem:[%s3816 + $0x108] sm:$0xff]
    %v3851 = vld [vmem:[%s3816 + $0x110] sm:$0xff]
    %v3852 = vld [vmem:[%s3816 + $0x118] sm:$0xff]
    %v3853 = vld [vmem:[%s3816 + $0x120] sm:$0xff]
    %v3854 = vld [vmem:[%s3816 + $0x128] sm:$0xff]
    %v3855 = vld [vmem:[%s3816 + $0x130] sm:$0xff]
    %v3856 = vld [vmem:[%s3816 + $0x138] sm:$0xff]
    %v3857 = vld [vmem:[%s3816 + $0x140] sm:$0xff]
    %v3858 = vld [vmem:[%s3816 + $0x148] sm:$0xff]
    %v3859 = vld [vmem:[%s3816 + $0x150] sm:$0xff]
    %v3860 = vld [vmem:[%s3816 + $0x158] sm:$0xff]
    %v3861 = vld [vmem:[%s3816 + $0x160] sm:$0xff]
    %v3862 = vld [vmem:[%s3816 + $0x168] sm:$0xff]
    %v3863 = vld [vmem:[%s3816 + $0x170] sm:$0xff]
    %v3864 = vld [vmem:[%s3816 + $0x178] sm:$0xff]
    %v3865 = vld [vmem:[%s3816 + $0x180] sm:$0xff]
    %v3866 = vld [vmem:[%s3816 + $0x188] sm:$0xff]
    %v3867 = vld [vmem:[%s3816 + $0x190] sm:$0xff]
    %v3868 = vld [vmem:[%s3816 + $0x198] sm:$0xff]
    %v3869 = vld [vmem:[%s3816 + $0x1a0] sm:$0xff]
    %v3870 = vld [vmem:[%s3816 + $0x1a8] sm:$0xff]
    %v3871 = vld [vmem:[%s3816 + $0x1b0] sm:$0xff]
    %v3872 = vld [vmem:[%s3816 + $0x1b8] sm:$0xff]
    %v3873 = vld [vmem:[%s3816 + $0x1c0] sm:$0xff]
    %v3874 = vld [vmem:[%s3816 + $0x1c8] sm:$0xff]
    %v3875 = vld [vmem:[%s3816 + $0x1d0] sm:$0xff]
    %v3876 = vld [vmem:[%s3816 + $0x1d8] sm:$0xff]
    %v3877 = vld [vmem:[%s3816 + $0x1e0] sm:$0xff]
    %v3878 = vld [vmem:[%s3816 + $0x1e8] sm:$0xff]
    %v3879 = vld [vmem:[%s3816 + $0x1f0] sm:$0xff]
    %v3880 = vld [vmem:[%s3816 + $0x1f8] sm:$0xff]
    %v3881 = vld [vmem:[%s3816 + $0x200] sm:$0xff]
    %v3882 = vld [vmem:[%s3816 + $0x208] sm:$0xff]
    %v3883 = vld [vmem:[%s3816 + $0x210] sm:$0xff]
    %v3884 = vld [vmem:[%s3816 + $0x218] sm:$0xff]
    %v3885 = vld [vmem:[%s3816 + $0x220] sm:$0xff]
    %v3886 = vld [vmem:[%s3816 + $0x228] sm:$0xff]
    %v3887 = vld [vmem:[%s3816 + $0x230] sm:$0xff]
    %v3888 = vld [vmem:[%s3816 + $0x238] sm:$0xff]
    %v3889 = vld [vmem:[%s3816 + $0x240] sm:$0xff]
    %v3890 = vld [vmem:[%s3816 + $0x248] sm:$0xff]
    %v3891 = vld [vmem:[%s3816 + $0x250] sm:$0xff]
    %v3892 = vld [vmem:[%s3816 + $0x258] sm:$0xff]
    %v3893 = vld [vmem:[%s3816 + $0x260] sm:$0xff]
    %v3894 = vld [vmem:[%s3816 + $0x268] sm:$0xff]
    %v3895 = vld [vmem:[%s3816 + $0x270] sm:$0xff]
    %v3896 = vld [vmem:[%s3816 + $0x278] sm:$0xff]
    %v3897 = vld [vmem:[%s3816 + $0x280] sm:$0xff]
    %v3898 = vld [vmem:[%s3816 + $0x288] sm:$0xff]
    %v3899 = vld [vmem:[%s3816 + $0x290] sm:$0xff]
    %v3900 = vld [vmem:[%s3816 + $0x298] sm:$0xff]
    %v3901 = vld [vmem:[%s3816 + $0x2a0] sm:$0xff]
    %v3902 = vld [vmem:[%s3816 + $0x2a8] sm:$0xff]
    %v3903 = vld [vmem:[%s3816 + $0x2b0] sm:$0xff]
    %v3904 = vld [vmem:[%s3816 + $0x2b8] sm:$0xff]
    %v3905 = vld [vmem:[%s3816 + $0x2c0] sm:$0xff]
    %v3906 = vld [vmem:[%s3816 + $0x2c8] sm:$0xff]
    %v3907 = vld [vmem:[%s3816 + $0x2d0] sm:$0xff]
    %v3908 = vld [vmem:[%s3816 + $0x2d8] sm:$0xff]
    %v3909 = vld [vmem:[%s3816 + $0x2e0] sm:$0xff]
    %v3910 = vld [vmem:[%s3816 + $0x2e8] sm:$0xff]
    %v3911 = vld [vmem:[%s3816 + $0x2f0] sm:$0xff]
    %v3912 = vld [vmem:[%s3816 + $0x2f8] sm:$0xff]
    %v3913 = vld [vmem:[%s3816 + $0x300] sm:$0xff]
    %v3914 = vld [vmem:[%s3816 + $0x308] sm:$0xff]
    %v3915 = vld [vmem:[%s3816 + $0x310] sm:$0xff]
    %v3916 = vld [vmem:[%s3816 + $0x318] sm:$0xff]
    %v3917 = vld [vmem:[%s3816 + $0x320] sm:$0xff]
    %v3918 = vld [vmem:[%s3816 + $0x328] sm:$0xff]
    %v3919 = vld [vmem:[%s3816 + $0x330] sm:$0xff]
    %v3920 = vld [vmem:[%s3816 + $0x338] sm:$0xff]
    %v3921 = vld [vmem:[%s3816 + $0x340] sm:$0xff]
    %v3922 = vld [vmem:[%s3816 + $0x348] sm:$0xff]
    %v3923 = vld [vmem:[%s3816 + $0x350] sm:$0xff]
    %v3924 = vld [vmem:[%s3816 + $0x358] sm:$0xff]
    %v3925 = vld [vmem:[%s3816 + $0x360] sm:$0xff]
    %v3926 = vld [vmem:[%s3816 + $0x368] sm:$0xff]
    %v3927 = vld [vmem:[%s3816 + $0x370] sm:$0xff]
    %v3928 = vld [vmem:[%s3816 + $0x378] sm:$0xff]
    %v3929 = vld [vmem:[%s3816 + $0x380] sm:$0xff]
    %v3930 = vld [vmem:[%s3816 + $0x388] sm:$0xff]
    %v3931 = vld [vmem:[%s3816 + $0x390] sm:$0xff]
    %v3932 = vld [vmem:[%s3816 + $0x398] sm:$0xff]
    %v3933 = vld [vmem:[%s3816 + $0x3a0] sm:$0xff]
    %v3934 = vld [vmem:[%s3816 + $0x3a8] sm:$0xff]
    %v3935 = vld [vmem:[%s3816 + $0x3b0] sm:$0xff]
    %v3936 = vld [vmem:[%s3816 + $0x3b8] sm:$0xff]
    %v3937 = vld [vmem:[%s3816 + $0x3c0] sm:$0xff]
    %v3938 = vld [vmem:[%s3816 + $0x3c8] sm:$0xff]
    %v3939 = vld [vmem:[%s3816 + $0x3d0] sm:$0xff]
    %v3940 = vld [vmem:[%s3816 + $0x3d8] sm:$0xff]
    %v3941 = vld [vmem:[%s3816 + $0x3e0] sm:$0xff]
    %v3942 = vld [vmem:[%s3816 + $0x3e8] sm:$0xff]
    %v3943 = vld [vmem:[%s3816 + $0x3f0] sm:$0xff]
    %v3944 = vld [vmem:[%s3816 + $0x3f8] sm:$0xff]
    %v4073 = vunpack.c.l.b16 %v3817
    %v4074 = vunpack.c.h.b16 %v3817
    %v4075 = vunpack.c.l.b16 %v3818
    %v4076 = vunpack.c.h.b16 %v3818
    %v4077 = vunpack.c.l.b16 %v3819
    %v4078 = vunpack.c.h.b16 %v3819
    %v4079 = vunpack.c.l.b16 %v3820
    %v4080 = vunpack.c.h.b16 %v3820
    %v4081 = vunpack.c.l.b16 %v3821
    %v4082 = vunpack.c.h.b16 %v3821
    %v4083 = vunpack.c.l.b16 %v3822
    %v4084 = vunpack.c.h.b16 %v3822
    %v4085 = vunpack.c.l.b16 %v3823
    %v4086 = vunpack.c.h.b16 %v3823
    %v4087 = vunpack.c.l.b16 %v3824
    %v4088 = vunpack.c.h.b16 %v3824
    %v4089 = vunpack.c.l.b16 %v3825
    %v4090 = vunpack.c.h.b16 %v3825
    %v4091 = vunpack.c.l.b16 %v3826
    %v4092 = vunpack.c.h.b16 %v3826
    %v4093 = vunpack.c.l.b16 %v3827
    %v4094 = vunpack.c.h.b16 %v3827
    %v4095 = vunpack.c.l.b16 %v3828
    %v4096 = vunpack.c.h.b16 %v3828
    %v4097 = vunpack.c.l.b16 %v3829
    %v4098 = vunpack.c.h.b16 %v3829
    %v4099 = vunpack.c.l.b16 %v3830
    %v4100 = vunpack.c.h.b16 %v3830
    %v4101 = vunpack.c.l.b16 %v3831
    %v4102 = vunpack.c.h.b16 %v3831
    %v4103 = vunpack.c.l.b16 %v3832
    %v4104 = vunpack.c.h.b16 %v3832
    %v4105 = vunpack.c.l.b16 %v3833
    %v4106 = vunpack.c.h.b16 %v3833
    %v4107 = vunpack.c.l.b16 %v3834
    %v4108 = vunpack.c.h.b16 %v3834
    %v4109 = vunpack.c.l.b16 %v3835
    %v4110 = vunpack.c.h.b16 %v3835
    %v4111 = vunpack.c.l.b16 %v3836
    %v4112 = vunpack.c.h.b16 %v3836
    %v4113 = vunpack.c.l.b16 %v3837
    %v4114 = vunpack.c.h.b16 %v3837
    %v4115 = vunpack.c.l.b16 %v3838
    %v4116 = vunpack.c.h.b16 %v3838
    %v4117 = vunpack.c.l.b16 %v3839
    %v4118 = vunpack.c.h.b16 %v3839
    %v4119 = vunpack.c.l.b16 %v3840
    %v4120 = vunpack.c.h.b16 %v3840
    %v4121 = vunpack.c.l.b16 %v3841
    %v4122 = vunpack.c.h.b16 %v3841
    %v4123 = vunpack.c.l.b16 %v3842
    %v4124 = vunpack.c.h.b16 %v3842
    %v4125 = vunpack.c.l.b16 %v3843
    %v4126 = vunpack.c.h.b16 %v3843
    %v4127 = vunpack.c.l.b16 %v3844
    %v4128 = vunpack.c.h.b16 %v3844
    %v4129 = vunpack.c.l.b16 %v3845
    %v4130 = vunpack.c.h.b16 %v3845
    %v4131 = vunpack.c.l.b16 %v3846
    %v4132 = vunpack.c.h.b16 %v3846
    %v4133 = vunpack.c.l.b16 %v3847
    %v4134 = vunpack.c.h.b16 %v3847
    %v4135 = vunpack.c.l.b16 %v3848
    %v4136 = vunpack.c.h.b16 %v3848
    %v4137 = vunpack.c.l.b16 %v3849
    %v4138 = vunpack.c.h.b16 %v3849
    %v4139 = vunpack.c.l.b16 %v3850
    %v4140 = vunpack.c.h.b16 %v3850
    %v4141 = vunpack.c.l.b16 %v3851
    %v4142 = vunpack.c.h.b16 %v3851
    %v4143 = vunpack.c.l.b16 %v3852
    %v4144 = vunpack.c.h.b16 %v3852
    %v4145 = vunpack.c.l.b16 %v3853
    %v4146 = vunpack.c.h.b16 %v3853
    %v4147 = vunpack.c.l.b16 %v3854
    %v4148 = vunpack.c.h.b16 %v3854
    %v4149 = vunpack.c.l.b16 %v3855
    %v4150 = vunpack.c.h.b16 %v3855
    %v4151 = vunpack.c.l.b16 %v3856
    %v4152 = vunpack.c.h.b16 %v3856
    %v4153 = vunpack.c.l.b16 %v3857
    %v4154 = vunpack.c.h.b16 %v3857
    %v4155 = vunpack.c.l.b16 %v3858
    %v4156 = vunpack.c.h.b16 %v3858
    %v4157 = vunpack.c.l.b16 %v3859
    %v4158 = vunpack.c.h.b16 %v3859
    %v4159 = vunpack.c.l.b16 %v3860
    %v4160 = vunpack.c.h.b16 %v3860
    %v4161 = vunpack.c.l.b16 %v3861
    %v4162 = vunpack.c.h.b16 %v3861
    %v4163 = vunpack.c.l.b16 %v3862
    %v4164 = vunpack.c.h.b16 %v3862
    %v4165 = vunpack.c.l.b16 %v3863
    %v4166 = vunpack.c.h.b16 %v3863
    %v4167 = vunpack.c.l.b16 %v3864
    %v4168 = vunpack.c.h.b16 %v3864
    %v4169 = vunpack.c.l.b16 %v3865
    %v4170 = vunpack.c.h.b16 %v3865
    %v4171 = vunpack.c.l.b16 %v3866
    %v4172 = vunpack.c.h.b16 %v3866
    %v4173 = vunpack.c.l.b16 %v3867
    %v4174 = vunpack.c.h.b16 %v3867
    %v4175 = vunpack.c.l.b16 %v3868
    %v4176 = vunpack.c.h.b16 %v3868
    %v4177 = vunpack.c.l.b16 %v3869
    %v4178 = vunpack.c.h.b16 %v3869
    %v4179 = vunpack.c.l.b16 %v3870
    %v4180 = vunpack.c.h.b16 %v3870
    %v4181 = vunpack.c.l.b16 %v3871
    %v4182 = vunpack.c.h.b16 %v3871
    %v4183 = vunpack.c.l.b16 %v3872
    %v4184 = vunpack.c.h.b16 %v3872
    %v4185 = vunpack.c.l.b16 %v3873
    %v4186 = vunpack.c.h.b16 %v3873
    %v4187 = vunpack.c.l.b16 %v3874
    %v4188 = vunpack.c.h.b16 %v3874
    %v4189 = vunpack.c.l.b16 %v3875
    %v4190 = vunpack.c.h.b16 %v3875
    %v4191 = vunpack.c.l.b16 %v3876
    %v4192 = vunpack.c.h.b16 %v3876
    %v4193 = vunpack.c.l.b16 %v3877
    %v4194 = vunpack.c.h.b16 %v3877
    %v4195 = vunpack.c.l.b16 %v3878
    %v4196 = vunpack.c.h.b16 %v3878
    %v4197 = vunpack.c.l.b16 %v3879
    %v4198 = vunpack.c.h.b16 %v3879
    %v4199 = vunpack.c.l.b16 %v3880
    %v4200 = vunpack.c.h.b16 %v3880
    %v4201 = vunpack.c.l.b16 %v3881
    %v4202 = vunpack.c.h.b16 %v3881
    %v4203 = vunpack.c.l.b16 %v3882
    %v4204 = vunpack.c.h.b16 %v3882
    %v4205 = vunpack.c.l.b16 %v3883
    %v4206 = vunpack.c.h.b16 %v3883
    %v4207 = vunpack.c.l.b16 %v3884
    %v4208 = vunpack.c.h.b16 %v3884
    %v4209 = vunpack.c.l.b16 %v3885
    %v4210 = vunpack.c.h.b16 %v3885
    %v4211 = vunpack.c.l.b16 %v3886
    %v4212 = vunpack.c.h.b16 %v3886
    %v4213 = vunpack.c.l.b16 %v3887
    %v4214 = vunpack.c.h.b16 %v3887
    %v4215 = vunpack.c.l.b16 %v3888
    %v4216 = vunpack.c.h.b16 %v3888
    %v4217 = vunpack.c.l.b16 %v3889
    %v4218 = vunpack.c.h.b16 %v3889
    %v4219 = vunpack.c.l.b16 %v3890
    %v4220 = vunpack.c.h.b16 %v3890
    %v4221 = vunpack.c.l.b16 %v3891
    %v4222 = vunpack.c.h.b16 %v3891
    %v4223 = vunpack.c.l.b16 %v3892
    %v4224 = vunpack.c.h.b16 %v3892
    %v4225 = vunpack.c.l.b16 %v3893
    %v4226 = vunpack.c.h.b16 %v3893
    %v4227 = vunpack.c.l.b16 %v3894
    %v4228 = vunpack.c.h.b16 %v3894
    %v4229 = vunpack.c.l.b16 %v3895
    %v4230 = vunpack.c.h.b16 %v3895
    %v4231 = vunpack.c.l.b16 %v3896
    %v4232 = vunpack.c.h.b16 %v3896
    %v4233 = vunpack.c.l.b16 %v3897
    %v4234 = vunpack.c.h.b16 %v3897
    %v4235 = vunpack.c.l.b16 %v3898
    %v4236 = vunpack.c.h.b16 %v3898
    %v4237 = vunpack.c.l.b16 %v3899
    %v4238 = vunpack.c.h.b16 %v3899
    %v4239 = vunpack.c.l.b16 %v3900
    %v4240 = vunpack.c.h.b16 %v3900
    %v4241 = vunpack.c.l.b16 %v3901
    %v4242 = vunpack.c.h.b16 %v3901
    %v4243 = vunpack.c.l.b16 %v3902
    %v4244 = vunpack.c.h.b16 %v3902
    %v4245 = vunpack.c.l.b16 %v3903
    %v4246 = vunpack.c.h.b16 %v3903
    %v4247 = vunpack.c.l.b16 %v3904
    %v4248 = vunpack.c.h.b16 %v3904
    %v4249 = vunpack.c.l.b16 %v3905
    %v4250 = vunpack.c.h.b16 %v3905
    %v4251 = vunpack.c.l.b16 %v3906
    %v4252 = vunpack.c.h.b16 %v3906
    %v4253 = vunpack.c.l.b16 %v3907
    %v4254 = vunpack.c.h.b16 %v3907
    %v4255 = vunpack.c.l.b16 %v3908
    %v4256 = vunpack.c.h.b16 %v3908
    %v4257 = vunpack.c.l.b16 %v3909
    %v4258 = vunpack.c.h.b16 %v3909
    %v4259 = vunpack.c.l.b16 %v3910
    %v4260 = vunpack.c.h.b16 %v3910
    %v4261 = vunpack.c.l.b16 %v3911
    %v4262 = vunpack.c.h.b16 %v3911
    %v4263 = vunpack.c.l.b16 %v3912
    %v4264 = vunpack.c.h.b16 %v3912
    %v4265 = vunpack.c.l.b16 %v3913
    %v4266 = vunpack.c.h.b16 %v3913
    %v4267 = vunpack.c.l.b16 %v3914
    %v4268 = vunpack.c.h.b16 %v3914
    %v4269 = vunpack.c.l.b16 %v3915
    %v4270 = vunpack.c.h.b16 %v3915
    %v4271 = vunpack.c.l.b16 %v3916
    %v4272 = vunpack.c.h.b16 %v3916
    %v4273 = vunpack.c.l.b16 %v3917
    %v4274 = vunpack.c.h.b16 %v3917
    %v4275 = vunpack.c.l.b16 %v3918
    %v4276 = vunpack.c.h.b16 %v3918
    %v4277 = vunpack.c.l.b16 %v3919
    %v4278 = vunpack.c.h.b16 %v3919
    %v4279 = vunpack.c.l.b16 %v3920
    %v4280 = vunpack.c.h.b16 %v3920
    %v4281 = vunpack.c.l.b16 %v3921
    %v4282 = vunpack.c.h.b16 %v3921
    %v4283 = vunpack.c.l.b16 %v3922
    %v4284 = vunpack.c.h.b16 %v3922
    %v4285 = vunpack.c.l.b16 %v3923
    %v4286 = vunpack.c.h.b16 %v3923
    %v4287 = vunpack.c.l.b16 %v3924
    %v4288 = vunpack.c.h.b16 %v3924
    %v4289 = vunpack.c.l.b16 %v3925
    %v4290 = vunpack.c.h.b16 %v3925
    %v4291 = vunpack.c.l.b16 %v3926
    %v4292 = vunpack.c.h.b16 %v3926
    %v4293 = vunpack.c.l.b16 %v3927
    %v4294 = vunpack.c.h.b16 %v3927
    %v4295 = vunpack.c.l.b16 %v3928
    %v4296 = vunpack.c.h.b16 %v3928
    %v4297 = vunpack.c.l.b16 %v3929
    %v4298 = vunpack.c.h.b16 %v3929
    %v4299 = vunpack.c.l.b16 %v3930
    %v4300 = vunpack.c.h.b16 %v3930
    %v4301 = vunpack.c.l.b16 %v3931
    %v4302 = vunpack.c.h.b16 %v3931
    %v4303 = vunpack.c.l.b16 %v3932
    %v4304 = vunpack.c.h.b16 %v3932
    %v4305 = vunpack.c.l.b16 %v3933
    %v4306 = vunpack.c.h.b16 %v3933
    %v4307 = vunpack.c.l.b16 %v3934
    %v4308 = vunpack.c.h.b16 %v3934
    %v4309 = vunpack.c.l.b16 %v3935
    %v4310 = vunpack.c.h.b16 %v3935
    %v4311 = vunpack.c.l.b16 %v3936
    %v4312 = vunpack.c.h.b16 %v3936
    %v4313 = vunpack.c.l.b16 %v3937
    %v4314 = vunpack.c.h.b16 %v3937
    %v4315 = vunpack.c.l.b16 %v3938
    %v4316 = vunpack.c.h.b16 %v3938
    %v4317 = vunpack.c.l.b16 %v3939
    %v4318 = vunpack.c.h.b16 %v3939
    %v4319 = vunpack.c.l.b16 %v3940
    %v4320 = vunpack.c.h.b16 %v3940
    %v4321 = vunpack.c.l.b16 %v3941
    %v4322 = vunpack.c.h.b16 %v3941
    %v4323 = vunpack.c.l.b16 %v3942
    %v4324 = vunpack.c.h.b16 %v3942
    %v4325 = vunpack.c.l.b16 %v3943
    %v4326 = vunpack.c.h.b16 %v3943
    %v4327 = vunpack.c.l.b16 %v3944
    %v4328 = vunpack.c.h.b16 %v3944
    %v4329 = vpack.c.b16 %v4075, %v4073
    %v4330 = vpack.c.b16 %v4076, %v4074
    %v4331 = vpack.c.b16 %v4079, %v4077
    %v4332 = vpack.c.b16 %v4080, %v4078
    %v4333 = vpack.c.b16 %v4083, %v4081
    %v4334 = vpack.c.b16 %v4084, %v4082
    %v4335 = vpack.c.b16 %v4087, %v4085
    %v4336 = vpack.c.b16 %v4088, %v4086
    %v4337 = vpack.c.b16 %v4091, %v4089
    %v4338 = vpack.c.b16 %v4092, %v4090
    %v4339 = vpack.c.b16 %v4095, %v4093
    %v4340 = vpack.c.b16 %v4096, %v4094
    %v4341 = vpack.c.b16 %v4099, %v4097
    %v4342 = vpack.c.b16 %v4100, %v4098
    %v4343 = vpack.c.b16 %v4103, %v4101
    %v4344 = vpack.c.b16 %v4104, %v4102
    %v4345 = vpack.c.b16 %v4107, %v4105
    %v4346 = vpack.c.b16 %v4108, %v4106
    %v4347 = vpack.c.b16 %v4111, %v4109
    %v4348 = vpack.c.b16 %v4112, %v4110
    %v4349 = vpack.c.b16 %v4115, %v4113
    %v4350 = vpack.c.b16 %v4116, %v4114
    %v4351 = vpack.c.b16 %v4119, %v4117
    %v4352 = vpack.c.b16 %v4120, %v4118
    %v4353 = vpack.c.b16 %v4123, %v4121
    %v4354 = vpack.c.b16 %v4124, %v4122
    %v4355 = vpack.c.b16 %v4127, %v4125
    %v4356 = vpack.c.b16 %v4128, %v4126
    %v4357 = vpack.c.b16 %v4131, %v4129
    %v4358 = vpack.c.b16 %v4132, %v4130
    %v4359 = vpack.c.b16 %v4135, %v4133
    %v4360 = vpack.c.b16 %v4136, %v4134
    %v4361 = vpack.c.b16 %v4139, %v4137
    %v4362 = vpack.c.b16 %v4140, %v4138
    %v4363 = vpack.c.b16 %v4143, %v4141
    %v4364 = vpack.c.b16 %v4144, %v4142
    %v4365 = vpack.c.b16 %v4147, %v4145
    %v4366 = vpack.c.b16 %v4148, %v4146
    %v4367 = vpack.c.b16 %v4151, %v4149
    %v4368 = vpack.c.b16 %v4152, %v4150
    %v4369 = vpack.c.b16 %v4155, %v4153
    %v4370 = vpack.c.b16 %v4156, %v4154
    %v4371 = vpack.c.b16 %v4159, %v4157
    %v4372 = vpack.c.b16 %v4160, %v4158
    %v4373 = vpack.c.b16 %v4163, %v4161
    %v4374 = vpack.c.b16 %v4164, %v4162
    %v4375 = vpack.c.b16 %v4167, %v4165
    %v4376 = vpack.c.b16 %v4168, %v4166
    %v4377 = vpack.c.b16 %v4171, %v4169
    %v4378 = vpack.c.b16 %v4172, %v4170
    %v4379 = vpack.c.b16 %v4175, %v4173
    %v4380 = vpack.c.b16 %v4176, %v4174
    %v4381 = vpack.c.b16 %v4179, %v4177
    %v4382 = vpack.c.b16 %v4180, %v4178
    %v4383 = vpack.c.b16 %v4183, %v4181
    %v4384 = vpack.c.b16 %v4184, %v4182
    %v4385 = vpack.c.b16 %v4187, %v4185
    %v4386 = vpack.c.b16 %v4188, %v4186
    %v4387 = vpack.c.b16 %v4191, %v4189
    %v4388 = vpack.c.b16 %v4192, %v4190
    %v4389 = vpack.c.b16 %v4195, %v4193
    %v4390 = vpack.c.b16 %v4196, %v4194
    %v4391 = vpack.c.b16 %v4199, %v4197
    %v4392 = vpack.c.b16 %v4200, %v4198
    %v4393 = vpack.c.b16 %v4203, %v4201
    %v4394 = vpack.c.b16 %v4204, %v4202
    %v4395 = vpack.c.b16 %v4207, %v4205
    %v4396 = vpack.c.b16 %v4208, %v4206
    %v4397 = vpack.c.b16 %v4211, %v4209
    %v4398 = vpack.c.b16 %v4212, %v4210
    %v4399 = vpack.c.b16 %v4215, %v4213
    %v4400 = vpack.c.b16 %v4216, %v4214
    %v4401 = vpack.c.b16 %v4219, %v4217
    %v4402 = vpack.c.b16 %v4220, %v4218
    %v4403 = vpack.c.b16 %v4223, %v4221
    %v4404 = vpack.c.b16 %v4224, %v4222
    %v4405 = vpack.c.b16 %v4227, %v4225
    %v4406 = vpack.c.b16 %v4228, %v4226
    %v4407 = vpack.c.b16 %v4231, %v4229
    %v4408 = vpack.c.b16 %v4232, %v4230
    %v4409 = vpack.c.b16 %v4235, %v4233
    %v4410 = vpack.c.b16 %v4236, %v4234
    %v4411 = vpack.c.b16 %v4239, %v4237
    %v4412 = vpack.c.b16 %v4240, %v4238
    %v4413 = vpack.c.b16 %v4243, %v4241
    %v4414 = vpack.c.b16 %v4244, %v4242
    %v4415 = vpack.c.b16 %v4247, %v4245
    %v4416 = vpack.c.b16 %v4248, %v4246
    %v4417 = vpack.c.b16 %v4251, %v4249
    %v4418 = vpack.c.b16 %v4252, %v4250
    %v4419 = vpack.c.b16 %v4255, %v4253
    %v4420 = vpack.c.b16 %v4256, %v4254
    %v4421 = vpack.c.b16 %v4259, %v4257
    %v4422 = vpack.c.b16 %v4260, %v4258
    %v4423 = vpack.c.b16 %v4263, %v4261
    %v4424 = vpack.c.b16 %v4264, %v4262
    %v4425 = vpack.c.b16 %v4267, %v4265
    %v4426 = vpack.c.b16 %v4268, %v4266
    %v4427 = vpack.c.b16 %v4271, %v4269
    %v4428 = vpack.c.b16 %v4272, %v4270
    %v4429 = vpack.c.b16 %v4275, %v4273
    %v4430 = vpack.c.b16 %v4276, %v4274
    %v4431 = vpack.c.b16 %v4279, %v4277
    %v4432 = vpack.c.b16 %v4280, %v4278
    %v4433 = vpack.c.b16 %v4283, %v4281
    %v4434 = vpack.c.b16 %v4284, %v4282
    %v4435 = vpack.c.b16 %v4287, %v4285
    %v4436 = vpack.c.b16 %v4288, %v4286
    %v4437 = vpack.c.b16 %v4291, %v4289
    %v4438 = vpack.c.b16 %v4292, %v4290
    %v4439 = vpack.c.b16 %v4295, %v4293
    %v4440 = vpack.c.b16 %v4296, %v4294
    %v4441 = vpack.c.b16 %v4299, %v4297
    %v4442 = vpack.c.b16 %v4300, %v4298
    %v4443 = vpack.c.b16 %v4303, %v4301
    %v4444 = vpack.c.b16 %v4304, %v4302
    %v4445 = vpack.c.b16 %v4307, %v4305
    %v4446 = vpack.c.b16 %v4308, %v4306
    %v4447 = vpack.c.b16 %v4311, %v4309
    %v4448 = vpack.c.b16 %v4312, %v4310
    %v4449 = vpack.c.b16 %v4315, %v4313
    %v4450 = vpack.c.b16 %v4316, %v4314
    %v4451 = vpack.c.b16 %v4319, %v4317
    %v4452 = vpack.c.b16 %v4320, %v4318
    %v4453 = vpack.c.b16 %v4323, %v4321
    %v4454 = vpack.c.b16 %v4324, %v4322
    %v4455 = vpack.c.b16 %v4327, %v4325
    %v4456 = vpack.c.b16 %v4328, %v4326
    %4585 = vmatpush.bf16.msra.mxu0 %v4343
    %4586 = vmatpush.bf16.msra.mxu0 %v4341
    %4587 = vmatpush.bf16.msra.mxu0 %v4339
    %4588 = vmatpush.bf16.msra.mxu0 %v4337
    %4589 = vmatpush.bf16.msra.mxu0 %v4335
    %4590 = vmatpush.bf16.msra.mxu0 %v4333
    %4591 = vmatpush.bf16.msra.mxu0 %v4331
    %4592 = vmatpush.bf16.msra.mxu0 %v4329
    %4593 = vmatmul.bf16.gmra.mxu0 %v3790
    %v4594 = vpop.f32.mrf.mxu0
    %v4595 = vadd.f32 0.0, %v4594
    %v4596 = vpop.f32.mrf.mxu0
    %4597 = vdwg.mxu0
    %4598 = vmatpush.bf16.msra.mxu0 %v4359
    %4599 = vmatpush.bf16.msra.mxu0 %v4357
    %4600 = vmatpush.bf16.msra.mxu0 %v4355
    %4601 = vmatpush.bf16.msra.mxu0 %v4353
    %4602 = vmatpush.bf16.msra.mxu0 %v4351
    %4603 = vmatpush.bf16.msra.mxu0 %v4349
    %4604 = vmatpush.bf16.msra.mxu0 %v4347
    %4605 = vmatpush.bf16.msra.mxu0 %v4345
    %4606 = vmatmul.bf16.gmra.mxu0 %v3791
    %v4607 = vpop.f32.mrf.mxu0
    %v4608 = vadd.f32 %v4595, %v4607
    %v4609 = vpop.f32.mrf.mxu0
    %4610 = vdwg.mxu0
    %4611 = vmatpush.bf16.msra.mxu0 %v4375
    %4612 = vmatpush.bf16.msra.mxu0 %v4373
    %4613 = vmatpush.bf16.msra.mxu0 %v4371
    %4614 = vmatpush.bf16.msra.mxu0 %v4369
    %4615 = vmatpush.bf16.msra.mxu0 %v4367
    %4616 = vmatpush.bf16.msra.mxu0 %v4365
    %4617 = vmatpush.bf16.msra.mxu0 %v4363
    %4618 = vmatpush.bf16.msra.mxu0 %v4361
    %4619 = vmatmul.bf16.gmra.mxu0 %v3802
    %v4620 = vpop.f32.mrf.mxu0
    %v4621 = vadd.f32 %v4608, %v4620
    %v4622 = vpop.f32.mrf.mxu0
    %4623 = vdwg.mxu0
    %4624 = vmatpush.bf16.msra.mxu0 %v4391
    %4625 = vmatpush.bf16.msra.mxu0 %v4389
    %4626 = vmatpush.bf16.msra.mxu0 %v4387
    %4627 = vmatpush.bf16.msra.mxu0 %v4385
    %4628 = vmatpush.bf16.msra.mxu0 %v4383
    %4629 = vmatpush.bf16.msra.mxu0 %v4381
    %4630 = vmatpush.bf16.msra.mxu0 %v4379
    %4631 = vmatpush.bf16.msra.mxu0 %v4377
    %4632 = vmatmul.bf16.gmra.mxu0 %v3803
    %v4633 = vpop.f32.mrf.mxu0
    %v4634 = vadd.f32 %v4621, %v4633
    %v4635 = vpop.f32.mrf.mxu0
    %4636 = vdwg.mxu0
    %4637 = vmatpush.bf16.msra.mxu0 %v4407
    %4638 = vmatpush.bf16.msra.mxu0 %v4405
    %4639 = vmatpush.bf16.msra.mxu0 %v4403
    %4640 = vmatpush.bf16.msra.mxu0 %v4401
    %4641 = vmatpush.bf16.msra.mxu0 %v4399
    %4642 = vmatpush.bf16.msra.mxu0 %v4397
    %4643 = vmatpush.bf16.msra.mxu0 %v4395
    %4644 = vmatpush.bf16.msra.mxu0 %v4393
    %4645 = vmatmul.bf16.gmra.mxu0 %v3808
    %v4646 = vpop.f32.mrf.mxu0
    %v4647 = vadd.f32 %v4634, %v4646
    %v4648 = vpop.f32.mrf.mxu0
    %4649 = vdwg.mxu0
    %4650 = vmatpush.bf16.msra.mxu0 %v4423
    %4651 = vmatpush.bf16.msra.mxu0 %v4421
    %4652 = vmatpush.bf16.msra.mxu0 %v4419
    %4653 = vmatpush.bf16.msra.mxu0 %v4417
    %4654 = vmatpush.bf16.msra.mxu0 %v4415
    %4655 = vmatpush.bf16.msra.mxu0 %v4413
    %4656 = vmatpush.bf16.msra.mxu0 %v4411
    %4657 = vmatpush.bf16.msra.mxu0 %v4409
    %4658 = vmatmul.bf16.gmra.mxu0 %v3809
    %v4659 = vpop.f32.mrf.mxu0
    %v4660 = vadd.f32 %v4647, %v4659
    %v4661 = vpop.f32.mrf.mxu0
    %4662 = vdwg.mxu0
    %4663 = vmatpush.bf16.msra.mxu0 %v4439
    %4664 = vmatpush.bf16.msra.mxu0 %v4437
    %4665 = vmatpush.bf16.msra.mxu0 %v4435
    %4666 = vmatpush.bf16.msra.mxu0 %v4433
    %4667 = vmatpush.bf16.msra.mxu0 %v4431
    %4668 = vmatpush.bf16.msra.mxu0 %v4429
    %4669 = vmatpush.bf16.msra.mxu0 %v4427
    %4670 = vmatpush.bf16.msra.mxu0 %v4425
    %4671 = vmatmul.bf16.gmra.mxu0 %v3812
    %v4672 = vpop.f32.mrf.mxu0
    %v4673 = vadd.f32 %v4660, %v4672
    %v4674 = vpop.f32.mrf.mxu0
    %4675 = vdwg.mxu0
    %4676 = vmatpush.bf16.msra.mxu0 %v4455
    %4677 = vmatpush.bf16.msra.mxu0 %v4453
    %4678 = vmatpush.bf16.msra.mxu0 %v4451
    %4679 = vmatpush.bf16.msra.mxu0 %v4449
    %4680 = vmatpush.bf16.msra.mxu0 %v4447
    %4681 = vmatpush.bf16.msra.mxu0 %v4445
    %4682 = vmatpush.bf16.msra.mxu0 %v4443
    %4683 = vmatpush.bf16.msra.mxu0 %v4441
    %4684 = vmatmul.bf16.gmra.mxu0 %v3813
    %v4685 = vpop.f32.mrf.mxu0
    %v4686 = vadd.f32 %v4673, %v4685
    %v4687 = vpop.f32.mrf.mxu0
    %4688 = vdwg.mxu0
    %4689 = vmatpush.bf16.msra.mxu0 %v4344
    %4690 = vmatpush.bf16.msra.mxu0 %v4342
    %4691 = vmatpush.bf16.msra.mxu0 %v4340
    %4692 = vmatpush.bf16.msra.mxu0 %v4338
    %4693 = vmatpush.bf16.msra.mxu0 %v4336
    %4694 = vmatpush.bf16.msra.mxu0 %v4334
    %4695 = vmatpush.bf16.msra.mxu0 %v4332
    %4696 = vmatpush.bf16.msra.mxu0 %v4330
    %4697 = vmatmul.bf16.gmra.mxu0 %v3790
    %v4698 = vpop.f32.mrf.mxu0
    %v4699 = vadd.f32 0.0, %v4698
    %v4700 = vpop.f32.mrf.mxu0
    %4701 = vdwg.mxu0
    %4702 = vmatpush.bf16.msra.mxu0 %v4360
    %4703 = vmatpush.bf16.msra.mxu0 %v4358
    %4704 = vmatpush.bf16.msra.mxu0 %v4356
    %4705 = vmatpush.bf16.msra.mxu0 %v4354
    %4706 = vmatpush.bf16.msra.mxu0 %v4352
    %4707 = vmatpush.bf16.msra.mxu0 %v4350
    %4708 = vmatpush.bf16.msra.mxu0 %v4348
    %4709 = vmatpush.bf16.msra.mxu0 %v4346
    %4710 = vmatmul.bf16.gmra.mxu0 %v3791
    %v4711 = vpop.f32.mrf.mxu0
    %v4712 = vadd.f32 %v4699, %v4711
    %v4713 = vpop.f32.mrf.mxu0
    %4714 = vdwg.mxu0
    %4715 = vmatpush.bf16.msra.mxu0 %v4376
    %4716 = vmatpush.bf16.msra.mxu0 %v4374
    %4717 = vmatpush.bf16.msra.mxu0 %v4372
    %4718 = vmatpush.bf16.msra.mxu0 %v4370
    %4719 = vmatpush.bf16.msra.mxu0 %v4368
    %4720 = vmatpush.bf16.msra.mxu0 %v4366
    %4721 = vmatpush.bf16.msra.mxu0 %v4364
    %4722 = vmatpush.bf16.msra.mxu0 %v4362
    %4723 = vmatmul.bf16.gmra.mxu0 %v3802
    %v4724 = vpop.f32.mrf.mxu0
    %v4725 = vadd.f32 %v4712, %v4724
    %v4726 = vpop.f32.mrf.mxu0
    %4727 = vdwg.mxu0
    %4728 = vmatpush.bf16.msra.mxu0 %v4392
    %4729 = vmatpush.bf16.msra.mxu0 %v4390
    %4730 = vmatpush.bf16.msra.mxu0 %v4388
    %4731 = vmatpush.bf16.msra.mxu0 %v4386
    %4732 = vmatpush.bf16.msra.mxu0 %v4384
    %4733 = vmatpush.bf16.msra.mxu0 %v4382
    %4734 = vmatpush.bf16.msra.mxu0 %v4380
    %4735 = vmatpush.bf16.msra.mxu0 %v4378
    %4736 = vmatmul.bf16.gmra.mxu0 %v3803
    %v4737 = vpop.f32.mrf.mxu0
    %v4738 = vadd.f32 %v4725, %v4737
    %v4739 = vpop.f32.mrf.mxu0
    %4740 = vdwg.mxu0
    %4741 = vmatpush.bf16.msra.mxu0 %v4408
    %4742 = vmatpush.bf16.msra.mxu0 %v4406
    %4743 = vmatpush.bf16.msra.mxu0 %v4404
    %4744 = vmatpush.bf16.msra.mxu0 %v4402
    %4745 = vmatpush.bf16.msra.mxu0 %v4400
    %4746 = vmatpush.bf16.msra.mxu0 %v4398
    %4747 = vmatpush.bf16.msra.mxu0 %v4396
    %4748 = vmatpush.bf16.msra.mxu0 %v4394
    %4749 = vmatmul.bf16.gmra.mxu0 %v3808
    %v4750 = vpop.f32.mrf.mxu0
    %v4751 = vadd.f32 %v4738, %v4750
    %v4752 = vpop.f32.mrf.mxu0
    %4753 = vdwg.mxu0
    %4754 = vmatpush.bf16.msra.mxu0 %v4424
    %4755 = vmatpush.bf16.msra.mxu0 %v4422
    %4756 = vmatpush.bf16.msra.mxu0 %v4420
    %4757 = vmatpush.bf16.msra.mxu0 %v4418
    %4758 = vmatpush.bf16.msra.mxu0 %v4416
    %4759 = vmatpush.bf16.msra.mxu0 %v4414
    %4760 = vmatpush.bf16.msra.mxu0 %v4412
    %4761 = vmatpush.bf16.msra.mxu0 %v4410
    %4762 = vmatmul.bf16.gmra.mxu0 %v3809
    %v4763 = vpop.f32.mrf.mxu0
    %v4764 = vadd.f32 %v4751, %v4763
    %v4765 = vpop.f32.mrf.mxu0
    %4766 = vdwg.mxu0
    %4767 = vmatpush.bf16.msra.mxu0 %v4440
    %4768 = vmatpush.bf16.msra.mxu0 %v4438
    %4769 = vmatpush.bf16.msra.mxu0 %v4436
    %4770 = vmatpush.bf16.msra.mxu0 %v4434
    %4771 = vmatpush.bf16.msra.mxu0 %v4432
    %4772 = vmatpush.bf16.msra.mxu0 %v4430
    %4773 = vmatpush.bf16.msra.mxu0 %v4428
    %4774 = vmatpush.bf16.msra.mxu0 %v4426
    %4775 = vmatmul.bf16.gmra.mxu0 %v3812
    %v4776 = vpop.f32.mrf.mxu0
    %v4777 = vadd.f32 %v4764, %v4776
    %v4778 = vpop.f32.mrf.mxu0
    %4779 = vdwg.mxu0
    %4780 = vmatpush.bf16.msra.mxu0 %v4456
    %4781 = vmatpush.bf16.msra.mxu0 %v4454
    %4782 = vmatpush.bf16.msra.mxu0 %v4452
    %4783 = vmatpush.bf16.msra.mxu0 %v4450
    %4784 = vmatpush.bf16.msra.mxu0 %v4448
    %4785 = vmatpush.bf16.msra.mxu0 %v4446
    %4786 = vmatpush.bf16.msra.mxu0 %v4444
    %4787 = vmatpush.bf16.msra.mxu0 %v4442
    %4788 = vmatmul.bf16.gmra.mxu0 %v3813
    %v4789 = vpop.f32.mrf.mxu0
    %v4790 = vadd.f32 %v4777, %v4789
    %v4791 = vpop.f32.mrf.mxu0
    %4792 = vdwg.mxu0
    %s4793 = scalar_lea.vmem [#allocation10], 1024
    %v4794 = vld [vmem:[%s4793] sm:$0xff]
    %v4795 = vld [vmem:[%s4793 + $0x8] sm:$0xff]
    %v4796 = vld [vmem:[%s4793 + $0x10] sm:$0xff]
    %v4797 = vld [vmem:[%s4793 + $0x18] sm:$0xff]
    %v4798 = vld [vmem:[%s4793 + $0x20] sm:$0xff]
    %v4799 = vld [vmem:[%s4793 + $0x28] sm:$0xff]
    %v4800 = vld [vmem:[%s4793 + $0x30] sm:$0xff]
    %v4801 = vld [vmem:[%s4793 + $0x38] sm:$0xff]
    %v4802 = vld [vmem:[%s4793 + $0x40] sm:$0xff]
    %v4803 = vld [vmem:[%s4793 + $0x48] sm:$0xff]
    %v4804 = vld [vmem:[%s4793 + $0x50] sm:$0xff]
    %v4805 = vld [vmem:[%s4793 + $0x58] sm:$0xff]
    %v4806 = vld [vmem:[%s4793 + $0x60] sm:$0xff]
    %v4807 = vld [vmem:[%s4793 + $0x68] sm:$0xff]
    %v4808 = vld [vmem:[%s4793 + $0x70] sm:$0xff]
    %v4809 = vld [vmem:[%s4793 + $0x78] sm:$0xff]
    %v4810 = vld [vmem:[%s4793 + $0x80] sm:$0xff]
    %v4811 = vld [vmem:[%s4793 + $0x88] sm:$0xff]
    %v4812 = vld [vmem:[%s4793 + $0x90] sm:$0xff]
    %v4813 = vld [vmem:[%s4793 + $0x98] sm:$0xff]
    %v4814 = vld [vmem:[%s4793 + $0xa0] sm:$0xff]
    %v4815 = vld [vmem:[%s4793 + $0xa8] sm:$0xff]
    %v4816 = vld [vmem:[%s4793 + $0xb0] sm:$0xff]
    %v4817 = vld [vmem:[%s4793 + $0xb8] sm:$0xff]
    %v4818 = vld [vmem:[%s4793 + $0xc0] sm:$0xff]
    %v4819 = vld [vmem:[%s4793 + $0xc8] sm:$0xff]
    %v4820 = vld [vmem:[%s4793 + $0xd0] sm:$0xff]
    %v4821 = vld [vmem:[%s4793 + $0xd8] sm:$0xff]
    %v4822 = vld [vmem:[%s4793 + $0xe0] sm:$0xff]
    %v4823 = vld [vmem:[%s4793 + $0xe8] sm:$0xff]
    %v4824 = vld [vmem:[%s4793 + $0xf0] sm:$0xff]
    %v4825 = vld [vmem:[%s4793 + $0xf8] sm:$0xff]
    %v4826 = vld [vmem:[%s4793 + $0x100] sm:$0xff]
    %v4827 = vld [vmem:[%s4793 + $0x108] sm:$0xff]
    %v4828 = vld [vmem:[%s4793 + $0x110] sm:$0xff]
    %v4829 = vld [vmem:[%s4793 + $0x118] sm:$0xff]
    %v4830 = vld [vmem:[%s4793 + $0x120] sm:$0xff]
    %v4831 = vld [vmem:[%s4793 + $0x128] sm:$0xff]
    %v4832 = vld [vmem:[%s4793 + $0x130] sm:$0xff]
    %v4833 = vld [vmem:[%s4793 + $0x138] sm:$0xff]
    %v4834 = vld [vmem:[%s4793 + $0x140] sm:$0xff]
    %v4835 = vld [vmem:[%s4793 + $0x148] sm:$0xff]
    %v4836 = vld [vmem:[%s4793 + $0x150] sm:$0xff]
    %v4837 = vld [vmem:[%s4793 + $0x158] sm:$0xff]
    %v4838 = vld [vmem:[%s4793 + $0x160] sm:$0xff]
    %v4839 = vld [vmem:[%s4793 + $0x168] sm:$0xff]
    %v4840 = vld [vmem:[%s4793 + $0x170] sm:$0xff]
    %v4841 = vld [vmem:[%s4793 + $0x178] sm:$0xff]
    %v4842 = vld [vmem:[%s4793 + $0x180] sm:$0xff]
    %v4843 = vld [vmem:[%s4793 + $0x188] sm:$0xff]
    %v4844 = vld [vmem:[%s4793 + $0x190] sm:$0xff]
    %v4845 = vld [vmem:[%s4793 + $0x198] sm:$0xff]
    %v4846 = vld [vmem:[%s4793 + $0x1a0] sm:$0xff]
    %v4847 = vld [vmem:[%s4793 + $0x1a8] sm:$0xff]
    %v4848 = vld [vmem:[%s4793 + $0x1b0] sm:$0xff]
    %v4849 = vld [vmem:[%s4793 + $0x1b8] sm:$0xff]
    %v4850 = vld [vmem:[%s4793 + $0x1c0] sm:$0xff]
    %v4851 = vld [vmem:[%s4793 + $0x1c8] sm:$0xff]
    %v4852 = vld [vmem:[%s4793 + $0x1d0] sm:$0xff]
    %v4853 = vld [vmem:[%s4793 + $0x1d8] sm:$0xff]
    %v4854 = vld [vmem:[%s4793 + $0x1e0] sm:$0xff]
    %v4855 = vld [vmem:[%s4793 + $0x1e8] sm:$0xff]
    %v4856 = vld [vmem:[%s4793 + $0x1f0] sm:$0xff]
    %v4857 = vld [vmem:[%s4793 + $0x1f8] sm:$0xff]
    %s4858 = scalar_lea.vmem [#allocation11], 8
    %v4859 = vld [vmem:[%s4858] sm:$0xf]
    %v4860 = vrot.slane %v4686, 4
    %v4861 = vadd.f32 %v4686, %v4860
    %v4862 = vrot.slane %v4861, 2
    %v4863 = vadd.f32 %v4861, %v4862
    %v4864 = vrot.slane %v4863, 1
    %v4865 = vadd.f32 %v4863, %v4864
    %v4866 = vrot.slane %v4790, 4
    %v4867 = vadd.f32 %v4790, %v4866
    %v4868 = vrot.slane %v4867, 2
    %v4869 = vadd.f32 %v4867, %v4868
    %v4870 = vrot.slane %v4869, 1
    %v4871 = vadd.f32 %v4869, %v4870
    %v4872 = vmul.f32 %v4686, %v4686
    %v4873 = vmul.f32 %v4790, %v4790
    %v4874 = vrot.slane %v4872, 4
    %v4875 = vadd.f32 %v4872, %v4874
    %v4876 = vrot.slane %v4875, 2
    %v4877 = vadd.f32 %v4875, %v4876
    %v4878 = vrot.slane %v4877, 1
    %v4879 = vadd.f32 %v4877, %v4878
    %v4880 = vrot.slane %v4873, 4
    %v4881 = vadd.f32 %v4873, %v4880
    %v4882 = vrot.slane %v4881, 2
    %v4883 = vadd.f32 %v4881, %v4882
    %v4884 = vrot.slane %v4883, 1
    %v4885 = vadd.f32 %v4883, %v4884
    %v4886 = vsel %vm2140, %v4865, %v4879
    %v4887 = vsel %vm2140, %v4871, %v4885
    %4888 = vmatpush.msra.mxu0 %v4824
    %4889 = vmatpush.msra.mxu0 %v4822
    %4890 = vmatpush.msra.mxu0 %v4820
    %4891 = vmatpush.msra.mxu0 %v4818
    %4892 = vmatpush.msra.mxu0 %v4816
    %4893 = vmatpush.msra.mxu0 %v4814
    %4894 = vmatpush.msra.mxu0 %v4812
    %4895 = vmatpush.msra.mxu0 %v4810
    %4896 = vmatpush.msra.mxu0 %v4808
    %4897 = vmatpush.msra.mxu0 %v4806
    %4898 = vmatpush.msra.mxu0 %v4804
    %4899 = vmatpush.msra.mxu0 %v4802
    %4900 = vmatpush.msra.mxu0 %v4800
    %4901 = vmatpush.msra.mxu0 %v4798
    %4902 = vmatpush.msra.mxu0 %v4796
    %4903 = vmatpush.msra.mxu0 %v4794
    %4904 = vmatmul.f32.gmra.mxu0 %v4886
    %v4905 = vpop.f32.mrf.mxu0
    %v4906 = vadd.f32 0.0, %v4905
    %4907 = vdwg.mxu0
    %4908 = vmatpush.msra.mxu0 %v4856
    %4909 = vmatpush.msra.mxu0 %v4854
    %4910 = vmatpush.msra.mxu0 %v4852
    %4911 = vmatpush.msra.mxu0 %v4850
    %4912 = vmatpush.msra.mxu0 %v4848
    %4913 = vmatpush.msra.mxu0 %v4846
    %4914 = vmatpush.msra.mxu0 %v4844
    %4915 = vmatpush.msra.mxu0 %v4842
    %4916 = vmatpush.msra.mxu0 %v4840
    %4917 = vmatpush.msra.mxu0 %v4838
    %4918 = vmatpush.msra.mxu0 %v4836
    %4919 = vmatpush.msra.mxu0 %v4834
    %4920 = vmatpush.msra.mxu0 %v4832
    %4921 = vmatpush.msra.mxu0 %v4830
    %4922 = vmatpush.msra.mxu0 %v4828
    %4923 = vmatpush.msra.mxu0 %v4826
    %4924 = vmatmul.f32.gmra.mxu0 %v4887
    %v4925 = vpop.f32.mrf.mxu0
    %v4926 = vadd.f32 %v4906, %v4925
    %4927 = vdwg.mxu0
    %4928 = vmatpush.msra.mxu0 %v4825
    %4929 = vmatpush.msra.mxu0 %v4823
    %4930 = vmatpush.msra.mxu0 %v4821
    %4931 = vmatpush.msra.mxu0 %v4819
    %4932 = vmatpush.msra.mxu0 %v4817
    %4933 = vmatpush.msra.mxu0 %v4815
    %4934 = vmatpush.msra.mxu0 %v4813
    %4935 = vmatpush.msra.mxu0 %v4811
    %4936 = vmatpush.msra.mxu0 %v4809
    %4937 = vmatpush.msra.mxu0 %v4807
    %4938 = vmatpush.msra.mxu0 %v4805
    %4939 = vmatpush.msra.mxu0 %v4803
    %4940 = vmatpush.msra.mxu0 %v4801
    %4941 = vmatpush.msra.mxu0 %v4799
    %4942 = vmatpush.msra.mxu0 %v4797
    %4943 = vmatpush.msra.mxu0 %v4795
    %4944 = vmatmul.f32.gmra.mxu0 %v4886
    %v4945 = vpop.f32.mrf.mxu0
    %v4946 = vadd.f32 0.0, %v4945
    %4947 = vdwg.mxu0
    %4948 = vmatpush.msra.mxu0 %v4857
    %4949 = vmatpush.msra.mxu0 %v4855
    %4950 = vmatpush.msra.mxu0 %v4853
    %4951 = vmatpush.msra.mxu0 %v4851
    %4952 = vmatpush.msra.mxu0 %v4849
    %4953 = vmatpush.msra.mxu0 %v4847
    %4954 = vmatpush.msra.mxu0 %v4845
    %4955 = vmatpush.msra.mxu0 %v4843
    %4956 = vmatpush.msra.mxu0 %v4841
    %4957 = vmatpush.msra.mxu0 %v4839
    %4958 = vmatpush.msra.mxu0 %v4837
    %4959 = vmatpush.msra.mxu0 %v4835
    %4960 = vmatpush.msra.mxu0 %v4833
    %4961 = vmatpush.msra.mxu0 %v4831
    %4962 = vmatpush.msra.mxu0 %v4829
    %4963 = vmatpush.msra.mxu0 %v4827
    %4964 = vmatmul.f32.gmra.mxu0 %v4887
    %v4965 = vpop.f32.mrf.mxu0
    %v4966 = vadd.f32 %v4946, %v4965
    %4967 = vdwg.mxu0
    %v4968 = vmul.f32 %v4926, %v4926
    %v4969 = vmul.f32 %v4966, %v4966
    %v4972 = vrot.slane %v4968, 7
    %v4973 = vrot.slane %v4969, 7
    %v4976 = vsub.f32 %v4926, %v4972
    %v4977 = vsub.f32 %v4966, %v4973
    %v4978 = vmax.f32 %v4976, 0.0
    %v4979 = vmax.f32 %v4977, 0.0
    %v4980 = vadd.f32 %v4978, 1e-05
    %v4981 = vadd.f32 %v4979, 1e-05
    %v4982 = vrsqrt.pop %v4980
    %v4983 = vmul.f32 %v4982, %v4980
    %v4984 = vmul.f32 %v4983, %v4982
    %v4985 = vmul.f32 0.5, %v4984
    %v4986 = vsub.f32 1.5, %v4985
    %v4987 = vmul.f32 %v4982, %v4986
    %vm4988 = vweird.f32 %v4980
    %vm4989 = vweird.f32 %v4982
    %vm4990 = vmor %vm4988, %vm4989
    %v4991 = vsel %vm4990, %v4982, %v4987
    %v4992 = vrsqrt.pop %v4981
    %v4993 = vmul.f32 %v4992, %v4981
    %v4994 = vmul.f32 %v4993, %v4992
    %v4995 = vmul.f32 0.5, %v4994
    %v4996 = vsub.f32 1.5, %v4995
    %v4997 = vmul.f32 %v4992, %v4996
    %vm4998 = vweird.f32 %v4981
    %vm4999 = vweird.f32 %v4992
    %vm5000 = vmor %vm4998, %vm4999
    %v5001 = vsel %vm5000, %v4992, %v4997
    %v5004 = vrot.slane %v5001, 6
    %v5005 = vsel %vm2260, %v4991, %v5004
    %v5006 = vrot.slane %v5005, 7
    %v5007 = vrot.slane %v5006, 2
    %v5009 = vmul.f32 %v4859, %v5007
    %v5011 = vperm.slane %v5009, 0
    %v5012 = vperm.slane %v5009, 2
    %v5015 = vmul.f32 %v4926, %v5011
    %v5016 = vmul.f32 %v4966, %v5012
    %v5019 = vrot.slane %v5016, 6
    %v5020 = vsel %vm2260, %v5015, %v5019
    %v5021 = vrot.slane %v5020, 7
    %v5023 = vsub.f32 %v4859, %v5021
    %v5024 = vperm.slane %v5011, 0
    %v5025 = vperm.slane %v5012, 0
    %v5026 = vmul.f32 %v4686, %v5024
    %v5027 = vmul.f32 %v4790, %v5025
    %v5029 = vperm.slane %v5023, 1
    %v5030 = vperm.slane %v5023, 3
    %v5033 = vperm.slane %v5029, 1
    %v5034 = vperm.slane %v5030, 1
    %v5035 = vadd.f32 %v5026, %v5033
    %v5036 = vadd.f32 %v5027, %v5034
    %vm5037 = vcmp.ge.f32.partialorder %v5035, 0.0
    %vm5038 = vcmp.ge.f32.partialorder %v5036, 0.0
    %v5039 = vmul.f32 %v5035, 0.2
    %v5040 = vmul.f32 %v5036, 0.2
    %v5041 = vsel %vm5037, %v5035, %v5039
    %v5042 = vsel %vm5038, %v5036, %v5040
    %v5043 = vpack.c.bf16 %v5042, %v5041
    %v5045 = vunpack.c.l.b16 %v5043
    %v5046 = vunpack.c.h.b16 %v5043
    %v5047 = vpack.c.b16 %v5045, %v5045
    %v5048 = vpack.c.b16 %v5046, %v5046
    %v5051 = vrot.slane %v5047, 1
    %v5052 = vrot.slane %v5048, 1
    %v5055 = vrot.slane %v5047, 2
    %v5056 = vrot.slane %v5048, 2
    %v5059 = vrot.slane %v5047, 3
    %v5060 = vrot.slane %v5048, 3
    %v5063 = vld [vmem:[%s6] sm:$0xf]
    %v5064 = vld [vmem:[%s6 + $0x4] sm:$0xf]
    %v5065 = vld [vmem:[%s6 + $0x8] sm:$0xf]
    %v5066 = vld [vmem:[%s6 + $0xc] sm:$0xf]
    %v5067 = vld [vmem:[%s6 + $0x10] sm:$0xf]
    %v5068 = vld [vmem:[%s6 + $0x14] sm:$0xf]
    %v5069 = vld [vmem:[%s6 + $0x18] sm:$0xf]
    %v5070 = vld [vmem:[%s6 + $0x1c] sm:$0xf]
    %v5071 = vld [vmem:[%s6 + $0x20] sm:$0xf]
    %v5072 = vld [vmem:[%s6 + $0x24] sm:$0xf]
    %v5073 = vld [vmem:[%s6 + $0x28] sm:$0xf]
    %v5074 = vld [vmem:[%s6 + $0x2c] sm:$0xf]
    %v5075 = vld [vmem:[%s6 + $0x30] sm:$0xf]
    %v5076 = vld [vmem:[%s6 + $0x34] sm:$0xf]
    %v5077 = vld [vmem:[%s6 + $0x38] sm:$0xf]
    %v5078 = vld [vmem:[%s6 + $0x3c] sm:$0xf]
    %v5079 = vld [vmem:[%s6 + $0x40] sm:$0xf]
    %v5080 = vld [vmem:[%s6 + $0x44] sm:$0xf]
    %v5081 = vld [vmem:[%s6 + $0x48] sm:$0xf]
    %v5082 = vld [vmem:[%s6 + $0x4c] sm:$0xf]
    %v5083 = vld [vmem:[%s6 + $0x50] sm:$0xf]
    %v5084 = vld [vmem:[%s6 + $0x54] sm:$0xf]
    %v5085 = vld [vmem:[%s6 + $0x58] sm:$0xf]
    %v5086 = vld [vmem:[%s6 + $0x5c] sm:$0xf]
    %v5087 = vld [vmem:[%s6 + $0x60] sm:$0xf]
    %v5088 = vld [vmem:[%s6 + $0x64] sm:$0xf]
    %v5089 = vld [vmem:[%s6 + $0x68] sm:$0xf]
    %v5090 = vld [vmem:[%s6 + $0x6c] sm:$0xf]
    %v5091 = vld [vmem:[%s6 + $0x70] sm:$0xf]
    %v5092 = vld [vmem:[%s6 + $0x74] sm:$0xf]
    %v5093 = vld [vmem:[%s6 + $0x78] sm:$0xf]
    %v5094 = vld [vmem:[%s6 + $0x7c] sm:$0xf]
    %v5095 = vld [vmem:[%s6 + $0x80] sm:$0xf]
    %v5096 = vld [vmem:[%s6 + $0x84] sm:$0xf]
    %v5097 = vld [vmem:[%s6 + $0x88] sm:$0xf]
    %v5098 = vld [vmem:[%s6 + $0x8c] sm:$0xf]
    %v5099 = vld [vmem:[%s6 + $0x90] sm:$0xf]
    %v5100 = vld [vmem:[%s6 + $0x94] sm:$0xf]
    %v5101 = vld [vmem:[%s6 + $0x98] sm:$0xf]
    %v5102 = vld [vmem:[%s6 + $0x9c] sm:$0xf]
    %v5103 = vld [vmem:[%s6 + $0xa0] sm:$0xf]
    %v5104 = vld [vmem:[%s6 + $0xa4] sm:$0xf]
    %v5105 = vld [vmem:[%s6 + $0xa8] sm:$0xf]
    %v5106 = vld [vmem:[%s6 + $0xac] sm:$0xf]
    %v5107 = vld [vmem:[%s6 + $0xb0] sm:$0xf]
    %v5108 = vld [vmem:[%s6 + $0xb4] sm:$0xf]
    %v5109 = vld [vmem:[%s6 + $0xb8] sm:$0xf]
    %v5110 = vld [vmem:[%s6 + $0xbc] sm:$0xf]
    %v5111 = vld [vmem:[%s6 + $0xc0] sm:$0xf]
    %v5112 = vld [vmem:[%s6 + $0xc4] sm:$0xf]
    %v5113 = vld [vmem:[%s6 + $0xc8] sm:$0xf]
    %v5114 = vld [vmem:[%s6 + $0xcc] sm:$0xf]
    %v5115 = vld [vmem:[%s6 + $0xd0] sm:$0xf]
    %v5116 = vld [vmem:[%s6 + $0xd4] sm:$0xf]
    %v5117 = vld [vmem:[%s6 + $0xd8] sm:$0xf]
    %v5118 = vld [vmem:[%s6 + $0xdc] sm:$0xf]
    %v5119 = vld [vmem:[%s6 + $0xe0] sm:$0xf]
    %v5120 = vld [vmem:[%s6 + $0xe4] sm:$0xf]
    %v5121 = vld [vmem:[%s6 + $0xe8] sm:$0xf]
    %v5122 = vld [vmem:[%s6 + $0xec] sm:$0xf]
    %v5123 = vld [vmem:[%s6 + $0xf0] sm:$0xf]
    %v5124 = vld [vmem:[%s6 + $0xf4] sm:$0xf]
    %v5125 = vld [vmem:[%s6 + $0xf8] sm:$0xf]
    %v5126 = vld [vmem:[%s6 + $0xfc] sm:$0xf]
    %v5127 = vld [vmem:[%s6 + $0x100] sm:$0xf]
    %v5128 = vld [vmem:[%s6 + $0x104] sm:$0xf]
    %v5129 = vld [vmem:[%s6 + $0x108] sm:$0xf]
    %v5130 = vld [vmem:[%s6 + $0x10c] sm:$0xf]
    %v5131 = vld [vmem:[%s6 + $0x110] sm:$0xf]
    %v5132 = vld [vmem:[%s6 + $0x114] sm:$0xf]
    %v5133 = vld [vmem:[%s6 + $0x118] sm:$0xf]
    %v5134 = vld [vmem:[%s6 + $0x11c] sm:$0xf]
    %v5135 = vld [vmem:[%s6 + $0x120] sm:$0xf]
    %v5136 = vld [vmem:[%s6 + $0x124] sm:$0xf]
    %v5137 = vld [vmem:[%s6 + $0x128] sm:$0xf]
    %v5138 = vld [vmem:[%s6 + $0x12c] sm:$0xf]
    %v5139 = vld [vmem:[%s6 + $0x130] sm:$0xf]
    %v5140 = vld [vmem:[%s6 + $0x134] sm:$0xf]
    %v5141 = vld [vmem:[%s6 + $0x138] sm:$0xf]
    %v5142 = vld [vmem:[%s6 + $0x13c] sm:$0xf]
    %v5143 = vld [vmem:[%s6 + $0x140] sm:$0xf]
    %v5144 = vld [vmem:[%s6 + $0x144] sm:$0xf]
    %v5145 = vld [vmem:[%s6 + $0x148] sm:$0xf]
    %v5146 = vld [vmem:[%s6 + $0x14c] sm:$0xf]
    %v5147 = vld [vmem:[%s6 + $0x150] sm:$0xf]
    %v5148 = vld [vmem:[%s6 + $0x154] sm:$0xf]
    %v5149 = vld [vmem:[%s6 + $0x158] sm:$0xf]
    %v5150 = vld [vmem:[%s6 + $0x15c] sm:$0xf]
    %v5151 = vld [vmem:[%s6 + $0x160] sm:$0xf]
    %v5152 = vld [vmem:[%s6 + $0x164] sm:$0xf]
    %v5153 = vld [vmem:[%s6 + $0x168] sm:$0xf]
    %v5154 = vld [vmem:[%s6 + $0x16c] sm:$0xf]
    %v5155 = vld [vmem:[%s6 + $0x170] sm:$0xf]
    %v5156 = vld [vmem:[%s6 + $0x174] sm:$0xf]
    %v5157 = vld [vmem:[%s6 + $0x178] sm:$0xf]
    %v5158 = vld [vmem:[%s6 + $0x17c] sm:$0xf]
    %v5159 = vld [vmem:[%s6 + $0x180] sm:$0xf]
    %v5160 = vld [vmem:[%s6 + $0x184] sm:$0xf]
    %v5161 = vld [vmem:[%s6 + $0x188] sm:$0xf]
    %v5162 = vld [vmem:[%s6 + $0x18c] sm:$0xf]
    %v5163 = vld [vmem:[%s6 + $0x190] sm:$0xf]
    %v5164 = vld [vmem:[%s6 + $0x194] sm:$0xf]
    %v5165 = vld [vmem:[%s6 + $0x198] sm:$0xf]
    %v5166 = vld [vmem:[%s6 + $0x19c] sm:$0xf]
    %v5167 = vld [vmem:[%s6 + $0x1a0] sm:$0xf]
    %v5168 = vld [vmem:[%s6 + $0x1a4] sm:$0xf]
    %v5169 = vld [vmem:[%s6 + $0x1a8] sm:$0xf]
    %v5170 = vld [vmem:[%s6 + $0x1ac] sm:$0xf]
    %v5171 = vld [vmem:[%s6 + $0x1b0] sm:$0xf]
    %v5172 = vld [vmem:[%s6 + $0x1b4] sm:$0xf]
    %v5173 = vld [vmem:[%s6 + $0x1b8] sm:$0xf]
    %v5174 = vld [vmem:[%s6 + $0x1bc] sm:$0xf]
    %v5175 = vld [vmem:[%s6 + $0x1c0] sm:$0xf]
    %v5176 = vld [vmem:[%s6 + $0x1c4] sm:$0xf]
    %v5177 = vld [vmem:[%s6 + $0x1c8] sm:$0xf]
    %v5178 = vld [vmem:[%s6 + $0x1cc] sm:$0xf]
    %v5179 = vld [vmem:[%s6 + $0x1d0] sm:$0xf]
    %v5180 = vld [vmem:[%s6 + $0x1d4] sm:$0xf]
    %v5181 = vld [vmem:[%s6 + $0x1d8] sm:$0xf]
    %v5182 = vld [vmem:[%s6 + $0x1dc] sm:$0xf]
    %v5183 = vld [vmem:[%s6 + $0x1e0] sm:$0xf]
    %v5184 = vld [vmem:[%s6 + $0x1e4] sm:$0xf]
    %v5185 = vld [vmem:[%s6 + $0x1e8] sm:$0xf]
    %v5186 = vld [vmem:[%s6 + $0x1ec] sm:$0xf]
    %v5187 = vld [vmem:[%s6 + $0x1f0] sm:$0xf]
    %v5188 = vld [vmem:[%s6 + $0x1f4] sm:$0xf]
    %v5189 = vld [vmem:[%s6 + $0x1f8] sm:$0xf]
    %v5190 = vld [vmem:[%s6 + $0x1fc] sm:$0xf]
    %v5191 = vld [vmem:[#allocation13] sm:$0x1]
    %v5193 = vperm.slane %v5191, 0
    %v5323 = vunpack.c.l.b16 %v5063
    %v5324 = vunpack.c.l.b16 %v5064
    %v5325 = vunpack.c.l.b16 %v5065
    %v5326 = vunpack.c.l.b16 %v5066
    %v5327 = vunpack.c.l.b16 %v5067
    %v5328 = vunpack.c.l.b16 %v5068
    %v5329 = vunpack.c.l.b16 %v5069
    %v5330 = vunpack.c.l.b16 %v5070
    %v5331 = vunpack.c.l.b16 %v5071
    %v5332 = vunpack.c.l.b16 %v5072
    %v5333 = vunpack.c.l.b16 %v5073
    %v5334 = vunpack.c.l.b16 %v5074
    %v5335 = vunpack.c.l.b16 %v5075
    %v5336 = vunpack.c.l.b16 %v5076
    %v5337 = vunpack.c.l.b16 %v5077
    %v5338 = vunpack.c.l.b16 %v5078
    %v5339 = vunpack.c.l.b16 %v5079
    %v5340 = vunpack.c.l.b16 %v5080
    %v5341 = vunpack.c.l.b16 %v5081
    %v5342 = vunpack.c.l.b16 %v5082
    %v5343 = vunpack.c.l.b16 %v5083
    %v5344 = vunpack.c.l.b16 %v5084
    %v5345 = vunpack.c.l.b16 %v5085
    %v5346 = vunpack.c.l.b16 %v5086
    %v5347 = vunpack.c.l.b16 %v5087
    %v5348 = vunpack.c.l.b16 %v5088
    %v5349 = vunpack.c.l.b16 %v5089
    %v5350 = vunpack.c.l.b16 %v5090
    %v5351 = vunpack.c.l.b16 %v5091
    %v5352 = vunpack.c.l.b16 %v5092
    %v5353 = vunpack.c.l.b16 %v5093
    %v5354 = vunpack.c.l.b16 %v5094
    %v5355 = vunpack.c.l.b16 %v5095
    %v5356 = vunpack.c.l.b16 %v5096
    %v5357 = vunpack.c.l.b16 %v5097
    %v5358 = vunpack.c.l.b16 %v5098
    %v5359 = vunpack.c.l.b16 %v5099
    %v5360 = vunpack.c.l.b16 %v5100
    %v5361 = vunpack.c.l.b16 %v5101
    %v5362 = vunpack.c.l.b16 %v5102
    %v5363 = vunpack.c.l.b16 %v5103
    %v5364 = vunpack.c.l.b16 %v5104
    %v5365 = vunpack.c.l.b16 %v5105
    %v5366 = vunpack.c.l.b16 %v5106
    %v5367 = vunpack.c.l.b16 %v5107
    %v5368 = vunpack.c.l.b16 %v5108
    %v5369 = vunpack.c.l.b16 %v5109
    %v5370 = vunpack.c.l.b16 %v5110
    %v5371 = vunpack.c.l.b16 %v5111
    %v5372 = vunpack.c.l.b16 %v5112
    %v5373 = vunpack.c.l.b16 %v5113
    %v5374 = vunpack.c.l.b16 %v5114
    %v5375 = vunpack.c.l.b16 %v5115
    %v5376 = vunpack.c.l.b16 %v5116
    %v5377 = vunpack.c.l.b16 %v5117
    %v5378 = vunpack.c.l.b16 %v5118
    %v5379 = vunpack.c.l.b16 %v5119
    %v5380 = vunpack.c.l.b16 %v5120
    %v5381 = vunpack.c.l.b16 %v5121
    %v5382 = vunpack.c.l.b16 %v5122
    %v5383 = vunpack.c.l.b16 %v5123
    %v5384 = vunpack.c.l.b16 %v5124
    %v5385 = vunpack.c.l.b16 %v5125
    %v5386 = vunpack.c.l.b16 %v5126
    %v5387 = vunpack.c.l.b16 %v5127
    %v5388 = vunpack.c.l.b16 %v5128
    %v5389 = vunpack.c.l.b16 %v5129
    %v5390 = vunpack.c.l.b16 %v5130
    %v5391 = vunpack.c.l.b16 %v5131
    %v5392 = vunpack.c.l.b16 %v5132
    %v5393 = vunpack.c.l.b16 %v5133
    %v5394 = vunpack.c.l.b16 %v5134
    %v5395 = vunpack.c.l.b16 %v5135
    %v5396 = vunpack.c.l.b16 %v5136
    %v5397 = vunpack.c.l.b16 %v5137
    %v5398 = vunpack.c.l.b16 %v5138
    %v5399 = vunpack.c.l.b16 %v5139
    %v5400 = vunpack.c.l.b16 %v5140
    %v5401 = vunpack.c.l.b16 %v5141
    %v5402 = vunpack.c.l.b16 %v5142
    %v5403 = vunpack.c.l.b16 %v5143
    %v5404 = vunpack.c.l.b16 %v5144
    %v5405 = vunpack.c.l.b16 %v5145
    %v5406 = vunpack.c.l.b16 %v5146
    %v5407 = vunpack.c.l.b16 %v5147
    %v5408 = vunpack.c.l.b16 %v5148
    %v5409 = vunpack.c.l.b16 %v5149
    %v5410 = vunpack.c.l.b16 %v5150
    %v5411 = vunpack.c.l.b16 %v5151
    %v5412 = vunpack.c.l.b16 %v5152
    %v5413 = vunpack.c.l.b16 %v5153
    %v5414 = vunpack.c.l.b16 %v5154
    %v5415 = vunpack.c.l.b16 %v5155
    %v5416 = vunpack.c.l.b16 %v5156
    %v5417 = vunpack.c.l.b16 %v5157
    %v5418 = vunpack.c.l.b16 %v5158
    %v5419 = vunpack.c.l.b16 %v5159
    %v5420 = vunpack.c.l.b16 %v5160
    %v5421 = vunpack.c.l.b16 %v5161
    %v5422 = vunpack.c.l.b16 %v5162
    %v5423 = vunpack.c.l.b16 %v5163
    %v5424 = vunpack.c.l.b16 %v5164
    %v5425 = vunpack.c.l.b16 %v5165
    %v5426 = vunpack.c.l.b16 %v5166
    %v5427 = vunpack.c.l.b16 %v5167
    %v5428 = vunpack.c.l.b16 %v5168
    %v5429 = vunpack.c.l.b16 %v5169
    %v5430 = vunpack.c.l.b16 %v5170
    %v5431 = vunpack.c.l.b16 %v5171
    %v5432 = vunpack.c.l.b16 %v5172
    %v5433 = vunpack.c.l.b16 %v5173
    %v5434 = vunpack.c.l.b16 %v5174
    %v5435 = vunpack.c.l.b16 %v5175
    %v5436 = vunpack.c.l.b16 %v5176
    %v5437 = vunpack.c.l.b16 %v5177
    %v5438 = vunpack.c.l.b16 %v5178
    %v5439 = vunpack.c.l.b16 %v5179
    %v5440 = vunpack.c.l.b16 %v5180
    %v5441 = vunpack.c.l.b16 %v5181
    %v5442 = vunpack.c.l.b16 %v5182
    %v5443 = vunpack.c.l.b16 %v5183
    %v5444 = vunpack.c.l.b16 %v5184
    %v5445 = vunpack.c.l.b16 %v5185
    %v5446 = vunpack.c.l.b16 %v5186
    %v5447 = vunpack.c.l.b16 %v5187
    %v5448 = vunpack.c.l.b16 %v5188
    %v5449 = vunpack.c.l.b16 %v5189
    %v5450 = vunpack.c.l.b16 %v5190
    %v5451 = vpack.c.b16 %v5324, %v5323
    %v5452 = vpack.c.b16 %v5326, %v5325
    %v5453 = vpack.c.b16 %v5328, %v5327
    %v5454 = vpack.c.b16 %v5330, %v5329
    %v5455 = vpack.c.b16 %v5332, %v5331
    %v5456 = vpack.c.b16 %v5334, %v5333
    %v5457 = vpack.c.b16 %v5336, %v5335
    %v5458 = vpack.c.b16 %v5338, %v5337
    %v5459 = vpack.c.b16 %v5340, %v5339
    %v5460 = vpack.c.b16 %v5342, %v5341
    %v5461 = vpack.c.b16 %v5344, %v5343
    %v5462 = vpack.c.b16 %v5346, %v5345
    %v5463 = vpack.c.b16 %v5348, %v5347
    %v5464 = vpack.c.b16 %v5350, %v5349
    %v5465 = vpack.c.b16 %v5352, %v5351
    %v5466 = vpack.c.b16 %v5354, %v5353
    %v5467 = vpack.c.b16 %v5356, %v5355
    %v5468 = vpack.c.b16 %v5358, %v5357
    %v5469 = vpack.c.b16 %v5360, %v5359
    %v5470 = vpack.c.b16 %v5362, %v5361
    %v5471 = vpack.c.b16 %v5364, %v5363
    %v5472 = vpack.c.b16 %v5366, %v5365
    %v5473 = vpack.c.b16 %v5368, %v5367
    %v5474 = vpack.c.b16 %v5370, %v5369
    %v5475 = vpack.c.b16 %v5372, %v5371
    %v5476 = vpack.c.b16 %v5374, %v5373
    %v5477 = vpack.c.b16 %v5376, %v5375
    %v5478 = vpack.c.b16 %v5378, %v5377
    %v5479 = vpack.c.b16 %v5380, %v5379
    %v5480 = vpack.c.b16 %v5382, %v5381
    %v5481 = vpack.c.b16 %v5384, %v5383
    %v5482 = vpack.c.b16 %v5386, %v5385
    %v5483 = vpack.c.b16 %v5388, %v5387
    %v5484 = vpack.c.b16 %v5390, %v5389
    %v5485 = vpack.c.b16 %v5392, %v5391
    %v5486 = vpack.c.b16 %v5394, %v5393
    %v5487 = vpack.c.b16 %v5396, %v5395
    %v5488 = vpack.c.b16 %v5398, %v5397
    %v5489 = vpack.c.b16 %v5400, %v5399
    %v5490 = vpack.c.b16 %v5402, %v5401
    %v5491 = vpack.c.b16 %v5404, %v5403
    %v5492 = vpack.c.b16 %v5406, %v5405
    %v5493 = vpack.c.b16 %v5408, %v5407
    %v5494 = vpack.c.b16 %v5410, %v5409
    %v5495 = vpack.c.b16 %v5412, %v5411
    %v5496 = vpack.c.b16 %v5414, %v5413
    %v5497 = vpack.c.b16 %v5416, %v5415
    %v5498 = vpack.c.b16 %v5418, %v5417
    %v5499 = vpack.c.b16 %v5420, %v5419
    %v5500 = vpack.c.b16 %v5422, %v5421
    %v5501 = vpack.c.b16 %v5424, %v5423
    %v5502 = vpack.c.b16 %v5426, %v5425
    %v5503 = vpack.c.b16 %v5428, %v5427
    %v5504 = vpack.c.b16 %v5430, %v5429
    %v5505 = vpack.c.b16 %v5432, %v5431
    %v5506 = vpack.c.b16 %v5434, %v5433
    %v5507 = vpack.c.b16 %v5436, %v5435
    %v5508 = vpack.c.b16 %v5438, %v5437
    %v5509 = vpack.c.b16 %v5440, %v5439
    %v5510 = vpack.c.b16 %v5442, %v5441
    %v5511 = vpack.c.b16 %v5444, %v5443
    %v5512 = vpack.c.b16 %v5446, %v5445
    %v5513 = vpack.c.b16 %v5448, %v5447
    %v5514 = vpack.c.b16 %v5450, %v5449
    %5579 = vmatpush.bf16.msra.mxu0 %v5458
    %5580 = vmatpush.bf16.msra.mxu0 %v5457
    %5581 = vmatpush.bf16.msra.mxu0 %v5456
    %5582 = vmatpush.bf16.msra.mxu0 %v5455
    %5583 = vmatpush.bf16.msra.mxu0 %v5454
    %5584 = vmatpush.bf16.msra.mxu0 %v5453
    %5585 = vmatpush.bf16.msra.mxu0 %v5452
    %5586 = vmatpush.bf16.msra.mxu0 %v5451
    %5587 = vmatmul.bf16.gmra.mxu0 %v5047
    %v5588 = vpop.f32.mrf.mxu0
    %v5589 = vadd.f32 %v5193, %v5588
    %v5590 = vpop.f32.mrf.mxu0
    %5591 = vdwg.mxu0
    %5592 = vmatpush.bf16.msra.mxu0 %v5466
    %5593 = vmatpush.bf16.msra.mxu0 %v5465
    %5594 = vmatpush.bf16.msra.mxu0 %v5464
    %5595 = vmatpush.bf16.msra.mxu0 %v5463
    %5596 = vmatpush.bf16.msra.mxu0 %v5462
    %5597 = vmatpush.bf16.msra.mxu0 %v5461
    %5598 = vmatpush.bf16.msra.mxu0 %v5460
    %5599 = vmatpush.bf16.msra.mxu0 %v5459
    %5600 = vmatmul.bf16.gmra.mxu0 %v5048
    %v5601 = vpop.f32.mrf.mxu0
    %v5602 = vadd.f32 %v5589, %v5601
    %v5603 = vpop.f32.mrf.mxu0
    %5604 = vdwg.mxu0
    %5605 = vmatpush.bf16.msra.mxu0 %v5474
    %5606 = vmatpush.bf16.msra.mxu0 %v5473
    %5607 = vmatpush.bf16.msra.mxu0 %v5472
    %5608 = vmatpush.bf16.msra.mxu0 %v5471
    %5609 = vmatpush.bf16.msra.mxu0 %v5470
    %5610 = vmatpush.bf16.msra.mxu0 %v5469
    %5611 = vmatpush.bf16.msra.mxu0 %v5468
    %5612 = vmatpush.bf16.msra.mxu0 %v5467
    %5613 = vmatmul.bf16.gmra.mxu0 %v5051
    %v5614 = vpop.f32.mrf.mxu0
    %v5615 = vadd.f32 %v5602, %v5614
    %v5616 = vpop.f32.mrf.mxu0
    %5617 = vdwg.mxu0
    %5618 = vmatpush.bf16.msra.mxu0 %v5482
    %5619 = vmatpush.bf16.msra.mxu0 %v5481
    %5620 = vmatpush.bf16.msra.mxu0 %v5480
    %5621 = vmatpush.bf16.msra.mxu0 %v5479
    %5622 = vmatpush.bf16.msra.mxu0 %v5478
    %5623 = vmatpush.bf16.msra.mxu0 %v5477
    %5624 = vmatpush.bf16.msra.mxu0 %v5476
    %5625 = vmatpush.bf16.msra.mxu0 %v5475
    %5626 = vmatmul.bf16.gmra.mxu0 %v5052
    %v5627 = vpop.f32.mrf.mxu0
    %v5628 = vadd.f32 %v5615, %v5627
    %v5629 = vpop.f32.mrf.mxu0
    %5630 = vdwg.mxu0
    %5631 = vmatpush.bf16.msra.mxu0 %v5490
    %5632 = vmatpush.bf16.msra.mxu0 %v5489
    %5633 = vmatpush.bf16.msra.mxu0 %v5488
    %5634 = vmatpush.bf16.msra.mxu0 %v5487
    %5635 = vmatpush.bf16.msra.mxu0 %v5486
    %5636 = vmatpush.bf16.msra.mxu0 %v5485
    %5637 = vmatpush.bf16.msra.mxu0 %v5484
    %5638 = vmatpush.bf16.msra.mxu0 %v5483
    %5639 = vmatmul.bf16.gmra.mxu0 %v5055
    %v5640 = vpop.f32.mrf.mxu0
    %v5641 = vadd.f32 %v5628, %v5640
    %v5642 = vpop.f32.mrf.mxu0
    %5643 = vdwg.mxu0
    %5644 = vmatpush.bf16.msra.mxu0 %v5498
    %5645 = vmatpush.bf16.msra.mxu0 %v5497
    %5646 = vmatpush.bf16.msra.mxu0 %v5496
    %5647 = vmatpush.bf16.msra.mxu0 %v5495
    %5648 = vmatpush.bf16.msra.mxu0 %v5494
    %5649 = vmatpush.bf16.msra.mxu0 %v5493
    %5650 = vmatpush.bf16.msra.mxu0 %v5492
    %5651 = vmatpush.bf16.msra.mxu0 %v5491
    %5652 = vmatmul.bf16.gmra.mxu0 %v5056
    %v5653 = vpop.f32.mrf.mxu0
    %v5654 = vadd.f32 %v5641, %v5653
    %v5655 = vpop.f32.mrf.mxu0
    %5656 = vdwg.mxu0
    %5657 = vmatpush.bf16.msra.mxu0 %v5506
    %5658 = vmatpush.bf16.msra.mxu0 %v5505
    %5659 = vmatpush.bf16.msra.mxu0 %v5504
    %5660 = vmatpush.bf16.msra.mxu0 %v5503
    %5661 = vmatpush.bf16.msra.mxu0 %v5502
    %5662 = vmatpush.bf16.msra.mxu0 %v5501
    %5663 = vmatpush.bf16.msra.mxu0 %v5500
    %5664 = vmatpush.bf16.msra.mxu0 %v5499
    %5665 = vmatmul.bf16.gmra.mxu0 %v5059
    %v5666 = vpop.f32.mrf.mxu0
    %v5667 = vadd.f32 %v5654, %v5666
    %v5668 = vpop.f32.mrf.mxu0
    %5669 = vdwg.mxu0
    %5670 = vmatpush.bf16.msra.mxu0 %v5514
    %5671 = vmatpush.bf16.msra.mxu0 %v5513
    %5672 = vmatpush.bf16.msra.mxu0 %v5512
    %5673 = vmatpush.bf16.msra.mxu0 %v5511
    %5674 = vmatpush.bf16.msra.mxu0 %v5510
    %5675 = vmatpush.bf16.msra.mxu0 %v5509
    %5676 = vmatpush.bf16.msra.mxu0 %v5508
    %5677 = vmatpush.bf16.msra.mxu0 %v5507
    %5678 = vmatmul.bf16.gmra.mxu0 %v5060
    %v5679 = vpop.f32.mrf.mxu0
    %v5680 = vadd.f32 %v5667, %v5679
    %v5681 = vpop.f32.mrf.mxu0
    %5682 = vdwg.mxu0
    %vm5683 = vcmask 254976
    %5684 = vst.msk [vmem:[#allocation14] sm:$0x3] %vm5683, %v5680
    // Predicated region
    $region62: #{forward.1} parent=1 // pred_check
      _
    $region63: #{forward.1} parent=1 // pred_check_branch
      %5686 = sbr.rel (0) target = $region65
    $region64: #{forward.1} parent=1 // pred_region
      %5688 = vsyncadd [#allocation4], 0
      %s5690 = sshll.u32 [#allocation14], 4
      %s5691 = int_to_ptr.vmem [resolvable:$true] %s5690
      %s5692 = sshll.u32 %s8, 4
      %s5693 = int_to_ptr.hbm [resolvable:$true] %s5692
      %5695 = dma.vmem_to_hbm [thread:$0]  %s5691, 32, %s5693, [#allocation4]
    $region65: #{forward.1} parent=1 // pred_fallthru
      _
    // Predicated region
    $region66: #{forward.1} parent=1 // pred_check
      _
    $region67: #{forward.1} parent=1 // pred_check_branch
      %5697 = sbr.rel (0) target = $region69
    $region68: #{forward.1} parent=1 // pred_region
      %5699 = dma.done [#allocation4], 32
    $region69: #{forward.1} parent=1 // pred_fallthru
      _
    %5700 = vsyncpa [#allocation3], 1
    %5701 = vsyncpa [#allocation6], 1
    %5702 = vsyncpa [#allocation9], 1
    %5703 = vsyncpa [#allocation12], 1
    %5704 = vsyncpa [#allocation4], 1

</llo_original>
